<compile_context>
chip_gen: v7x
topology: tpu7x:2x2x1
jax: 0.10.0
libtpu: 0.0.40
codegen_flags: <defaults>
</compile_context>

<pallas_src>
import math
from functools import partial

import jax
import jax.numpy as jnp
from jax.experimental import pallas as pl
from jax.experimental.pallas import tpu as pltpu


# --------------------------------------------------------------------------------------
# Small helpers (in-kernel)
# --------------------------------------------------------------------------------------

def _pad_rows(x, pad_l, pad_r):
    """Zero-pad a [T, C] tile along rows (second-to-last axis) on-chip (no XLA pad)."""
    if pad_l == 0 and pad_r == 0:
        return x
    parts = []
    if pad_l:
        parts.append(jnp.zeros((pad_l, x.shape[1]), x.dtype))
    parts.append(x)
    if pad_r:
        parts.append(jnp.zeros((pad_r, x.shape[1]), x.dtype))
    return jnp.concatenate(parts, axis=0)


def _layernorm_f32(x, gamma, beta, eps):
    mu = jnp.mean(x, axis=-1, keepdims=True)
    xc = x - mu
    var = jnp.mean(xc * xc, axis=-1, keepdims=True)
    return xc * jax.lax.rsqrt(var + eps) * gamma + beta


# --------------------------------------------------------------------------------------
# Fused TextEncoder kernel: proj_in -> L x (attn + FFN) -> proj_out -> VAE sample
# grid = (B,)
# --------------------------------------------------------------------------------------

def _text_encoder_kernel(x_ref, mcol_ref, mrow_ref, noise_ref,
                         w_in_ref, b_in_ref,
                         wqkv_ref, bqkv_ref, ek_ref, ev_ref, wo_ref, bo_ref,
                         g1_ref, bt1_ref,
                         w1_ref, b1_ref, w2_ref, b2_ref, g2_ref, bt2_ref,
                         w_out_ref, b_out_ref,
                         stats_ref, z_ref, *,
                         n_layers, n_heads, dk, window, K, out_ch,
                         noise_scale, eps):
    f32 = jnp.float32
    x = x_ref[0]                                  # [T, Cin] (compute dtype)
    T = x.shape[0]
    C = n_heads * dk
    cdt = x.dtype
    nrel = 2 * window + 1
    scale = 1.0 / math.sqrt(dk)
    pad_l, pad_r = (K - 1) // 2, K // 2
    Fc = b1_ref.shape[-1]

    m = mcol_ref[0]                               # [T, 1] (compute dtype)
    mf = m.astype(f32)

    # ---- shared precomputation (reused by every layer and head) ----------------------
    mask2d = mf * mrow_ref[0].astype(f32)                                   # [T, T]
    pad_pos = mask2d == 0.0
    rel_pos = (jax.lax.broadcasted_iota(jnp.int32, (T, T), 1)
               - jax.lax.broadcasted_iota(jnp.int32, (T, T), 0))            # s - t
    bands = [(rel_pos == (r - window)).astype(f32) for r in range(nrel)]    # diag masks

    # ---- proj_in (1x1 conv) * x_mask --------------------------------------------------
    h = jnp.dot(x, w_in_ref[...], preferred_element_type=f32) + b_in_ref[...]
    h = (h * mf).astype(cdt)                                                # [T, C]

    # ---- RelativePositionTransformer layers -------------------------------------------
    for l in range(n_layers):
        # ---------- relative-position multi-head attention ----------
        qkv = jnp.dot(h, wqkv_ref[l], preferred_element_type=f32) + bqkv_ref[l]  # [T, 3C]
        ek = ek_ref[l]                        # [2w+1, dk] (compute dtype)
        ev = ev_ref[l]                        # [2w+1, dk]
        wo = wo_ref[l]                        # [C, C]

        y = jnp.zeros((T, C), f32)
        for hd in range(n_heads):             # heads packed on the lane axis; static split
            q = (qkv[:, hd * dk:(hd + 1) * dk] * scale).astype(cdt)
            k = qkv[:, C + hd * dk:C + (hd + 1) * dk].astype(cdt)
            v = qkv[:, 2 * C + hd * dk:2 * C + (hd + 1) * dk].astype(cdt)

            # content logits and compact relative-key logits, both on the MXU
            scores = jax.lax.dot_general(q, k, (((1,), (1,)), ((), ())),
                                         preferred_element_type=f32)        # [T, T]
            rel_logits = jax.lax.dot_general(q, ek, (((1,), (1,)), ((), ())),
                                             preferred_element_type=f32)    # [T, 2w+1]
            # scatter compact logits onto the |s-t| <= window diagonals
            for r in range(nrel):
                scores = scores + rel_logits[:, r:r + 1] * bands[r]

            scores = jnp.where(pad_pos, -1e4, scores)
            smax = jnp.max(scores, axis=-1, keepdims=True)
            p = jnp.exp(scores - smax)
            p = p * pl.reciprocal(jnp.sum(p, axis=-1, keepdims=True), approx=True)

            out = jnp.dot(p.astype(cdt), v, preferred_element_type=f32)      # [T, dk]
            # relative-value term: gather p back to the compact band, contract with ev
            pr = jnp.concatenate(
                [jnp.sum(p * bands[r], axis=-1, keepdims=True) for r in range(nrel)],
                axis=1)                                                      # [T, 2w+1]
            out = out + jnp.dot(pr.astype(cdt), ev, preferred_element_type=f32)

            # fold the output projection per head (no head-concat / transpose needed)
            y = y + jnp.dot(out.astype(cdt), wo[hd * dk:(hd + 1) * dk, :],
                            preferred_element_type=f32)
        y = y + bo_ref[l]

        h = _layernorm_f32(h.astype(f32) + y, g1_ref[l], bt1_ref[l], eps).astype(cdt)

        # ---------- FFN: conv1 -> ReLU -> conv2 -> residual -> LN ----------
        xp = _pad_rows(h * m, pad_l, pad_r)                                  # [T+K-1, C]
        acc = jnp.zeros((T, Fc), f32)
        for dt in range(K):
            acc = acc + jnp.dot(xp[dt:dt + T, :], w1_ref[l, dt],
                                preferred_element_type=f32)
        acc = jnp.maximum(acc + b1_ref[l], 0.0)

        fp = _pad_rows((acc * mf).astype(cdt), pad_l, pad_r)                 # [T+K-1, F]
        acc2 = jnp.zeros((T, C), f32)
        for dt in range(K):
            acc2 = acc2 + jnp.dot(fp[dt:dt + T, :], w2_ref[l, dt],
                                  preferred_element_type=f32)
        y2 = (acc2 + b2_ref[l]) * mf

        h = _layernorm_f32(h.astype(f32) + y2, g2_ref[l], bt2_ref[l], eps).astype(cdt)

    # ---- final encoder mask + proj_out * mask + VAE split & sample ---------------------
    hm = h * m
    stats = jnp.dot(hm, w_out_ref[...], preferred_element_type=f32) + b_out_ref[...]
    stats = stats * mf
    mean = stats[:, :out_ch]
    logs = stats[:, out_ch:]
    z = mean + noise_ref[0].astype(f32) * jnp.exp(logs) * mf * noise_scale

    stats_ref[0] = stats.astype(stats_ref.dtype)
    z_ref[0] = z.astype(z_ref.dtype)


# --------------------------------------------------------------------------------------
# Parameters: PyTorch-layout init + one-time kernel-layout preparation
# --------------------------------------------------------------------------------------

def _conv_init(key, cout, cin, ksz):
    k1, k2 = jax.random.split(key)
    bound = 1.0 / math.sqrt(cin * ksz)
    w = jax.random.uniform(k1, (cout, cin, ksz), jnp.float32, -bound, bound)
    b = jax.random.uniform(k2, (cout,), jnp.float32, -bound, bound)
    return w, b


def init_text_encoder_params(key, in_channels, out_channels, hidden_channels,
                             hidden_channels_ffn, n_heads, n_layers, kernel_size,
                             window_size=4):
    dk = hidden_channels // n_heads
    keys = jax.random.split(key, 2 + n_layers)
    params = {"n_heads": n_heads, "window_size": window_size, "out_channels": out_channels}
    w, b = _conv_init(keys[0], hidden_channels, in_channels, 1)
    params["proj_in"] = {"w": w, "b": b}
    layers = []
    for i in range(n_layers):
        lk = jax.random.split(keys[2 + i], 10)
        wq, bq = _conv_init(lk[0], hidden_channels, hidden_channels, 1)
        wk, bk = _conv_init(lk[1], hidden_channels, hidden_channels, 1)
        wv, bv = _conv_init(lk[2], hidden_channels, hidden_channels, 1)
        wo, bo = _conv_init(lk[3], hidden_channels, hidden_channels, 1)
        rel_std = dk ** -0.5
        emb_rel_k = jax.random.normal(lk[4], (1, 2 * window_size + 1, dk), jnp.float32) * rel_std
        emb_rel_v = jax.random.normal(lk[5], (1, 2 * window_size + 1, dk), jnp.float32) * rel_std
        w1, b1 = _conv_init(lk[6], hidden_channels_ffn, hidden_channels, kernel_size)
        w2, b2 = _conv_init(lk[7], hidden_channels, hidden_channels_ffn, kernel_size)
        layers.append({
            "wq": wq, "bq": bq, "wk": wk, "bk": bk, "wv": wv, "bv": bv, "wo": wo, "bo": bo,
            "emb_rel_k": emb_rel_k, "emb_rel_v": emb_rel_v,
            "ln1_g": jnp.ones((hidden_channels,), jnp.float32),
            "ln1_b": jnp.zeros((hidden_channels,), jnp.float32),
            "w1": w1, "b1": b1, "w2": w2, "b2": b2,
            "ln2_g": jnp.ones((hidden_channels,), jnp.float32),
            "ln2_b": jnp.zeros((hidden_channels,), jnp.float32),
        })
    params["layers"] = layers
    w, b = _conv_init(keys[1], out_channels * 2, hidden_channels, 1)
    params["proj_out"] = {"w": w, "b": b}
    return params


def prepare_params(params, compute_dtype=jnp.bfloat16):
    """One-time layout prep: pre-transpose conv weights, concatenate QKV, stack the per-layer
    tensors along a leading n_layers axis, and cast matmul weights to bf16."""
    cd = compute_dtype
    hidden = params["proj_in"]["w"].shape[0]
    layers = params["layers"]
    L = len(layers)
    K = layers[0]["w1"].shape[2]
    Fc = layers[0]["w1"].shape[0]

    def lin_w(w):                         # torch [Cout, Cin, 1] -> [Cin, Cout]
        return w[:, :, 0].T.astype(cd)

    def row(v):                           # bias / LN vector -> [1, C] (kept in f32)
        return v.reshape(1, -1).astype(jnp.float32)

    def stack(fn):
        return jnp.stack([fn(lp) for lp in layers], axis=0)

    prep = {
        "compute_dtype": cd,
        "n_heads": params["n_heads"],
        "window_size": params["window_size"],
        "out_channels": params["out_channels"],
        "hidden": hidden,
        "n_layers": L,
        "kernel_size": K,
        "ffn_channels": Fc,
        "proj_in": {"w": lin_w(params["proj_in"]["w"]), "b": row(params["proj_in"]["b"])},
        "proj_out": {"w": lin_w(params["proj_out"]["w"]), "b": row(params["proj_out"]["b"])},
        # stacked per-layer tensors
        "wqkv": stack(lambda lp: jnp.concatenate(
            [lp["wq"][:, :, 0].T, lp["wk"][:, :, 0].T, lp["wv"][:, :, 0].T],
            axis=1).astype(cd)),
        "bqkv": stack(lambda lp: row(jnp.concatenate([lp["bq"], lp["bk"], lp["bv"]]))),
        "ek": stack(lambda lp: lp["emb_rel_k"][0].astype(cd)),     # compact [2w+1, dk]
        "ev": stack(lambda lp: lp["emb_rel_v"][0].astype(cd)),
        "wo": stack(lambda lp: lin_w(lp["wo"])),
        "bo": stack(lambda lp: row(lp["bo"])),
        "ln1_g": stack(lambda lp: row(lp["ln1_g"])),
        "ln1_b": stack(lambda lp: row(lp["ln1_b"])),
        "w1": stack(lambda lp: jnp.transpose(lp["w1"], (2, 1, 0)).astype(cd)),  # [K, C, F]
        "b1": stack(lambda lp: row(lp["b1"])),
        "w2": stack(lambda lp: jnp.transpose(lp["w2"], (2, 1, 0)).astype(cd)),  # [K, F, C]
        "b2": stack(lambda lp: row(lp["b2"])),
        "ln2_g": stack(lambda lp: row(lp["ln2_g"])),
        "ln2_b": stack(lambda lp: row(lp["ln2_b"])),
    }
    return prep


# --------------------------------------------------------------------------------------
# Forward (use_embedding=False, use_vae=True, g=None)
# --------------------------------------------------------------------------------------

def text_encoder_forward(prep, x, x_mask, noise_key, noise_scale=1.0):
    """x: [B, in_channels, T] (PyTorch NCT), x_mask: [B, 1, T]. Returns NCT outputs."""
    cdt = prep["compute_dtype"]
    out_ch = prep["out_channels"]
    n_heads = prep["n_heads"]
    C = prep["hidden"]
    dk = C // n_heads
    window = prep["window_size"]
    L = prep["n_layers"]
    K = prep["kernel_size"]
    Fc = prep["ffn_channels"]
    nrel = 2 * window + 1
    B, Cin, T = x.shape

    xt = jnp.transpose(x, (0, 2, 1)).astype(cdt)            # [B, T, Cin]
    mcol = jnp.transpose(x_mask, (0, 2, 1)).astype(cdt)     # [B, T, 1]
    mrow = x_mask.astype(cdt)                               # [B, 1, T]
    noise = jax.random.normal(noise_key, (B, T, out_ch), jnp.float32)

    kernel = partial(_text_encoder_kernel, n_layers=L, n_heads=n_heads, dk=dk,
                     window=window, K=K, out_ch=out_ch,
                     noise_scale=float(noise_scale), eps=1e-5)

    def const_spec(shape):
        nd = len(shape)
        return pl.BlockSpec(shape, lambda b, nd=nd: (0,) * nd)

    def batch_spec(shape):
        return pl.BlockSpec(shape, lambda b: (b, 0, 0))

    in_specs = [
        batch_spec((1, T, Cin)),                    # x
        batch_spec((1, T, 1)),                      # mask column
        batch_spec((1, 1, T)),                      # mask row
        batch_spec((1, T, out_ch)),                 # noise
        const_spec((Cin, C)),                       # proj_in w
        const_spec((1, C)),                         # proj_in b
        const_spec((L, C, 3 * C)),                  # wqkv (pre-concatenated)
        const_spec((L, 1, 3 * C)),                  # bqkv
        const_spec((L, nrel, dk)),                  # compact rel-key tables
        const_spec((L, nrel, dk)),                  # compact rel-value tables
        const_spec((L, C, C)),                      # wo
        const_spec((L, 1, C)),                      # bo
        const_spec((L, 1, C)),                      # ln1 gamma
        const_spec((L, 1, C)),                      # ln1 beta
        const_spec((L, K, C, Fc)),                  # ffn w1
        const_spec((L, 1, Fc)),                     # ffn b1
        const_spec((L, K, Fc, C)),                  # ffn w2
        const_spec((L, 1, C)),                      # ffn b2
        const_spec((L, 1, C)),                      # ln2 gamma
        const_spec((L, 1, C)),                      # ln2 beta
        const_spec((C, 2 * out_ch)),                # proj_out w
        const_spec((1, 2 * out_ch)),                # proj_out b
    ]
    out_specs = (batch_spec((1, T, 2 * out_ch)),
                 batch_spec((1, T, out_ch)))

    stats, z = pl.pallas_call(
        kernel,
        out_shape=(jax.ShapeDtypeStruct((B, T, 2 * out_ch), jnp.float32),
                   jax.ShapeDtypeStruct((B, T, out_ch), jnp.float32)),
        grid=(B,),
        in_specs=in_specs,
        out_specs=out_specs,
        compiler_params=pltpu.CompilerParams(dimension_semantics=("parallel",)),
    )(xt, mcol, mrow, noise,
      prep["proj_in"]["w"], prep["proj_in"]["b"],
      prep["wqkv"], prep["bqkv"], prep["ek"], prep["ev"], prep["wo"], prep["bo"],
      prep["ln1_g"], prep["ln1_b"],
      prep["w1"], prep["b1"], prep["w2"], prep["b2"],
      prep["ln2_g"], prep["ln2_b"],
      prep["proj_out"]["w"], prep["proj_out"]["b"])

    m_out = stats[..., :out_ch]
    logs = stats[..., out_ch:]
    to_nct = lambda a: jnp.transpose(a, (0, 2, 1))
    return to_nct(z), to_nct(m_out), to_nct(logs), to_nct(stats), x_mask


# --------------------------------------------------------------------------------------
# Demo
# --------------------------------------------------------------------------------------

if __name__ == "__main__":
    B, T = 2, 16
    in_channels, out_channels = 8, 4
    hidden_channels, hidden_channels_ffn = 32, 64
    n_heads, n_layers, kernel_size = 2, 2, 3

    key = jax.random.PRNGKey(0)
    kp, kx, kn = jax.random.split(key, 3)

    params = init_text_encoder_params(kp, in_channels, out_channels, hidden_channels,
                                      hidden_channels_ffn, n_heads, n_layers, kernel_size)
    prep = prepare_params(params, compute_dtype=jnp.bfloat16)

    x = jax.random.normal(kx, (B, in_channels, T), jnp.float32)
    lengths = jnp.array([16, 12])
    x_mask = (jnp.arange(T)[None, :] < lengths[:, None]).astype(jnp.float32)[:, None, :]

    z, m, logs, x_out, x_mask_out = text_encoder_forward(prep, x, x_mask, kn, noise_scale=1.0)
    jax.block_until_ready((z, m, logs, x_out, x_mask_out))

    assert z.shape == (B, out_channels, T)
    assert m.shape == (B, out_channels, T)
    assert logs.shape == (B, out_channels, T)
    assert x_out.shape == (B, 2 * out_channels, T)
    assert x_mask_out.shape == (B, 1, T)
    assert bool(jnp.all(jnp.isfinite(z)))
    assert bool(jnp.all(jnp.isfinite(x_out)))
    print("KERNEL_OK")
</pallas_src>

<mosaic_0001>
module attributes {stable_mosaic.version = 11 : i64} {
  func.func @_text_encoder_kernel(%arg0: i32, %arg1: memref<1x16x8xbf16, #tpu.memory_space<vmem>>, %arg2: memref<1x16x1xbf16, #tpu.memory_space<vmem>>, %arg3: memref<1x1x16xbf16, #tpu.memory_space<vmem>>, %arg4: memref<1x16x4xf32, #tpu.memory_space<vmem>>, %arg5: memref<8x32xbf16, #tpu.memory_space<vmem>>, %arg6: memref<1x32xf32, #tpu.memory_space<vmem>>, %arg7: memref<2x32x96xbf16, #tpu.memory_space<vmem>>, %arg8: memref<2x1x96xf32, #tpu.memory_space<vmem>>, %arg9: memref<2x9x16xbf16, #tpu.memory_space<vmem>>, %arg10: memref<2x9x16xbf16, #tpu.memory_space<vmem>>, %arg11: memref<2x32x32xbf16, #tpu.memory_space<vmem>>, %arg12: memref<2x1x32xf32, #tpu.memory_space<vmem>>, %arg13: memref<2x1x32xf32, #tpu.memory_space<vmem>>, %arg14: memref<2x1x32xf32, #tpu.memory_space<vmem>>, %arg15: memref<2x3x32x64xbf16, #tpu.memory_space<vmem>>, %arg16: memref<2x1x64xf32, #tpu.memory_space<vmem>>, %arg17: memref<2x3x64x32xbf16, #tpu.memory_space<vmem>>, %arg18: memref<2x1x32xf32, #tpu.memory_space<vmem>>, %arg19: memref<2x1x32xf32, #tpu.memory_space<vmem>>, %arg20: memref<2x1x32xf32, #tpu.memory_space<vmem>>, %arg21: memref<32x8xbf16, #tpu.memory_space<vmem>>, %arg22: memref<1x8xf32, #tpu.memory_space<vmem>>, %arg23: memref<1x16x8xf32, #tpu.memory_space<vmem>>, %arg24: memref<1x16x4xf32, #tpu.memory_space<vmem>>) attributes {dimension_semantics = [#tpu.dimension_semantics<parallel>], iteration_bounds = array<i64: 2>, scalar_prefetch = 0 : i64, scratch_operands = 0 : i64, tpu.core_type = #tpu.core_type<tc>, window_params = [{transform_indices = @transform_0, window_bounds = array<i64: 1, 16, 8>}, {transform_indices = @transform_1, window_bounds = array<i64: 1, 16, 1>}, {transform_indices = @transform_2, window_bounds = array<i64: 1, 1, 16>}, {transform_indices = @transform_3, window_bounds = array<i64: 1, 16, 4>}, {pipeline_mode = #tpu.pipeline_mode<synchronous>, transform_indices = @transform_4, window_bounds = array<i64: 8, 32>}, {pipeline_mode = #tpu.pipeline_mode<synchronous>, transform_indices = @transform_5, window_bounds = array<i64: 1, 32>}, {pipeline_mode = #tpu.pipeline_mode<synchronous>, transform_indices = @transform_6, window_bounds = array<i64: 2, 32, 96>}, {pipeline_mode = #tpu.pipeline_mode<synchronous>, transform_indices = @transform_7, window_bounds = array<i64: 2, 1, 96>}, {pipeline_mode = #tpu.pipeline_mode<synchronous>, transform_indices = @transform_8, window_bounds = array<i64: 2, 9, 16>}, {pipeline_mode = #tpu.pipeline_mode<synchronous>, transform_indices = @transform_9, window_bounds = array<i64: 2, 9, 16>}, {pipeline_mode = #tpu.pipeline_mode<synchronous>, transform_indices = @transform_10, window_bounds = array<i64: 2, 32, 32>}, {pipeline_mode = #tpu.pipeline_mode<synchronous>, transform_indices = @transform_11, window_bounds = array<i64: 2, 1, 32>}, {pipeline_mode = #tpu.pipeline_mode<synchronous>, transform_indices = @transform_12, window_bounds = array<i64: 2, 1, 32>}, {pipeline_mode = #tpu.pipeline_mode<synchronous>, transform_indices = @transform_13, window_bounds = array<i64: 2, 1, 32>}, {pipeline_mode = #tpu.pipeline_mode<synchronous>, transform_indices = @transform_14, window_bounds = array<i64: 2, 3, 32, 64>}, {pipeline_mode = #tpu.pipeline_mode<synchronous>, transform_indices = @transform_15, window_bounds = array<i64: 2, 1, 64>}, {pipeline_mode = #tpu.pipeline_mode<synchronous>, transform_indices = @transform_16, window_bounds = array<i64: 2, 3, 64, 32>}, {pipeline_mode = #tpu.pipeline_mode<synchronous>, transform_indices = @transform_17, window_bounds = array<i64: 2, 1, 32>}, {pipeline_mode = #tpu.pipeline_mode<synchronous>, transform_indices = @transform_18, window_bounds = array<i64: 2, 1, 32>}, {pipeline_mode = #tpu.pipeline_mode<synchronous>, transform_indices = @transform_19, window_bounds = array<i64: 2, 1, 32>}, {pipeline_mode = #tpu.pipeline_mode<synchronous>, transform_indices = @transform_20, window_bounds = array<i64: 32, 8>}, {pipeline_mode = #tpu.pipeline_mode<synchronous>, transform_indices = @transform_21, window_bounds = array<i64: 1, 8>}, {transform_indices = @transform_22, window_bounds = array<i64: 1, 16, 8>}, {transform_indices = @transform_23, window_bounds = array<i64: 1, 16, 4>}]} {
    %c0 = arith.constant 0 : index
    %c0_0 = arith.constant 0 : index
    %c0_1 = arith.constant 0 : index
    %0 = vector.load %arg1[%c0, %c0_0, %c0_1] : memref<1x16x8xbf16, #tpu.memory_space<vmem>>, vector<1x16x8xbf16>
    %1 = vector.shape_cast %0 : vector<1x16x8xbf16> to vector<16x8xbf16>
    %c0_2 = arith.constant 0 : index
    %c0_3 = arith.constant 0 : index
    %c0_4 = arith.constant 0 : index
    %2 = vector.load %arg2[%c0_2, %c0_3, %c0_4] : memref<1x16x1xbf16, #tpu.memory_space<vmem>>, vector<1x16x1xbf16>
    %3 = vector.shape_cast %2 : vector<1x16x1xbf16> to vector<16x1xbf16>
    %4 = arith.extf %3 : vector<16x1xbf16> to vector<16x1xf32>
    %c0_5 = arith.constant 0 : index
    %c0_6 = arith.constant 0 : index
    %c0_7 = arith.constant 0 : index
    %5 = vector.load %arg3[%c0_5, %c0_6, %c0_7] : memref<1x1x16xbf16, #tpu.memory_space<vmem>>, vector<1x1x16xbf16>
    %6 = vector.shape_cast %5 : vector<1x1x16xbf16> to vector<1x16xbf16>
    %7 = arith.extf %6 : vector<1x16xbf16> to vector<1x16xf32>
    %8 = vector.broadcast %4 : vector<16x1xf32> to vector<16x16xf32>
    %9 = vector.broadcast %7 : vector<1x16xf32> to vector<16x16xf32>
    %10 = arith.mulf %8, %9 : vector<16x16xf32>
    %cst = arith.constant 0.000000e+00 : f32
    %11 = vector.broadcast %cst : f32 to vector<16x16xf32>
    %12 = arith.cmpf oeq, %10, %11 : vector<16x16xf32>
    %13 = tpu.iota {dimensions = array<i32: 1>} : vector<16x16xi32>
    %14 = tpu.iota {dimensions = array<i32: 0>} : vector<16x16xi32>
    %15 = arith.subi %13, %14 : vector<16x16xi32>
    %c-4_i32 = arith.constant -4 : i32
    %16 = vector.broadcast %c-4_i32 : i32 to vector<16x16xi32>
    %17 = arith.cmpi eq, %15, %16 : vector<16x16xi32>
    %18 = arith.extui %17 : vector<16x16xi1> to vector<16x16xi32>
    %19 = arith.sitofp %18 : vector<16x16xi32> to vector<16x16xf32>
    %c-3_i32 = arith.constant -3 : i32
    %20 = vector.broadcast %c-3_i32 : i32 to vector<16x16xi32>
    %21 = arith.cmpi eq, %15, %20 : vector<16x16xi32>
    %22 = arith.extui %21 : vector<16x16xi1> to vector<16x16xi32>
    %23 = arith.sitofp %22 : vector<16x16xi32> to vector<16x16xf32>
    %c-2_i32 = arith.constant -2 : i32
    %24 = vector.broadcast %c-2_i32 : i32 to vector<16x16xi32>
    %25 = arith.cmpi eq, %15, %24 : vector<16x16xi32>
    %26 = arith.extui %25 : vector<16x16xi1> to vector<16x16xi32>
    %27 = arith.sitofp %26 : vector<16x16xi32> to vector<16x16xf32>
    %c-1_i32 = arith.constant -1 : i32
    %28 = vector.broadcast %c-1_i32 : i32 to vector<16x16xi32>
    %29 = arith.cmpi eq, %15, %28 : vector<16x16xi32>
    %30 = arith.extui %29 : vector<16x16xi1> to vector<16x16xi32>
    %31 = arith.sitofp %30 : vector<16x16xi32> to vector<16x16xf32>
    %c0_i32 = arith.constant 0 : i32
    %32 = vector.broadcast %c0_i32 : i32 to vector<16x16xi32>
    %33 = arith.cmpi eq, %15, %32 : vector<16x16xi32>
    %34 = arith.extui %33 : vector<16x16xi1> to vector<16x16xi32>
    %35 = arith.sitofp %34 : vector<16x16xi32> to vector<16x16xf32>
    %c1_i32 = arith.constant 1 : i32
    %36 = vector.broadcast %c1_i32 : i32 to vector<16x16xi32>
    %37 = arith.cmpi eq, %15, %36 : vector<16x16xi32>
    %38 = arith.extui %37 : vector<16x16xi1> to vector<16x16xi32>
    %39 = arith.sitofp %38 : vector<16x16xi32> to vector<16x16xf32>
    %c2_i32 = arith.constant 2 : i32
    %40 = vector.broadcast %c2_i32 : i32 to vector<16x16xi32>
    %41 = arith.cmpi eq, %15, %40 : vector<16x16xi32>
    %42 = arith.extui %41 : vector<16x16xi1> to vector<16x16xi32>
    %43 = arith.sitofp %42 : vector<16x16xi32> to vector<16x16xf32>
    %c3_i32 = arith.constant 3 : i32
    %44 = vector.broadcast %c3_i32 : i32 to vector<16x16xi32>
    %45 = arith.cmpi eq, %15, %44 : vector<16x16xi32>
    %46 = arith.extui %45 : vector<16x16xi1> to vector<16x16xi32>
    %47 = arith.sitofp %46 : vector<16x16xi32> to vector<16x16xf32>
    %c4_i32 = arith.constant 4 : i32
    %48 = vector.broadcast %c4_i32 : i32 to vector<16x16xi32>
    %49 = arith.cmpi eq, %15, %48 : vector<16x16xi32>
    %50 = arith.extui %49 : vector<16x16xi1> to vector<16x16xi32>
    %51 = arith.sitofp %50 : vector<16x16xi32> to vector<16x16xf32>
    %c0_8 = arith.constant 0 : index
    %c0_9 = arith.constant 0 : index
    %52 = vector.load %arg5[%c0_8, %c0_9] : memref<8x32xbf16, #tpu.memory_space<vmem>>, vector<8x32xbf16>
    %cst_10 = arith.constant dense<0.000000e+00> : vector<16x32xf32>
    %53 = tpu.matmul %1, %52, %cst_10 {dimension_numbers = #tpu.dot_dimension_numbers<[1], [0], [0], [1], [0, 0, 1, 1], [], []>} : vector<16x8xbf16>, vector<8x32xbf16>, vector<16x32xf32> -> vector<16x32xf32>
    %c0_11 = arith.constant 0 : index
    %c0_12 = arith.constant 0 : index
    %54 = vector.load %arg6[%c0_11, %c0_12] : memref<1x32xf32, #tpu.memory_space<vmem>>, vector<1x32xf32>
    %55 = vector.broadcast %54 : vector<1x32xf32> to vector<16x32xf32>
    %56 = arith.addf %53, %55 : vector<16x32xf32>
    %57 = vector.broadcast %4 : vector<16x1xf32> to vector<16x32xf32>
    %58 = arith.mulf %56, %57 : vector<16x32xf32>
    %59 = arith.truncf %58 : vector<16x32xf32> to vector<16x32xbf16>
    %c0_13 = arith.constant 0 : index
    %c0_14 = arith.constant 0 : index
    %c0_15 = arith.constant 0 : index
    %60 = vector.load %arg7[%c0_13, %c0_14, %c0_15] : memref<2x32x96xbf16, #tpu.memory_space<vmem>>, vector<1x32x96xbf16>
    %61 = vector.shape_cast %60 : vector<1x32x96xbf16> to vector<32x96xbf16>
    %cst_16 = arith.constant dense<0.000000e+00> : vector<16x96xf32>
    %62 = tpu.matmul %59, %61, %cst_16 {dimension_numbers = #tpu.dot_dimension_numbers<[1], [0], [0], [1], [0, 0, 1, 1], [], []>} : vector<16x32xbf16>, vector<32x96xbf16>, vector<16x96xf32> -> vector<16x96xf32>
    %c0_17 = arith.constant 0 : index
    %c0_18 = arith.constant 0 : index
    %c0_19 = arith.constant 0 : index
    %63 = vector.load %arg8[%c0_17, %c0_18, %c0_19] : memref<2x1x96xf32, #tpu.memory_space<vmem>>, vector<1x1x96xf32>
    %64 = vector.shape_cast %63 : vector<1x1x96xf32> to vector<1x96xf32>
    %65 = vector.broadcast %64 : vector<1x96xf32> to vector<16x96xf32>
    %66 = arith.addf %62, %65 : vector<16x96xf32>
    %c0_20 = arith.constant 0 : index
    %c0_21 = arith.constant 0 : index
    %c0_22 = arith.constant 0 : index
    %67 = vector.load %arg9[%c0_20, %c0_21, %c0_22] : memref<2x9x16xbf16, #tpu.memory_space<vmem>>, vector<1x9x16xbf16>
    %68 = vector.shape_cast %67 : vector<1x9x16xbf16> to vector<9x16xbf16>
    %c0_23 = arith.constant 0 : index
    %c0_24 = arith.constant 0 : index
    %c0_25 = arith.constant 0 : index
    %69 = vector.load %arg10[%c0_23, %c0_24, %c0_25] : memref<2x9x16xbf16, #tpu.memory_space<vmem>>, vector<1x9x16xbf16>
    %70 = vector.shape_cast %69 : vector<1x9x16xbf16> to vector<9x16xbf16>
    %c0_26 = arith.constant 0 : index
    %c0_27 = arith.constant 0 : index
    %c0_28 = arith.constant 0 : index
    %71 = vector.load %arg11[%c0_26, %c0_27, %c0_28] : memref<2x32x32xbf16, #tpu.memory_space<vmem>>, vector<1x32x32xbf16>
    %72 = vector.shape_cast %71 : vector<1x32x32xbf16> to vector<32x32xbf16>
    %cst_29 = arith.constant 0.000000e+00 : f32
    %73 = vector.broadcast %cst_29 : f32 to vector<16x32xf32>
    %74 = vector.extract_strided_slice %66 {offsets = [0, 0], sizes = [16, 16], strides = [1, 1]} : vector<16x96xf32> to vector<16x16xf32>
    %cst_30 = arith.constant 2.500000e-01 : f32
    %75 = vector.broadcast %cst_30 : f32 to vector<16x16xf32>
    %76 = arith.mulf %74, %75 : vector<16x16xf32>
    %77 = arith.truncf %76 : vector<16x16xf32> to vector<16x16xbf16>
    %78 = vector.extract_strided_slice %66 {offsets = [0, 32], sizes = [16, 16], strides = [1, 1]} : vector<16x96xf32> to vector<16x16xf32>
    %79 = arith.truncf %78 : vector<16x16xf32> to vector<16x16xbf16>
    %80 = vector.extract_strided_slice %66 {offsets = [0, 64], sizes = [16, 16], strides = [1, 1]} : vector<16x96xf32> to vector<16x16xf32>
    %81 = arith.truncf %80 : vector<16x16xf32> to vector<16x16xbf16>
    %cst_31 = arith.constant dense<0.000000e+00> : vector<16x16xf32>
    %82 = tpu.matmul %77, %79, %cst_31 {dimension_numbers = #tpu.dot_dimension_numbers<[1], [1], [0], [0], [0, 0, 1, 0], [], []>} : vector<16x16xbf16>, vector<16x16xbf16>, vector<16x16xf32> -> vector<16x16xf32>
    %cst_32 = arith.constant dense<0.000000e+00> : vector<16x9xf32>
    %83 = tpu.matmul %77, %68, %cst_32 {dimension_numbers = #tpu.dot_dimension_numbers<[1], [1], [0], [0], [0, 0, 1, 0], [], []>} : vector<16x16xbf16>, vector<9x16xbf16>, vector<16x9xf32> -> vector<16x9xf32>
    %84 = vector.extract_strided_slice %83 {offsets = [0, 0], sizes = [16, 1], strides = [1, 1]} : vector<16x9xf32> to vector<16x1xf32>
    %85 = vector.broadcast %84 : vector<16x1xf32> to vector<16x16xf32>
    %86 = arith.mulf %85, %19 : vector<16x16xf32>
    %87 = arith.addf %82, %86 : vector<16x16xf32>
    %88 = vector.extract_strided_slice %83 {offsets = [0, 1], sizes = [16, 1], strides = [1, 1]} : vector<16x9xf32> to vector<16x1xf32>
    %89 = vector.broadcast %88 : vector<16x1xf32> to vector<16x16xf32>
    %90 = arith.mulf %89, %23 : vector<16x16xf32>
    %91 = arith.addf %87, %90 : vector<16x16xf32>
    %92 = vector.extract_strided_slice %83 {offsets = [0, 2], sizes = [16, 1], strides = [1, 1]} : vector<16x9xf32> to vector<16x1xf32>
    %93 = vector.broadcast %92 : vector<16x1xf32> to vector<16x16xf32>
    %94 = arith.mulf %93, %27 : vector<16x16xf32>
    %95 = arith.addf %91, %94 : vector<16x16xf32>
    %96 = vector.extract_strided_slice %83 {offsets = [0, 3], sizes = [16, 1], strides = [1, 1]} : vector<16x9xf32> to vector<16x1xf32>
    %97 = vector.broadcast %96 : vector<16x1xf32> to vector<16x16xf32>
    %98 = arith.mulf %97, %31 : vector<16x16xf32>
    %99 = arith.addf %95, %98 : vector<16x16xf32>
    %100 = vector.extract_strided_slice %83 {offsets = [0, 4], sizes = [16, 1], strides = [1, 1]} : vector<16x9xf32> to vector<16x1xf32>
    %101 = vector.broadcast %100 : vector<16x1xf32> to vector<16x16xf32>
    %102 = arith.mulf %101, %35 : vector<16x16xf32>
    %103 = arith.addf %99, %102 : vector<16x16xf32>
    %104 = vector.extract_strided_slice %83 {offsets = [0, 5], sizes = [16, 1], strides = [1, 1]} : vector<16x9xf32> to vector<16x1xf32>
    %105 = vector.broadcast %104 : vector<16x1xf32> to vector<16x16xf32>
    %106 = arith.mulf %105, %39 : vector<16x16xf32>
    %107 = arith.addf %103, %106 : vector<16x16xf32>
    %108 = vector.extract_strided_slice %83 {offsets = [0, 6], sizes = [16, 1], strides = [1, 1]} : vector<16x9xf32> to vector<16x1xf32>
    %109 = vector.broadcast %108 : vector<16x1xf32> to vector<16x16xf32>
    %110 = arith.mulf %109, %43 : vector<16x16xf32>
    %111 = arith.addf %107, %110 : vector<16x16xf32>
    %112 = vector.extract_strided_slice %83 {offsets = [0, 7], sizes = [16, 1], strides = [1, 1]} : vector<16x9xf32> to vector<16x1xf32>
    %113 = vector.broadcast %112 : vector<16x1xf32> to vector<16x16xf32>
    %114 = arith.mulf %113, %47 : vector<16x16xf32>
    %115 = arith.addf %111, %114 : vector<16x16xf32>
    %116 = vector.extract_strided_slice %83 {offsets = [0, 8], sizes = [16, 1], strides = [1, 1]} : vector<16x9xf32> to vector<16x1xf32>
    %117 = vector.broadcast %116 : vector<16x1xf32> to vector<16x16xf32>
    %118 = arith.mulf %117, %51 : vector<16x16xf32>
    %119 = arith.addf %115, %118 : vector<16x16xf32>
    %cst_33 = arith.constant -1.000000e+04 : f32
    %120 = vector.broadcast %cst_33 : f32 to vector<16x16xf32>
    %121 = arith.select %12, %120, %119 : vector<16x16xi1>, vector<16x16xf32>
    %cst_34 = arith.constant dense<0xFF800000> : vector<16xf32>
    %122 = vector.multi_reduction <maximumf>, %121, %cst_34 [1] : vector<16x16xf32> to vector<16xf32>
    %123 = vector.shape_cast %122 : vector<16xf32> to vector<16x1xf32>
    %124 = vector.broadcast %123 : vector<16x1xf32> to vector<16x16xf32>
    %125 = arith.subf %121, %124 : vector<16x16xf32>
    %126 = math.exp %125 : vector<16x16xf32>
    %cst_35 = arith.constant dense<0.000000e+00> : vector<16xf32>
    %127 = vector.multi_reduction <add>, %126, %cst_35 [1] : vector<16x16xf32> to vector<16xf32>
    %128 = vector.shape_cast %127 : vector<16xf32> to vector<16x1xf32>
    %129 = tpu.reciprocal %128 {approx = true} : vector<16x1xf32> -> vector<16x1xf32>
    %130 = vector.broadcast %129 : vector<16x1xf32> to vector<16x16xf32>
    %131 = arith.mulf %126, %130 : vector<16x16xf32>
    %132 = arith.truncf %131 : vector<16x16xf32> to vector<16x16xbf16>
    %cst_36 = arith.constant dense<0.000000e+00> : vector<16x16xf32>
    %133 = tpu.matmul %132, %81, %cst_36 {dimension_numbers = #tpu.dot_dimension_numbers<[1], [0], [0], [1], [0, 0, 1, 1], [], []>} : vector<16x16xbf16>, vector<16x16xbf16>, vector<16x16xf32> -> vector<16x16xf32>
    %134 = arith.mulf %131, %19 : vector<16x16xf32>
    %cst_37 = arith.constant dense<0.000000e+00> : vector<16xf32>
    %135 = vector.multi_reduction <add>, %134, %cst_37 [1] : vector<16x16xf32> to vector<16xf32>
    %136 = vector.shape_cast %135 : vector<16xf32> to vector<16x1xf32>
    %137 = arith.mulf %131, %23 : vector<16x16xf32>
    %cst_38 = arith.constant dense<0.000000e+00> : vector<16xf32>
    %138 = vector.multi_reduction <add>, %137, %cst_38 [1] : vector<16x16xf32> to vector<16xf32>
    %139 = vector.shape_cast %138 : vector<16xf32> to vector<16x1xf32>
    %140 = arith.mulf %131, %27 : vector<16x16xf32>
    %cst_39 = arith.constant dense<0.000000e+00> : vector<16xf32>
    %141 = vector.multi_reduction <add>, %140, %cst_39 [1] : vector<16x16xf32> to vector<16xf32>
    %142 = vector.shape_cast %141 : vector<16xf32> to vector<16x1xf32>
    %143 = arith.mulf %131, %31 : vector<16x16xf32>
    %cst_40 = arith.constant dense<0.000000e+00> : vector<16xf32>
    %144 = vector.multi_reduction <add>, %143, %cst_40 [1] : vector<16x16xf32> to vector<16xf32>
    %145 = vector.shape_cast %144 : vector<16xf32> to vector<16x1xf32>
    %146 = arith.mulf %131, %35 : vector<16x16xf32>
    %cst_41 = arith.constant dense<0.000000e+00> : vector<16xf32>
    %147 = vector.multi_reduction <add>, %146, %cst_41 [1] : vector<16x16xf32> to vector<16xf32>
    %148 = vector.shape_cast %147 : vector<16xf32> to vector<16x1xf32>
    %149 = arith.mulf %131, %39 : vector<16x16xf32>
    %cst_42 = arith.constant dense<0.000000e+00> : vector<16xf32>
    %150 = vector.multi_reduction <add>, %149, %cst_42 [1] : vector<16x16xf32> to vector<16xf32>
    %151 = vector.shape_cast %150 : vector<16xf32> to vector<16x1xf32>
    %152 = arith.mulf %131, %43 : vector<16x16xf32>
    %cst_43 = arith.constant dense<0.000000e+00> : vector<16xf32>
    %153 = vector.multi_reduction <add>, %152, %cst_43 [1] : vector<16x16xf32> to vector<16xf32>
    %154 = vector.shape_cast %153 : vector<16xf32> to vector<16x1xf32>
    %155 = arith.mulf %131, %47 : vector<16x16xf32>
    %cst_44 = arith.constant dense<0.000000e+00> : vector<16xf32>
    %156 = vector.multi_reduction <add>, %155, %cst_44 [1] : vector<16x16xf32> to vector<16xf32>
    %157 = vector.shape_cast %156 : vector<16xf32> to vector<16x1xf32>
    %158 = arith.mulf %131, %51 : vector<16x16xf32>
    %cst_45 = arith.constant dense<0.000000e+00> : vector<16xf32>
    %159 = vector.multi_reduction <add>, %158, %cst_45 [1] : vector<16x16xf32> to vector<16xf32>
    %160 = vector.shape_cast %159 : vector<16xf32> to vector<16x1xf32>
    %161 = tpu.concatenate %136, %139, %142, %145, %148, %151, %154, %157, %160 in 1 : vector<16x1xf32>, vector<16x1xf32>, vector<16x1xf32>, vector<16x1xf32>, vector<16x1xf32>, vector<16x1xf32>, vector<16x1xf32>, vector<16x1xf32>, vector<16x1xf32> -> vector<16x9xf32>
    %162 = arith.truncf %161 : vector<16x9xf32> to vector<16x9xbf16>
    %cst_46 = arith.constant dense<0.000000e+00> : vector<16x16xf32>
    %163 = tpu.matmul %162, %70, %cst_46 {dimension_numbers = #tpu.dot_dimension_numbers<[1], [0], [0], [1], [0, 0, 1, 1], [], []>} : vector<16x9xbf16>, vector<9x16xbf16>, vector<16x16xf32> -> vector<16x16xf32>
    %164 = arith.addf %133, %163 : vector<16x16xf32>
    %165 = arith.truncf %164 : vector<16x16xf32> to vector<16x16xbf16>
    %166 = vector.extract_strided_slice %72 {offsets = [0, 0], sizes = [16, 32], strides = [1, 1]} : vector<32x32xbf16> to vector<16x32xbf16>
    %cst_47 = arith.constant dense<0.000000e+00> : vector<16x32xf32>
    %167 = tpu.matmul %165, %166, %cst_47 {dimension_numbers = #tpu.dot_dimension_numbers<[1], [0], [0], [1], [0, 0, 1, 1], [], []>} : vector<16x16xbf16>, vector<16x32xbf16>, vector<16x32xf32> -> vector<16x32xf32>
    %168 = arith.addf %73, %167 : vector<16x32xf32>
    %169 = vector.extract_strided_slice %66 {offsets = [0, 16], sizes = [16, 16], strides = [1, 1]} : vector<16x96xf32> to vector<16x16xf32>
    %cst_48 = arith.constant 2.500000e-01 : f32
    %170 = vector.broadcast %cst_48 : f32 to vector<16x16xf32>
    %171 = arith.mulf %169, %170 : vector<16x16xf32>
    %172 = arith.truncf %171 : vector<16x16xf32> to vector<16x16xbf16>
    %173 = vector.extract_strided_slice %66 {offsets = [0, 48], sizes = [16, 16], strides = [1, 1]} : vector<16x96xf32> to vector<16x16xf32>
    %174 = arith.truncf %173 : vector<16x16xf32> to vector<16x16xbf16>
    %175 = vector.extract_strided_slice %66 {offsets = [0, 80], sizes = [16, 16], strides = [1, 1]} : vector<16x96xf32> to vector<16x16xf32>
    %176 = arith.truncf %175 : vector<16x16xf32> to vector<16x16xbf16>
    %cst_49 = arith.constant dense<0.000000e+00> : vector<16x16xf32>
    %177 = tpu.matmul %172, %174, %cst_49 {dimension_numbers = #tpu.dot_dimension_numbers<[1], [1], [0], [0], [0, 0, 1, 0], [], []>} : vector<16x16xbf16>, vector<16x16xbf16>, vector<16x16xf32> -> vector<16x16xf32>
    %cst_50 = arith.constant dense<0.000000e+00> : vector<16x9xf32>
    %178 = tpu.matmul %172, %68, %cst_50 {dimension_numbers = #tpu.dot_dimension_numbers<[1], [1], [0], [0], [0, 0, 1, 0], [], []>} : vector<16x16xbf16>, vector<9x16xbf16>, vector<16x9xf32> -> vector<16x9xf32>
    %179 = vector.extract_strided_slice %178 {offsets = [0, 0], sizes = [16, 1], strides = [1, 1]} : vector<16x9xf32> to vector<16x1xf32>
    %180 = vector.broadcast %179 : vector<16x1xf32> to vector<16x16xf32>
    %181 = arith.mulf %180, %19 : vector<16x16xf32>
    %182 = arith.addf %177, %181 : vector<16x16xf32>
    %183 = vector.extract_strided_slice %178 {offsets = [0, 1], sizes = [16, 1], strides = [1, 1]} : vector<16x9xf32> to vector<16x1xf32>
    %184 = vector.broadcast %183 : vector<16x1xf32> to vector<16x16xf32>
    %185 = arith.mulf %184, %23 : vector<16x16xf32>
    %186 = arith.addf %182, %185 : vector<16x16xf32>
    %187 = vector.extract_strided_slice %178 {offsets = [0, 2], sizes = [16, 1], strides = [1, 1]} : vector<16x9xf32> to vector<16x1xf32>
    %188 = vector.broadcast %187 : vector<16x1xf32> to vector<16x16xf32>
    %189 = arith.mulf %188, %27 : vector<16x16xf32>
    %190 = arith.addf %186, %189 : vector<16x16xf32>
    %191 = vector.extract_strided_slice %178 {offsets = [0, 3], sizes = [16, 1], strides = [1, 1]} : vector<16x9xf32> to vector<16x1xf32>
    %192 = vector.broadcast %191 : vector<16x1xf32> to vector<16x16xf32>
    %193 = arith.mulf %192, %31 : vector<16x16xf32>
    %194 = arith.addf %190, %193 : vector<16x16xf32>
    %195 = vector.extract_strided_slice %178 {offsets = [0, 4], sizes = [16, 1], strides = [1, 1]} : vector<16x9xf32> to vector<16x1xf32>
    %196 = vector.broadcast %195 : vector<16x1xf32> to vector<16x16xf32>
    %197 = arith.mulf %196, %35 : vector<16x16xf32>
    %198 = arith.addf %194, %197 : vector<16x16xf32>
    %199 = vector.extract_strided_slice %178 {offsets = [0, 5], sizes = [16, 1], strides = [1, 1]} : vector<16x9xf32> to vector<16x1xf32>
    %200 = vector.broadcast %199 : vector<16x1xf32> to vector<16x16xf32>
    %201 = arith.mulf %200, %39 : vector<16x16xf32>
    %202 = arith.addf %198, %201 : vector<16x16xf32>
    %203 = vector.extract_strided_slice %178 {offsets = [0, 6], sizes = [16, 1], strides = [1, 1]} : vector<16x9xf32> to vector<16x1xf32>
    %204 = vector.broadcast %203 : vector<16x1xf32> to vector<16x16xf32>
    %205 = arith.mulf %204, %43 : vector<16x16xf32>
    %206 = arith.addf %202, %205 : vector<16x16xf32>
    %207 = vector.extract_strided_slice %178 {offsets = [0, 7], sizes = [16, 1], strides = [1, 1]} : vector<16x9xf32> to vector<16x1xf32>
    %208 = vector.broadcast %207 : vector<16x1xf32> to vector<16x16xf32>
    %209 = arith.mulf %208, %47 : vector<16x16xf32>
    %210 = arith.addf %206, %209 : vector<16x16xf32>
    %211 = vector.extract_strided_slice %178 {offsets = [0, 8], sizes = [16, 1], strides = [1, 1]} : vector<16x9xf32> to vector<16x1xf32>
    %212 = vector.broadcast %211 : vector<16x1xf32> to vector<16x16xf32>
    %213 = arith.mulf %212, %51 : vector<16x16xf32>
    %214 = arith.addf %210, %213 : vector<16x16xf32>
    %cst_51 = arith.constant -1.000000e+04 : f32
    %215 = vector.broadcast %cst_51 : f32 to vector<16x16xf32>
    %216 = arith.select %12, %215, %214 : vector<16x16xi1>, vector<16x16xf32>
    %cst_52 = arith.constant dense<0xFF800000> : vector<16xf32>
    %217 = vector.multi_reduction <maximumf>, %216, %cst_52 [1] : vector<16x16xf32> to vector<16xf32>
    %218 = vector.shape_cast %217 : vector<16xf32> to vector<16x1xf32>
    %219 = vector.broadcast %218 : vector<16x1xf32> to vector<16x16xf32>
    %220 = arith.subf %216, %219 : vector<16x16xf32>
    %221 = math.exp %220 : vector<16x16xf32>
    %cst_53 = arith.constant dense<0.000000e+00> : vector<16xf32>
    %222 = vector.multi_reduction <add>, %221, %cst_53 [1] : vector<16x16xf32> to vector<16xf32>
    %223 = vector.shape_cast %222 : vector<16xf32> to vector<16x1xf32>
    %224 = tpu.reciprocal %223 {approx = true} : vector<16x1xf32> -> vector<16x1xf32>
    %225 = vector.broadcast %224 : vector<16x1xf32> to vector<16x16xf32>
    %226 = arith.mulf %221, %225 : vector<16x16xf32>
    %227 = arith.truncf %226 : vector<16x16xf32> to vector<16x16xbf16>
    %cst_54 = arith.constant dense<0.000000e+00> : vector<16x16xf32>
    %228 = tpu.matmul %227, %176, %cst_54 {dimension_numbers = #tpu.dot_dimension_numbers<[1], [0], [0], [1], [0, 0, 1, 1], [], []>} : vector<16x16xbf16>, vector<16x16xbf16>, vector<16x16xf32> -> vector<16x16xf32>
    %229 = arith.mulf %226, %19 : vector<16x16xf32>
    %cst_55 = arith.constant dense<0.000000e+00> : vector<16xf32>
    %230 = vector.multi_reduction <add>, %229, %cst_55 [1] : vector<16x16xf32> to vector<16xf32>
    %231 = vector.shape_cast %230 : vector<16xf32> to vector<16x1xf32>
    %232 = arith.mulf %226, %23 : vector<16x16xf32>
    %cst_56 = arith.constant dense<0.000000e+00> : vector<16xf32>
    %233 = vector.multi_reduction <add>, %232, %cst_56 [1] : vector<16x16xf32> to vector<16xf32>
    %234 = vector.shape_cast %233 : vector<16xf32> to vector<16x1xf32>
    %235 = arith.mulf %226, %27 : vector<16x16xf32>
    %cst_57 = arith.constant dense<0.000000e+00> : vector<16xf32>
    %236 = vector.multi_reduction <add>, %235, %cst_57 [1] : vector<16x16xf32> to vector<16xf32>
    %237 = vector.shape_cast %236 : vector<16xf32> to vector<16x1xf32>
    %238 = arith.mulf %226, %31 : vector<16x16xf32>
    %cst_58 = arith.constant dense<0.000000e+00> : vector<16xf32>
    %239 = vector.multi_reduction <add>, %238, %cst_58 [1] : vector<16x16xf32> to vector<16xf32>
    %240 = vector.shape_cast %239 : vector<16xf32> to vector<16x1xf32>
    %241 = arith.mulf %226, %35 : vector<16x16xf32>
    %cst_59 = arith.constant dense<0.000000e+00> : vector<16xf32>
    %242 = vector.multi_reduction <add>, %241, %cst_59 [1] : vector<16x16xf32> to vector<16xf32>
    %243 = vector.shape_cast %242 : vector<16xf32> to vector<16x1xf32>
    %244 = arith.mulf %226, %39 : vector<16x16xf32>
    %cst_60 = arith.constant dense<0.000000e+00> : vector<16xf32>
    %245 = vector.multi_reduction <add>, %244, %cst_60 [1] : vector<16x16xf32> to vector<16xf32>
    %246 = vector.shape_cast %245 : vector<16xf32> to vector<16x1xf32>
    %247 = arith.mulf %226, %43 : vector<16x16xf32>
    %cst_61 = arith.constant dense<0.000000e+00> : vector<16xf32>
    %248 = vector.multi_reduction <add>, %247, %cst_61 [1] : vector<16x16xf32> to vector<16xf32>
    %249 = vector.shape_cast %248 : vector<16xf32> to vector<16x1xf32>
    %250 = arith.mulf %226, %47 : vector<16x16xf32>
    %cst_62 = arith.constant dense<0.000000e+00> : vector<16xf32>
    %251 = vector.multi_reduction <add>, %250, %cst_62 [1] : vector<16x16xf32> to vector<16xf32>
    %252 = vector.shape_cast %251 : vector<16xf32> to vector<16x1xf32>
    %253 = arith.mulf %226, %51 : vector<16x16xf32>
    %cst_63 = arith.constant dense<0.000000e+00> : vector<16xf32>
    %254 = vector.multi_reduction <add>, %253, %cst_63 [1] : vector<16x16xf32> to vector<16xf32>
    %255 = vector.shape_cast %254 : vector<16xf32> to vector<16x1xf32>
    %256 = tpu.concatenate %231, %234, %237, %240, %243, %246, %249, %252, %255 in 1 : vector<16x1xf32>, vector<16x1xf32>, vector<16x1xf32>, vector<16x1xf32>, vector<16x1xf32>, vector<16x1xf32>, vector<16x1xf32>, vector<16x1xf32>, vector<16x1xf32> -> vector<16x9xf32>
    %257 = arith.truncf %256 : vector<16x9xf32> to vector<16x9xbf16>
    %cst_64 = arith.constant dense<0.000000e+00> : vector<16x16xf32>
    %258 = tpu.matmul %257, %70, %cst_64 {dimension_numbers = #tpu.dot_dimension_numbers<[1], [0], [0], [1], [0, 0, 1, 1], [], []>} : vector<16x9xbf16>, vector<9x16xbf16>, vector<16x16xf32> -> vector<16x16xf32>
    %259 = arith.addf %228, %258 : vector<16x16xf32>
    %260 = arith.truncf %259 : vector<16x16xf32> to vector<16x16xbf16>
    %261 = vector.extract_strided_slice %72 {offsets = [16, 0], sizes = [16, 32], strides = [1, 1]} : vector<32x32xbf16> to vector<16x32xbf16>
    %cst_65 = arith.constant dense<0.000000e+00> : vector<16x32xf32>
    %262 = tpu.matmul %260, %261, %cst_65 {dimension_numbers = #tpu.dot_dimension_numbers<[1], [0], [0], [1], [0, 0, 1, 1], [], []>} : vector<16x16xbf16>, vector<16x32xbf16>, vector<16x32xf32> -> vector<16x32xf32>
    %263 = arith.addf %168, %262 : vector<16x32xf32>
    %c0_66 = arith.constant 0 : index
    %c0_67 = arith.constant 0 : index
    %c0_68 = arith.constant 0 : index
    %264 = vector.load %arg12[%c0_66, %c0_67, %c0_68] : memref<2x1x32xf32, #tpu.memory_space<vmem>>, vector<1x1x32xf32>
    %265 = vector.shape_cast %264 : vector<1x1x32xf32> to vector<1x32xf32>
    %266 = vector.broadcast %265 : vector<1x32xf32> to vector<16x32xf32>
    %267 = arith.addf %263, %266 : vector<16x32xf32>
    %268 = arith.extf %59 : vector<16x32xbf16> to vector<16x32xf32>
    %269 = arith.addf %268, %267 : vector<16x32xf32>
    %c0_69 = arith.constant 0 : index
    %c0_70 = arith.constant 0 : index
    %c0_71 = arith.constant 0 : index
    %270 = vector.load %arg13[%c0_69, %c0_70, %c0_71] : memref<2x1x32xf32, #tpu.memory_space<vmem>>, vector<1x1x32xf32>
    %271 = vector.shape_cast %270 : vector<1x1x32xf32> to vector<1x32xf32>
    %c0_72 = arith.constant 0 : index
    %c0_73 = arith.constant 0 : index
    %c0_74 = arith.constant 0 : index
    %272 = vector.load %arg14[%c0_72, %c0_73, %c0_74] : memref<2x1x32xf32, #tpu.memory_space<vmem>>, vector<1x1x32xf32>
    %273 = vector.shape_cast %272 : vector<1x1x32xf32> to vector<1x32xf32>
    %cst_75 = arith.constant dense<0.000000e+00> : vector<16xf32>
    %274 = vector.multi_reduction <add>, %269, %cst_75 [1] : vector<16x32xf32> to vector<16xf32>
    %275 = vector.shape_cast %274 : vector<16xf32> to vector<16x1xf32>
    %cst_76 = arith.constant 3.200000e+01 : f32
    %276 = vector.broadcast %cst_76 : f32 to vector<16x1xf32>
    %277 = arith.divf %275, %276 : vector<16x1xf32>
    %278 = vector.broadcast %277 : vector<16x1xf32> to vector<16x32xf32>
    %279 = arith.subf %269, %278 : vector<16x32xf32>
    %280 = arith.mulf %279, %279 : vector<16x32xf32>
    %cst_77 = arith.constant dense<0.000000e+00> : vector<16xf32>
    %281 = vector.multi_reduction <add>, %280, %cst_77 [1] : vector<16x32xf32> to vector<16xf32>
    %282 = vector.shape_cast %281 : vector<16xf32> to vector<16x1xf32>
    %cst_78 = arith.constant 3.200000e+01 : f32
    %283 = vector.broadcast %cst_78 : f32 to vector<16x1xf32>
    %284 = arith.divf %282, %283 : vector<16x1xf32>
    %cst_79 = arith.constant 9.99999974E-6 : f32
    %285 = vector.broadcast %cst_79 : f32 to vector<16x1xf32>
    %286 = arith.addf %284, %285 : vector<16x1xf32>
    %287 = math.rsqrt %286 : vector<16x1xf32>
    %288 = vector.broadcast %287 : vector<16x1xf32> to vector<16x32xf32>
    %289 = arith.mulf %279, %288 : vector<16x32xf32>
    %290 = vector.broadcast %271 : vector<1x32xf32> to vector<16x32xf32>
    %291 = arith.mulf %289, %290 : vector<16x32xf32>
    %292 = vector.broadcast %273 : vector<1x32xf32> to vector<16x32xf32>
    %293 = arith.addf %291, %292 : vector<16x32xf32>
    %294 = arith.truncf %293 : vector<16x32xf32> to vector<16x32xbf16>
    %295 = vector.broadcast %3 : vector<16x1xbf16> to vector<16x32xbf16>
    %296 = arith.mulf %294, %295 : vector<16x32xbf16>
    %cst_80 = arith.constant 0.000000e+00 : bf16
    %297 = vector.broadcast %cst_80 : bf16 to vector<1x32xbf16>
    %cst_81 = arith.constant 0.000000e+00 : bf16
    %298 = vector.broadcast %cst_81 : bf16 to vector<1x32xbf16>
    %299 = tpu.concatenate %297, %296, %298 in 0 : vector<1x32xbf16>, vector<16x32xbf16>, vector<1x32xbf16> -> vector<18x32xbf16>
    %cst_82 = arith.constant 0.000000e+00 : f32
    %300 = vector.broadcast %cst_82 : f32 to vector<16x64xf32>
    %301 = vector.extract_strided_slice %299 {offsets = [0, 0], sizes = [16, 32], strides = [1, 1]} : vector<18x32xbf16> to vector<16x32xbf16>
    %c0_83 = arith.constant 0 : index
    %c0_84 = arith.constant 0 : index
    %c0_85 = arith.constant 0 : index
    %c0_86 = arith.constant 0 : index
    %302 = vector.load %arg15[%c0_83, %c0_84, %c0_85, %c0_86] : memref<2x3x32x64xbf16, #tpu.memory_space<vmem>>, vector<1x1x32x64xbf16>
    %303 = vector.shape_cast %302 : vector<1x1x32x64xbf16> to vector<32x64xbf16>
    %cst_87 = arith.constant dense<0.000000e+00> : vector<16x64xf32>
    %304 = tpu.matmul %301, %303, %cst_87 {dimension_numbers = #tpu.dot_dimension_numbers<[1], [0], [0], [1], [0, 0, 1, 1], [], []>} : vector<16x32xbf16>, vector<32x64xbf16>, vector<16x64xf32> -> vector<16x64xf32>
    %305 = arith.addf %300, %304 : vector<16x64xf32>
    %306 = vector.extract_strided_slice %299 {offsets = [1, 0], sizes = [16, 32], strides = [1, 1]} : vector<18x32xbf16> to vector<16x32xbf16>
    %c0_88 = arith.constant 0 : index
    %c1 = arith.constant 1 : index
    %c0_89 = arith.constant 0 : index
    %c0_90 = arith.constant 0 : index
    %307 = vector.load %arg15[%c0_88, %c1, %c0_89, %c0_90] : memref<2x3x32x64xbf16, #tpu.memory_space<vmem>>, vector<1x1x32x64xbf16>
    %308 = vector.shape_cast %307 : vector<1x1x32x64xbf16> to vector<32x64xbf16>
    %cst_91 = arith.constant dense<0.000000e+00> : vector<16x64xf32>
    %309 = tpu.matmul %306, %308, %cst_91 {dimension_numbers = #tpu.dot_dimension_numbers<[1], [0], [0], [1], [0, 0, 1, 1], [], []>} : vector<16x32xbf16>, vector<32x64xbf16>, vector<16x64xf32> -> vector<16x64xf32>
    %310 = arith.addf %305, %309 : vector<16x64xf32>
    %311 = vector.extract_strided_slice %299 {offsets = [2, 0], sizes = [16, 32], strides = [1, 1]} : vector<18x32xbf16> to vector<16x32xbf16>
    %c0_92 = arith.constant 0 : index
    %c2 = arith.constant 2 : index
    %c0_93 = arith.constant 0 : index
    %c0_94 = arith.constant 0 : index
    %312 = vector.load %arg15[%c0_92, %c2, %c0_93, %c0_94] : memref<2x3x32x64xbf16, #tpu.memory_space<vmem>>, vector<1x1x32x64xbf16>
    %313 = vector.shape_cast %312 : vector<1x1x32x64xbf16> to vector<32x64xbf16>
    %cst_95 = arith.constant dense<0.000000e+00> : vector<16x64xf32>
    %314 = tpu.matmul %311, %313, %cst_95 {dimension_numbers = #tpu.dot_dimension_numbers<[1], [0], [0], [1], [0, 0, 1, 1], [], []>} : vector<16x32xbf16>, vector<32x64xbf16>, vector<16x64xf32> -> vector<16x64xf32>
    %315 = arith.addf %310, %314 : vector<16x64xf32>
    %c0_96 = arith.constant 0 : index
    %c0_97 = arith.constant 0 : index
    %c0_98 = arith.constant 0 : index
    %316 = vector.load %arg16[%c0_96, %c0_97, %c0_98] : memref<2x1x64xf32, #tpu.memory_space<vmem>>, vector<1x1x64xf32>
    %317 = vector.shape_cast %316 : vector<1x1x64xf32> to vector<1x64xf32>
    %318 = vector.broadcast %317 : vector<1x64xf32> to vector<16x64xf32>
    %319 = arith.addf %315, %318 : vector<16x64xf32>
    %cst_99 = arith.constant 0.000000e+00 : f32
    %320 = vector.broadcast %cst_99 : f32 to vector<16x64xf32>
    %321 = arith.maximumf %319, %320 : vector<16x64xf32>
    %322 = vector.broadcast %4 : vector<16x1xf32> to vector<16x64xf32>
    %323 = arith.mulf %321, %322 : vector<16x64xf32>
    %324 = arith.truncf %323 : vector<16x64xf32> to vector<16x64xbf16>
    %cst_100 = arith.constant 0.000000e+00 : bf16
    %325 = vector.broadcast %cst_100 : bf16 to vector<1x64xbf16>
    %cst_101 = arith.constant 0.000000e+00 : bf16
    %326 = vector.broadcast %cst_101 : bf16 to vector<1x64xbf16>
    %327 = tpu.concatenate %325, %324, %326 in 0 : vector<1x64xbf16>, vector<16x64xbf16>, vector<1x64xbf16> -> vector<18x64xbf16>
    %cst_102 = arith.constant 0.000000e+00 : f32
    %328 = vector.broadcast %cst_102 : f32 to vector<16x32xf32>
    %329 = vector.extract_strided_slice %327 {offsets = [0, 0], sizes = [16, 64], strides = [1, 1]} : vector<18x64xbf16> to vector<16x64xbf16>
    %c0_103 = arith.constant 0 : index
    %c0_104 = arith.constant 0 : index
    %c0_105 = arith.constant 0 : index
    %c0_106 = arith.constant 0 : index
    %330 = vector.load %arg17[%c0_103, %c0_104, %c0_105, %c0_106] : memref<2x3x64x32xbf16, #tpu.memory_space<vmem>>, vector<1x1x64x32xbf16>
    %331 = vector.shape_cast %330 : vector<1x1x64x32xbf16> to vector<64x32xbf16>
    %cst_107 = arith.constant dense<0.000000e+00> : vector<16x32xf32>
    %332 = tpu.matmul %329, %331, %cst_107 {dimension_numbers = #tpu.dot_dimension_numbers<[1], [0], [0], [1], [0, 0, 1, 1], [], []>} : vector<16x64xbf16>, vector<64x32xbf16>, vector<16x32xf32> -> vector<16x32xf32>
    %333 = arith.addf %328, %332 : vector<16x32xf32>
    %334 = vector.extract_strided_slice %327 {offsets = [1, 0], sizes = [16, 64], strides = [1, 1]} : vector<18x64xbf16> to vector<16x64xbf16>
    %c0_108 = arith.constant 0 : index
    %c1_109 = arith.constant 1 : index
    %c0_110 = arith.constant 0 : index
    %c0_111 = arith.constant 0 : index
    %335 = vector.load %arg17[%c0_108, %c1_109, %c0_110, %c0_111] : memref<2x3x64x32xbf16, #tpu.memory_space<vmem>>, vector<1x1x64x32xbf16>
    %336 = vector.shape_cast %335 : vector<1x1x64x32xbf16> to vector<64x32xbf16>
    %cst_112 = arith.constant dense<0.000000e+00> : vector<16x32xf32>
    %337 = tpu.matmul %334, %336, %cst_112 {dimension_numbers = #tpu.dot_dimension_numbers<[1], [0], [0], [1], [0, 0, 1, 1], [], []>} : vector<16x64xbf16>, vector<64x32xbf16>, vector<16x32xf32> -> vector<16x32xf32>
    %338 = arith.addf %333, %337 : vector<16x32xf32>
    %339 = vector.extract_strided_slice %327 {offsets = [2, 0], sizes = [16, 64], strides = [1, 1]} : vector<18x64xbf16> to vector<16x64xbf16>
    %c0_113 = arith.constant 0 : index
    %c2_114 = arith.constant 2 : index
    %c0_115 = arith.constant 0 : index
    %c0_116 = arith.constant 0 : index
    %340 = vector.load %arg17[%c0_113, %c2_114, %c0_115, %c0_116] : memref<2x3x64x32xbf16, #tpu.memory_space<vmem>>, vector<1x1x64x32xbf16>
    %341 = vector.shape_cast %340 : vector<1x1x64x32xbf16> to vector<64x32xbf16>
    %cst_117 = arith.constant dense<0.000000e+00> : vector<16x32xf32>
    %342 = tpu.matmul %339, %341, %cst_117 {dimension_numbers = #tpu.dot_dimension_numbers<[1], [0], [0], [1], [0, 0, 1, 1], [], []>} : vector<16x64xbf16>, vector<64x32xbf16>, vector<16x32xf32> -> vector<16x32xf32>
    %343 = arith.addf %338, %342 : vector<16x32xf32>
    %c0_118 = arith.constant 0 : index
    %c0_119 = arith.constant 0 : index
    %c0_120 = arith.constant 0 : index
    %344 = vector.load %arg18[%c0_118, %c0_119, %c0_120] : memref<2x1x32xf32, #tpu.memory_space<vmem>>, vector<1x1x32xf32>
    %345 = vector.shape_cast %344 : vector<1x1x32xf32> to vector<1x32xf32>
    %346 = vector.broadcast %345 : vector<1x32xf32> to vector<16x32xf32>
    %347 = arith.addf %343, %346 : vector<16x32xf32>
    %348 = vector.broadcast %4 : vector<16x1xf32> to vector<16x32xf32>
    %349 = arith.mulf %347, %348 : vector<16x32xf32>
    %350 = arith.extf %294 : vector<16x32xbf16> to vector<16x32xf32>
    %351 = arith.addf %350, %349 : vector<16x32xf32>
    %c0_121 = arith.constant 0 : index
    %c0_122 = arith.constant 0 : index
    %c0_123 = arith.constant 0 : index
    %352 = vector.load %arg19[%c0_121, %c0_122, %c0_123] : memref<2x1x32xf32, #tpu.memory_space<vmem>>, vector<1x1x32xf32>
    %353 = vector.shape_cast %352 : vector<1x1x32xf32> to vector<1x32xf32>
    %c0_124 = arith.constant 0 : index
    %c0_125 = arith.constant 0 : index
    %c0_126 = arith.constant 0 : index
    %354 = vector.load %arg20[%c0_124, %c0_125, %c0_126] : memref<2x1x32xf32, #tpu.memory_space<vmem>>, vector<1x1x32xf32>
    %355 = vector.shape_cast %354 : vector<1x1x32xf32> to vector<1x32xf32>
    %cst_127 = arith.constant dense<0.000000e+00> : vector<16xf32>
    %356 = vector.multi_reduction <add>, %351, %cst_127 [1] : vector<16x32xf32> to vector<16xf32>
    %357 = vector.shape_cast %356 : vector<16xf32> to vector<16x1xf32>
    %cst_128 = arith.constant 3.200000e+01 : f32
    %358 = vector.broadcast %cst_128 : f32 to vector<16x1xf32>
    %359 = arith.divf %357, %358 : vector<16x1xf32>
    %360 = vector.broadcast %359 : vector<16x1xf32> to vector<16x32xf32>
    %361 = arith.subf %351, %360 : vector<16x32xf32>
    %362 = arith.mulf %361, %361 : vector<16x32xf32>
    %cst_129 = arith.constant dense<0.000000e+00> : vector<16xf32>
    %363 = vector.multi_reduction <add>, %362, %cst_129 [1] : vector<16x32xf32> to vector<16xf32>
    %364 = vector.shape_cast %363 : vector<16xf32> to vector<16x1xf32>
    %cst_130 = arith.constant 3.200000e+01 : f32
    %365 = vector.broadcast %cst_130 : f32 to vector<16x1xf32>
    %366 = arith.divf %364, %365 : vector<16x1xf32>
    %cst_131 = arith.constant 9.99999974E-6 : f32
    %367 = vector.broadcast %cst_131 : f32 to vector<16x1xf32>
    %368 = arith.addf %366, %367 : vector<16x1xf32>
    %369 = math.rsqrt %368 : vector<16x1xf32>
    %370 = vector.broadcast %369 : vector<16x1xf32> to vector<16x32xf32>
    %371 = arith.mulf %361, %370 : vector<16x32xf32>
    %372 = vector.broadcast %353 : vector<1x32xf32> to vector<16x32xf32>
    %373 = arith.mulf %371, %372 : vector<16x32xf32>
    %374 = vector.broadcast %355 : vector<1x32xf32> to vector<16x32xf32>
    %375 = arith.addf %373, %374 : vector<16x32xf32>
    %376 = arith.truncf %375 : vector<16x32xf32> to vector<16x32xbf16>
    %c1_132 = arith.constant 1 : index
    %c0_133 = arith.constant 0 : index
    %c0_134 = arith.constant 0 : index
    %377 = vector.load %arg7[%c1_132, %c0_133, %c0_134] : memref<2x32x96xbf16, #tpu.memory_space<vmem>>, vector<1x32x96xbf16>
    %378 = vector.shape_cast %377 : vector<1x32x96xbf16> to vector<32x96xbf16>
    %cst_135 = arith.constant dense<0.000000e+00> : vector<16x96xf32>
    %379 = tpu.matmul %376, %378, %cst_135 {dimension_numbers = #tpu.dot_dimension_numbers<[1], [0], [0], [1], [0, 0, 1, 1], [], []>} : vector<16x32xbf16>, vector<32x96xbf16>, vector<16x96xf32> -> vector<16x96xf32>
    %c1_136 = arith.constant 1 : index
    %c0_137 = arith.constant 0 : index
    %c0_138 = arith.constant 0 : index
    %380 = vector.load %arg8[%c1_136, %c0_137, %c0_138] : memref<2x1x96xf32, #tpu.memory_space<vmem>>, vector<1x1x96xf32>
    %381 = vector.shape_cast %380 : vector<1x1x96xf32> to vector<1x96xf32>
    %382 = vector.broadcast %381 : vector<1x96xf32> to vector<16x96xf32>
    %383 = arith.addf %379, %382 : vector<16x96xf32>
    %c1_139 = arith.constant 1 : index
    %c0_140 = arith.constant 0 : index
    %c0_141 = arith.constant 0 : index
    %384 = vector.load %arg9[%c1_139, %c0_140, %c0_141] : memref<2x9x16xbf16, #tpu.memory_space<vmem>>, vector<1x9x16xbf16>
    %385 = vector.shape_cast %384 : vector<1x9x16xbf16> to vector<9x16xbf16>
    %c1_142 = arith.constant 1 : index
    %c0_143 = arith.constant 0 : index
    %c0_144 = arith.constant 0 : index
    %386 = vector.load %arg10[%c1_142, %c0_143, %c0_144] : memref<2x9x16xbf16, #tpu.memory_space<vmem>>, vector<1x9x16xbf16>
    %387 = vector.shape_cast %386 : vector<1x9x16xbf16> to vector<9x16xbf16>
    %c1_145 = arith.constant 1 : index
    %c0_146 = arith.constant 0 : index
    %c0_147 = arith.constant 0 : index
    %388 = vector.load %arg11[%c1_145, %c0_146, %c0_147] : memref<2x32x32xbf16, #tpu.memory_space<vmem>>, vector<1x32x32xbf16>
    %389 = vector.shape_cast %388 : vector<1x32x32xbf16> to vector<32x32xbf16>
    %cst_148 = arith.constant 0.000000e+00 : f32
    %390 = vector.broadcast %cst_148 : f32 to vector<16x32xf32>
    %391 = vector.extract_strided_slice %383 {offsets = [0, 0], sizes = [16, 16], strides = [1, 1]} : vector<16x96xf32> to vector<16x16xf32>
    %cst_149 = arith.constant 2.500000e-01 : f32
    %392 = vector.broadcast %cst_149 : f32 to vector<16x16xf32>
    %393 = arith.mulf %391, %392 : vector<16x16xf32>
    %394 = arith.truncf %393 : vector<16x16xf32> to vector<16x16xbf16>
    %395 = vector.extract_strided_slice %383 {offsets = [0, 32], sizes = [16, 16], strides = [1, 1]} : vector<16x96xf32> to vector<16x16xf32>
    %396 = arith.truncf %395 : vector<16x16xf32> to vector<16x16xbf16>
    %397 = vector.extract_strided_slice %383 {offsets = [0, 64], sizes = [16, 16], strides = [1, 1]} : vector<16x96xf32> to vector<16x16xf32>
    %398 = arith.truncf %397 : vector<16x16xf32> to vector<16x16xbf16>
    %cst_150 = arith.constant dense<0.000000e+00> : vector<16x16xf32>
    %399 = tpu.matmul %394, %396, %cst_150 {dimension_numbers = #tpu.dot_dimension_numbers<[1], [1], [0], [0], [0, 0, 1, 0], [], []>} : vector<16x16xbf16>, vector<16x16xbf16>, vector<16x16xf32> -> vector<16x16xf32>
    %cst_151 = arith.constant dense<0.000000e+00> : vector<16x9xf32>
    %400 = tpu.matmul %394, %385, %cst_151 {dimension_numbers = #tpu.dot_dimension_numbers<[1], [1], [0], [0], [0, 0, 1, 0], [], []>} : vector<16x16xbf16>, vector<9x16xbf16>, vector<16x9xf32> -> vector<16x9xf32>
    %401 = vector.extract_strided_slice %400 {offsets = [0, 0], sizes = [16, 1], strides = [1, 1]} : vector<16x9xf32> to vector<16x1xf32>
    %402 = vector.broadcast %401 : vector<16x1xf32> to vector<16x16xf32>
    %403 = arith.mulf %402, %19 : vector<16x16xf32>
    %404 = arith.addf %399, %403 : vector<16x16xf32>
    %405 = vector.extract_strided_slice %400 {offsets = [0, 1], sizes = [16, 1], strides = [1, 1]} : vector<16x9xf32> to vector<16x1xf32>
    %406 = vector.broadcast %405 : vector<16x1xf32> to vector<16x16xf32>
    %407 = arith.mulf %406, %23 : vector<16x16xf32>
    %408 = arith.addf %404, %407 : vector<16x16xf32>
    %409 = vector.extract_strided_slice %400 {offsets = [0, 2], sizes = [16, 1], strides = [1, 1]} : vector<16x9xf32> to vector<16x1xf32>
    %410 = vector.broadcast %409 : vector<16x1xf32> to vector<16x16xf32>
    %411 = arith.mulf %410, %27 : vector<16x16xf32>
    %412 = arith.addf %408, %411 : vector<16x16xf32>
    %413 = vector.extract_strided_slice %400 {offsets = [0, 3], sizes = [16, 1], strides = [1, 1]} : vector<16x9xf32> to vector<16x1xf32>
    %414 = vector.broadcast %413 : vector<16x1xf32> to vector<16x16xf32>
    %415 = arith.mulf %414, %31 : vector<16x16xf32>
    %416 = arith.addf %412, %415 : vector<16x16xf32>
    %417 = vector.extract_strided_slice %400 {offsets = [0, 4], sizes = [16, 1], strides = [1, 1]} : vector<16x9xf32> to vector<16x1xf32>
    %418 = vector.broadcast %417 : vector<16x1xf32> to vector<16x16xf32>
    %419 = arith.mulf %418, %35 : vector<16x16xf32>
    %420 = arith.addf %416, %419 : vector<16x16xf32>
    %421 = vector.extract_strided_slice %400 {offsets = [0, 5], sizes = [16, 1], strides = [1, 1]} : vector<16x9xf32> to vector<16x1xf32>
    %422 = vector.broadcast %421 : vector<16x1xf32> to vector<16x16xf32>
    %423 = arith.mulf %422, %39 : vector<16x16xf32>
    %424 = arith.addf %420, %423 : vector<16x16xf32>
    %425 = vector.extract_strided_slice %400 {offsets = [0, 6], sizes = [16, 1], strides = [1, 1]} : vector<16x9xf32> to vector<16x1xf32>
    %426 = vector.broadcast %425 : vector<16x1xf32> to vector<16x16xf32>
    %427 = arith.mulf %426, %43 : vector<16x16xf32>
    %428 = arith.addf %424, %427 : vector<16x16xf32>
    %429 = vector.extract_strided_slice %400 {offsets = [0, 7], sizes = [16, 1], strides = [1, 1]} : vector<16x9xf32> to vector<16x1xf32>
    %430 = vector.broadcast %429 : vector<16x1xf32> to vector<16x16xf32>
    %431 = arith.mulf %430, %47 : vector<16x16xf32>
    %432 = arith.addf %428, %431 : vector<16x16xf32>
    %433 = vector.extract_strided_slice %400 {offsets = [0, 8], sizes = [16, 1], strides = [1, 1]} : vector<16x9xf32> to vector<16x1xf32>
    %434 = vector.broadcast %433 : vector<16x1xf32> to vector<16x16xf32>
    %435 = arith.mulf %434, %51 : vector<16x16xf32>
    %436 = arith.addf %432, %435 : vector<16x16xf32>
    %cst_152 = arith.constant -1.000000e+04 : f32
    %437 = vector.broadcast %cst_152 : f32 to vector<16x16xf32>
    %438 = arith.select %12, %437, %436 : vector<16x16xi1>, vector<16x16xf32>
    %cst_153 = arith.constant dense<0xFF800000> : vector<16xf32>
    %439 = vector.multi_reduction <maximumf>, %438, %cst_153 [1] : vector<16x16xf32> to vector<16xf32>
    %440 = vector.shape_cast %439 : vector<16xf32> to vector<16x1xf32>
    %441 = vector.broadcast %440 : vector<16x1xf32> to vector<16x16xf32>
    %442 = arith.subf %438, %441 : vector<16x16xf32>
    %443 = math.exp %442 : vector<16x16xf32>
    %cst_154 = arith.constant dense<0.000000e+00> : vector<16xf32>
    %444 = vector.multi_reduction <add>, %443, %cst_154 [1] : vector<16x16xf32> to vector<16xf32>
    %445 = vector.shape_cast %444 : vector<16xf32> to vector<16x1xf32>
    %446 = tpu.reciprocal %445 {approx = true} : vector<16x1xf32> -> vector<16x1xf32>
    %447 = vector.broadcast %446 : vector<16x1xf32> to vector<16x16xf32>
    %448 = arith.mulf %443, %447 : vector<16x16xf32>
    %449 = arith.truncf %448 : vector<16x16xf32> to vector<16x16xbf16>
    %cst_155 = arith.constant dense<0.000000e+00> : vector<16x16xf32>
    %450 = tpu.matmul %449, %398, %cst_155 {dimension_numbers = #tpu.dot_dimension_numbers<[1], [0], [0], [1], [0, 0, 1, 1], [], []>} : vector<16x16xbf16>, vector<16x16xbf16>, vector<16x16xf32> -> vector<16x16xf32>
    %451 = arith.mulf %448, %19 : vector<16x16xf32>
    %cst_156 = arith.constant dense<0.000000e+00> : vector<16xf32>
    %452 = vector.multi_reduction <add>, %451, %cst_156 [1] : vector<16x16xf32> to vector<16xf32>
    %453 = vector.shape_cast %452 : vector<16xf32> to vector<16x1xf32>
    %454 = arith.mulf %448, %23 : vector<16x16xf32>
    %cst_157 = arith.constant dense<0.000000e+00> : vector<16xf32>
    %455 = vector.multi_reduction <add>, %454, %cst_157 [1] : vector<16x16xf32> to vector<16xf32>
    %456 = vector.shape_cast %455 : vector<16xf32> to vector<16x1xf32>
    %457 = arith.mulf %448, %27 : vector<16x16xf32>
    %cst_158 = arith.constant dense<0.000000e+00> : vector<16xf32>
    %458 = vector.multi_reduction <add>, %457, %cst_158 [1] : vector<16x16xf32> to vector<16xf32>
    %459 = vector.shape_cast %458 : vector<16xf32> to vector<16x1xf32>
    %460 = arith.mulf %448, %31 : vector<16x16xf32>
    %cst_159 = arith.constant dense<0.000000e+00> : vector<16xf32>
    %461 = vector.multi_reduction <add>, %460, %cst_159 [1] : vector<16x16xf32> to vector<16xf32>
    %462 = vector.shape_cast %461 : vector<16xf32> to vector<16x1xf32>
    %463 = arith.mulf %448, %35 : vector<16x16xf32>
    %cst_160 = arith.constant dense<0.000000e+00> : vector<16xf32>
    %464 = vector.multi_reduction <add>, %463, %cst_160 [1] : vector<16x16xf32> to vector<16xf32>
    %465 = vector.shape_cast %464 : vector<16xf32> to vector<16x1xf32>
    %466 = arith.mulf %448, %39 : vector<16x16xf32>
    %cst_161 = arith.constant dense<0.000000e+00> : vector<16xf32>
    %467 = vector.multi_reduction <add>, %466, %cst_161 [1] : vector<16x16xf32> to vector<16xf32>
    %468 = vector.shape_cast %467 : vector<16xf32> to vector<16x1xf32>
    %469 = arith.mulf %448, %43 : vector<16x16xf32>
    %cst_162 = arith.constant dense<0.000000e+00> : vector<16xf32>
    %470 = vector.multi_reduction <add>, %469, %cst_162 [1] : vector<16x16xf32> to vector<16xf32>
    %471 = vector.shape_cast %470 : vector<16xf32> to vector<16x1xf32>
    %472 = arith.mulf %448, %47 : vector<16x16xf32>
    %cst_163 = arith.constant dense<0.000000e+00> : vector<16xf32>
    %473 = vector.multi_reduction <add>, %472, %cst_163 [1] : vector<16x16xf32> to vector<16xf32>
    %474 = vector.shape_cast %473 : vector<16xf32> to vector<16x1xf32>
    %475 = arith.mulf %448, %51 : vector<16x16xf32>
    %cst_164 = arith.constant dense<0.000000e+00> : vector<16xf32>
    %476 = vector.multi_reduction <add>, %475, %cst_164 [1] : vector<16x16xf32> to vector<16xf32>
    %477 = vector.shape_cast %476 : vector<16xf32> to vector<16x1xf32>
    %478 = tpu.concatenate %453, %456, %459, %462, %465, %468, %471, %474, %477 in 1 : vector<16x1xf32>, vector<16x1xf32>, vector<16x1xf32>, vector<16x1xf32>, vector<16x1xf32>, vector<16x1xf32>, vector<16x1xf32>, vector<16x1xf32>, vector<16x1xf32> -> vector<16x9xf32>
    %479 = arith.truncf %478 : vector<16x9xf32> to vector<16x9xbf16>
    %cst_165 = arith.constant dense<0.000000e+00> : vector<16x16xf32>
    %480 = tpu.matmul %479, %387, %cst_165 {dimension_numbers = #tpu.dot_dimension_numbers<[1], [0], [0], [1], [0, 0, 1, 1], [], []>} : vector<16x9xbf16>, vector<9x16xbf16>, vector<16x16xf32> -> vector<16x16xf32>
    %481 = arith.addf %450, %480 : vector<16x16xf32>
    %482 = arith.truncf %481 : vector<16x16xf32> to vector<16x16xbf16>
    %483 = vector.extract_strided_slice %389 {offsets = [0, 0], sizes = [16, 32], strides = [1, 1]} : vector<32x32xbf16> to vector<16x32xbf16>
    %cst_166 = arith.constant dense<0.000000e+00> : vector<16x32xf32>
    %484 = tpu.matmul %482, %483, %cst_166 {dimension_numbers = #tpu.dot_dimension_numbers<[1], [0], [0], [1], [0, 0, 1, 1], [], []>} : vector<16x16xbf16>, vector<16x32xbf16>, vector<16x32xf32> -> vector<16x32xf32>
    %485 = arith.addf %390, %484 : vector<16x32xf32>
    %486 = vector.extract_strided_slice %383 {offsets = [0, 16], sizes = [16, 16], strides = [1, 1]} : vector<16x96xf32> to vector<16x16xf32>
    %cst_167 = arith.constant 2.500000e-01 : f32
    %487 = vector.broadcast %cst_167 : f32 to vector<16x16xf32>
    %488 = arith.mulf %486, %487 : vector<16x16xf32>
    %489 = arith.truncf %488 : vector<16x16xf32> to vector<16x16xbf16>
    %490 = vector.extract_strided_slice %383 {offsets = [0, 48], sizes = [16, 16], strides = [1, 1]} : vector<16x96xf32> to vector<16x16xf32>
    %491 = arith.truncf %490 : vector<16x16xf32> to vector<16x16xbf16>
    %492 = vector.extract_strided_slice %383 {offsets = [0, 80], sizes = [16, 16], strides = [1, 1]} : vector<16x96xf32> to vector<16x16xf32>
    %493 = arith.truncf %492 : vector<16x16xf32> to vector<16x16xbf16>
    %cst_168 = arith.constant dense<0.000000e+00> : vector<16x16xf32>
    %494 = tpu.matmul %489, %491, %cst_168 {dimension_numbers = #tpu.dot_dimension_numbers<[1], [1], [0], [0], [0, 0, 1, 0], [], []>} : vector<16x16xbf16>, vector<16x16xbf16>, vector<16x16xf32> -> vector<16x16xf32>
    %cst_169 = arith.constant dense<0.000000e+00> : vector<16x9xf32>
    %495 = tpu.matmul %489, %385, %cst_169 {dimension_numbers = #tpu.dot_dimension_numbers<[1], [1], [0], [0], [0, 0, 1, 0], [], []>} : vector<16x16xbf16>, vector<9x16xbf16>, vector<16x9xf32> -> vector<16x9xf32>
    %496 = vector.extract_strided_slice %495 {offsets = [0, 0], sizes = [16, 1], strides = [1, 1]} : vector<16x9xf32> to vector<16x1xf32>
    %497 = vector.broadcast %496 : vector<16x1xf32> to vector<16x16xf32>
    %498 = arith.mulf %497, %19 : vector<16x16xf32>
    %499 = arith.addf %494, %498 : vector<16x16xf32>
    %500 = vector.extract_strided_slice %495 {offsets = [0, 1], sizes = [16, 1], strides = [1, 1]} : vector<16x9xf32> to vector<16x1xf32>
    %501 = vector.broadcast %500 : vector<16x1xf32> to vector<16x16xf32>
    %502 = arith.mulf %501, %23 : vector<16x16xf32>
    %503 = arith.addf %499, %502 : vector<16x16xf32>
    %504 = vector.extract_strided_slice %495 {offsets = [0, 2], sizes = [16, 1], strides = [1, 1]} : vector<16x9xf32> to vector<16x1xf32>
    %505 = vector.broadcast %504 : vector<16x1xf32> to vector<16x16xf32>
    %506 = arith.mulf %505, %27 : vector<16x16xf32>
    %507 = arith.addf %503, %506 : vector<16x16xf32>
    %508 = vector.extract_strided_slice %495 {offsets = [0, 3], sizes = [16, 1], strides = [1, 1]} : vector<16x9xf32> to vector<16x1xf32>
    %509 = vector.broadcast %508 : vector<16x1xf32> to vector<16x16xf32>
    %510 = arith.mulf %509, %31 : vector<16x16xf32>
    %511 = arith.addf %507, %510 : vector<16x16xf32>
    %512 = vector.extract_strided_slice %495 {offsets = [0, 4], sizes = [16, 1], strides = [1, 1]} : vector<16x9xf32> to vector<16x1xf32>
    %513 = vector.broadcast %512 : vector<16x1xf32> to vector<16x16xf32>
    %514 = arith.mulf %513, %35 : vector<16x16xf32>
    %515 = arith.addf %511, %514 : vector<16x16xf32>
    %516 = vector.extract_strided_slice %495 {offsets = [0, 5], sizes = [16, 1], strides = [1, 1]} : vector<16x9xf32> to vector<16x1xf32>
    %517 = vector.broadcast %516 : vector<16x1xf32> to vector<16x16xf32>
    %518 = arith.mulf %517, %39 : vector<16x16xf32>
    %519 = arith.addf %515, %518 : vector<16x16xf32>
    %520 = vector.extract_strided_slice %495 {offsets = [0, 6], sizes = [16, 1], strides = [1, 1]} : vector<16x9xf32> to vector<16x1xf32>
    %521 = vector.broadcast %520 : vector<16x1xf32> to vector<16x16xf32>
    %522 = arith.mulf %521, %43 : vector<16x16xf32>
    %523 = arith.addf %519, %522 : vector<16x16xf32>
    %524 = vector.extract_strided_slice %495 {offsets = [0, 7], sizes = [16, 1], strides = [1, 1]} : vector<16x9xf32> to vector<16x1xf32>
    %525 = vector.broadcast %524 : vector<16x1xf32> to vector<16x16xf32>
    %526 = arith.mulf %525, %47 : vector<16x16xf32>
    %527 = arith.addf %523, %526 : vector<16x16xf32>
    %528 = vector.extract_strided_slice %495 {offsets = [0, 8], sizes = [16, 1], strides = [1, 1]} : vector<16x9xf32> to vector<16x1xf32>
    %529 = vector.broadcast %528 : vector<16x1xf32> to vector<16x16xf32>
    %530 = arith.mulf %529, %51 : vector<16x16xf32>
    %531 = arith.addf %527, %530 : vector<16x16xf32>
    %cst_170 = arith.constant -1.000000e+04 : f32
    %532 = vector.broadcast %cst_170 : f32 to vector<16x16xf32>
    %533 = arith.select %12, %532, %531 : vector<16x16xi1>, vector<16x16xf32>
    %cst_171 = arith.constant dense<0xFF800000> : vector<16xf32>
    %534 = vector.multi_reduction <maximumf>, %533, %cst_171 [1] : vector<16x16xf32> to vector<16xf32>
    %535 = vector.shape_cast %534 : vector<16xf32> to vector<16x1xf32>
    %536 = vector.broadcast %535 : vector<16x1xf32> to vector<16x16xf32>
    %537 = arith.subf %533, %536 : vector<16x16xf32>
    %538 = math.exp %537 : vector<16x16xf32>
    %cst_172 = arith.constant dense<0.000000e+00> : vector<16xf32>
    %539 = vector.multi_reduction <add>, %538, %cst_172 [1] : vector<16x16xf32> to vector<16xf32>
    %540 = vector.shape_cast %539 : vector<16xf32> to vector<16x1xf32>
    %541 = tpu.reciprocal %540 {approx = true} : vector<16x1xf32> -> vector<16x1xf32>
    %542 = vector.broadcast %541 : vector<16x1xf32> to vector<16x16xf32>
    %543 = arith.mulf %538, %542 : vector<16x16xf32>
    %544 = arith.truncf %543 : vector<16x16xf32> to vector<16x16xbf16>
    %cst_173 = arith.constant dense<0.000000e+00> : vector<16x16xf32>
    %545 = tpu.matmul %544, %493, %cst_173 {dimension_numbers = #tpu.dot_dimension_numbers<[1], [0], [0], [1], [0, 0, 1, 1], [], []>} : vector<16x16xbf16>, vector<16x16xbf16>, vector<16x16xf32> -> vector<16x16xf32>
    %546 = arith.mulf %543, %19 : vector<16x16xf32>
    %cst_174 = arith.constant dense<0.000000e+00> : vector<16xf32>
    %547 = vector.multi_reduction <add>, %546, %cst_174 [1] : vector<16x16xf32> to vector<16xf32>
    %548 = vector.shape_cast %547 : vector<16xf32> to vector<16x1xf32>
    %549 = arith.mulf %543, %23 : vector<16x16xf32>
    %cst_175 = arith.constant dense<0.000000e+00> : vector<16xf32>
    %550 = vector.multi_reduction <add>, %549, %cst_175 [1] : vector<16x16xf32> to vector<16xf32>
    %551 = vector.shape_cast %550 : vector<16xf32> to vector<16x1xf32>
    %552 = arith.mulf %543, %27 : vector<16x16xf32>
    %cst_176 = arith.constant dense<0.000000e+00> : vector<16xf32>
    %553 = vector.multi_reduction <add>, %552, %cst_176 [1] : vector<16x16xf32> to vector<16xf32>
    %554 = vector.shape_cast %553 : vector<16xf32> to vector<16x1xf32>
    %555 = arith.mulf %543, %31 : vector<16x16xf32>
    %cst_177 = arith.constant dense<0.000000e+00> : vector<16xf32>
    %556 = vector.multi_reduction <add>, %555, %cst_177 [1] : vector<16x16xf32> to vector<16xf32>
    %557 = vector.shape_cast %556 : vector<16xf32> to vector<16x1xf32>
    %558 = arith.mulf %543, %35 : vector<16x16xf32>
    %cst_178 = arith.constant dense<0.000000e+00> : vector<16xf32>
    %559 = vector.multi_reduction <add>, %558, %cst_178 [1] : vector<16x16xf32> to vector<16xf32>
    %560 = vector.shape_cast %559 : vector<16xf32> to vector<16x1xf32>
    %561 = arith.mulf %543, %39 : vector<16x16xf32>
    %cst_179 = arith.constant dense<0.000000e+00> : vector<16xf32>
    %562 = vector.multi_reduction <add>, %561, %cst_179 [1] : vector<16x16xf32> to vector<16xf32>
    %563 = vector.shape_cast %562 : vector<16xf32> to vector<16x1xf32>
    %564 = arith.mulf %543, %43 : vector<16x16xf32>
    %cst_180 = arith.constant dense<0.000000e+00> : vector<16xf32>
    %565 = vector.multi_reduction <add>, %564, %cst_180 [1] : vector<16x16xf32> to vector<16xf32>
    %566 = vector.shape_cast %565 : vector<16xf32> to vector<16x1xf32>
    %567 = arith.mulf %543, %47 : vector<16x16xf32>
    %cst_181 = arith.constant dense<0.000000e+00> : vector<16xf32>
    %568 = vector.multi_reduction <add>, %567, %cst_181 [1] : vector<16x16xf32> to vector<16xf32>
    %569 = vector.shape_cast %568 : vector<16xf32> to vector<16x1xf32>
    %570 = arith.mulf %543, %51 : vector<16x16xf32>
    %cst_182 = arith.constant dense<0.000000e+00> : vector<16xf32>
    %571 = vector.multi_reduction <add>, %570, %cst_182 [1] : vector<16x16xf32> to vector<16xf32>
    %572 = vector.shape_cast %571 : vector<16xf32> to vector<16x1xf32>
    %573 = tpu.concatenate %548, %551, %554, %557, %560, %563, %566, %569, %572 in 1 : vector<16x1xf32>, vector<16x1xf32>, vector<16x1xf32>, vector<16x1xf32>, vector<16x1xf32>, vector<16x1xf32>, vector<16x1xf32>, vector<16x1xf32>, vector<16x1xf32> -> vector<16x9xf32>
    %574 = arith.truncf %573 : vector<16x9xf32> to vector<16x9xbf16>
    %cst_183 = arith.constant dense<0.000000e+00> : vector<16x16xf32>
    %575 = tpu.matmul %574, %387, %cst_183 {dimension_numbers = #tpu.dot_dimension_numbers<[1], [0], [0], [1], [0, 0, 1, 1], [], []>} : vector<16x9xbf16>, vector<9x16xbf16>, vector<16x16xf32> -> vector<16x16xf32>
    %576 = arith.addf %545, %575 : vector<16x16xf32>
    %577 = arith.truncf %576 : vector<16x16xf32> to vector<16x16xbf16>
    %578 = vector.extract_strided_slice %389 {offsets = [16, 0], sizes = [16, 32], strides = [1, 1]} : vector<32x32xbf16> to vector<16x32xbf16>
    %cst_184 = arith.constant dense<0.000000e+00> : vector<16x32xf32>
    %579 = tpu.matmul %577, %578, %cst_184 {dimension_numbers = #tpu.dot_dimension_numbers<[1], [0], [0], [1], [0, 0, 1, 1], [], []>} : vector<16x16xbf16>, vector<16x32xbf16>, vector<16x32xf32> -> vector<16x32xf32>
    %580 = arith.addf %485, %579 : vector<16x32xf32>
    %c1_185 = arith.constant 1 : index
    %c0_186 = arith.constant 0 : index
    %c0_187 = arith.constant 0 : index
    %581 = vector.load %arg12[%c1_185, %c0_186, %c0_187] : memref<2x1x32xf32, #tpu.memory_space<vmem>>, vector<1x1x32xf32>
    %582 = vector.shape_cast %581 : vector<1x1x32xf32> to vector<1x32xf32>
    %583 = vector.broadcast %582 : vector<1x32xf32> to vector<16x32xf32>
    %584 = arith.addf %580, %583 : vector<16x32xf32>
    %585 = arith.extf %376 : vector<16x32xbf16> to vector<16x32xf32>
    %586 = arith.addf %585, %584 : vector<16x32xf32>
    %c1_188 = arith.constant 1 : index
    %c0_189 = arith.constant 0 : index
    %c0_190 = arith.constant 0 : index
    %587 = vector.load %arg13[%c1_188, %c0_189, %c0_190] : memref<2x1x32xf32, #tpu.memory_space<vmem>>, vector<1x1x32xf32>
    %588 = vector.shape_cast %587 : vector<1x1x32xf32> to vector<1x32xf32>
    %c1_191 = arith.constant 1 : index
    %c0_192 = arith.constant 0 : index
    %c0_193 = arith.constant 0 : index
    %589 = vector.load %arg14[%c1_191, %c0_192, %c0_193] : memref<2x1x32xf32, #tpu.memory_space<vmem>>, vector<1x1x32xf32>
    %590 = vector.shape_cast %589 : vector<1x1x32xf32> to vector<1x32xf32>
    %cst_194 = arith.constant dense<0.000000e+00> : vector<16xf32>
    %591 = vector.multi_reduction <add>, %586, %cst_194 [1] : vector<16x32xf32> to vector<16xf32>
    %592 = vector.shape_cast %591 : vector<16xf32> to vector<16x1xf32>
    %cst_195 = arith.constant 3.200000e+01 : f32
    %593 = vector.broadcast %cst_195 : f32 to vector<16x1xf32>
    %594 = arith.divf %592, %593 : vector<16x1xf32>
    %595 = vector.broadcast %594 : vector<16x1xf32> to vector<16x32xf32>
    %596 = arith.subf %586, %595 : vector<16x32xf32>
    %597 = arith.mulf %596, %596 : vector<16x32xf32>
    %cst_196 = arith.constant dense<0.000000e+00> : vector<16xf32>
    %598 = vector.multi_reduction <add>, %597, %cst_196 [1] : vector<16x32xf32> to vector<16xf32>
    %599 = vector.shape_cast %598 : vector<16xf32> to vector<16x1xf32>
    %cst_197 = arith.constant 3.200000e+01 : f32
    %600 = vector.broadcast %cst_197 : f32 to vector<16x1xf32>
    %601 = arith.divf %599, %600 : vector<16x1xf32>
    %cst_198 = arith.constant 9.99999974E-6 : f32
    %602 = vector.broadcast %cst_198 : f32 to vector<16x1xf32>
    %603 = arith.addf %601, %602 : vector<16x1xf32>
    %604 = math.rsqrt %603 : vector<16x1xf32>
    %605 = vector.broadcast %604 : vector<16x1xf32> to vector<16x32xf32>
    %606 = arith.mulf %596, %605 : vector<16x32xf32>
    %607 = vector.broadcast %588 : vector<1x32xf32> to vector<16x32xf32>
    %608 = arith.mulf %606, %607 : vector<16x32xf32>
    %609 = vector.broadcast %590 : vector<1x32xf32> to vector<16x32xf32>
    %610 = arith.addf %608, %609 : vector<16x32xf32>
    %611 = arith.truncf %610 : vector<16x32xf32> to vector<16x32xbf16>
    %612 = vector.broadcast %3 : vector<16x1xbf16> to vector<16x32xbf16>
    %613 = arith.mulf %611, %612 : vector<16x32xbf16>
    %cst_199 = arith.constant 0.000000e+00 : bf16
    %614 = vector.broadcast %cst_199 : bf16 to vector<1x32xbf16>
    %cst_200 = arith.constant 0.000000e+00 : bf16
    %615 = vector.broadcast %cst_200 : bf16 to vector<1x32xbf16>
    %616 = tpu.concatenate %614, %613, %615 in 0 : vector<1x32xbf16>, vector<16x32xbf16>, vector<1x32xbf16> -> vector<18x32xbf16>
    %cst_201 = arith.constant 0.000000e+00 : f32
    %617 = vector.broadcast %cst_201 : f32 to vector<16x64xf32>
    %618 = vector.extract_strided_slice %616 {offsets = [0, 0], sizes = [16, 32], strides = [1, 1]} : vector<18x32xbf16> to vector<16x32xbf16>
    %c1_202 = arith.constant 1 : index
    %c0_203 = arith.constant 0 : index
    %c0_204 = arith.constant 0 : index
    %c0_205 = arith.constant 0 : index
    %619 = vector.load %arg15[%c1_202, %c0_203, %c0_204, %c0_205] : memref<2x3x32x64xbf16, #tpu.memory_space<vmem>>, vector<1x1x32x64xbf16>
    %620 = vector.shape_cast %619 : vector<1x1x32x64xbf16> to vector<32x64xbf16>
    %cst_206 = arith.constant dense<0.000000e+00> : vector<16x64xf32>
    %621 = tpu.matmul %618, %620, %cst_206 {dimension_numbers = #tpu.dot_dimension_numbers<[1], [0], [0], [1], [0, 0, 1, 1], [], []>} : vector<16x32xbf16>, vector<32x64xbf16>, vector<16x64xf32> -> vector<16x64xf32>
    %622 = arith.addf %617, %621 : vector<16x64xf32>
    %623 = vector.extract_strided_slice %616 {offsets = [1, 0], sizes = [16, 32], strides = [1, 1]} : vector<18x32xbf16> to vector<16x32xbf16>
    %c1_207 = arith.constant 1 : index
    %c1_208 = arith.constant 1 : index
    %c0_209 = arith.constant 0 : index
    %c0_210 = arith.constant 0 : index
    %624 = vector.load %arg15[%c1_207, %c1_208, %c0_209, %c0_210] : memref<2x3x32x64xbf16, #tpu.memory_space<vmem>>, vector<1x1x32x64xbf16>
    %625 = vector.shape_cast %624 : vector<1x1x32x64xbf16> to vector<32x64xbf16>
    %cst_211 = arith.constant dense<0.000000e+00> : vector<16x64xf32>
    %626 = tpu.matmul %623, %625, %cst_211 {dimension_numbers = #tpu.dot_dimension_numbers<[1], [0], [0], [1], [0, 0, 1, 1], [], []>} : vector<16x32xbf16>, vector<32x64xbf16>, vector<16x64xf32> -> vector<16x64xf32>
    %627 = arith.addf %622, %626 : vector<16x64xf32>
    %628 = vector.extract_strided_slice %616 {offsets = [2, 0], sizes = [16, 32], strides = [1, 1]} : vector<18x32xbf16> to vector<16x32xbf16>
    %c1_212 = arith.constant 1 : index
    %c2_213 = arith.constant 2 : index
    %c0_214 = arith.constant 0 : index
    %c0_215 = arith.constant 0 : index
    %629 = vector.load %arg15[%c1_212, %c2_213, %c0_214, %c0_215] : memref<2x3x32x64xbf16, #tpu.memory_space<vmem>>, vector<1x1x32x64xbf16>
    %630 = vector.shape_cast %629 : vector<1x1x32x64xbf16> to vector<32x64xbf16>
    %cst_216 = arith.constant dense<0.000000e+00> : vector<16x64xf32>
    %631 = tpu.matmul %628, %630, %cst_216 {dimension_numbers = #tpu.dot_dimension_numbers<[1], [0], [0], [1], [0, 0, 1, 1], [], []>} : vector<16x32xbf16>, vector<32x64xbf16>, vector<16x64xf32> -> vector<16x64xf32>
    %632 = arith.addf %627, %631 : vector<16x64xf32>
    %c1_217 = arith.constant 1 : index
    %c0_218 = arith.constant 0 : index
    %c0_219 = arith.constant 0 : index
    %633 = vector.load %arg16[%c1_217, %c0_218, %c0_219] : memref<2x1x64xf32, #tpu.memory_space<vmem>>, vector<1x1x64xf32>
    %634 = vector.shape_cast %633 : vector<1x1x64xf32> to vector<1x64xf32>
    %635 = vector.broadcast %634 : vector<1x64xf32> to vector<16x64xf32>
    %636 = arith.addf %632, %635 : vector<16x64xf32>
    %cst_220 = arith.constant 0.000000e+00 : f32
    %637 = vector.broadcast %cst_220 : f32 to vector<16x64xf32>
    %638 = arith.maximumf %636, %637 : vector<16x64xf32>
    %639 = vector.broadcast %4 : vector<16x1xf32> to vector<16x64xf32>
    %640 = arith.mulf %638, %639 : vector<16x64xf32>
    %641 = arith.truncf %640 : vector<16x64xf32> to vector<16x64xbf16>
    %cst_221 = arith.constant 0.000000e+00 : bf16
    %642 = vector.broadcast %cst_221 : bf16 to vector<1x64xbf16>
    %cst_222 = arith.constant 0.000000e+00 : bf16
    %643 = vector.broadcast %cst_222 : bf16 to vector<1x64xbf16>
    %644 = tpu.concatenate %642, %641, %643 in 0 : vector<1x64xbf16>, vector<16x64xbf16>, vector<1x64xbf16> -> vector<18x64xbf16>
    %cst_223 = arith.constant 0.000000e+00 : f32
    %645 = vector.broadcast %cst_223 : f32 to vector<16x32xf32>
    %646 = vector.extract_strided_slice %644 {offsets = [0, 0], sizes = [16, 64], strides = [1, 1]} : vector<18x64xbf16> to vector<16x64xbf16>
    %c1_224 = arith.constant 1 : index
    %c0_225 = arith.constant 0 : index
    %c0_226 = arith.constant 0 : index
    %c0_227 = arith.constant 0 : index
    %647 = vector.load %arg17[%c1_224, %c0_225, %c0_226, %c0_227] : memref<2x3x64x32xbf16, #tpu.memory_space<vmem>>, vector<1x1x64x32xbf16>
    %648 = vector.shape_cast %647 : vector<1x1x64x32xbf16> to vector<64x32xbf16>
    %cst_228 = arith.constant dense<0.000000e+00> : vector<16x32xf32>
    %649 = tpu.matmul %646, %648, %cst_228 {dimension_numbers = #tpu.dot_dimension_numbers<[1], [0], [0], [1], [0, 0, 1, 1], [], []>} : vector<16x64xbf16>, vector<64x32xbf16>, vector<16x32xf32> -> vector<16x32xf32>
    %650 = arith.addf %645, %649 : vector<16x32xf32>
    %651 = vector.extract_strided_slice %644 {offsets = [1, 0], sizes = [16, 64], strides = [1, 1]} : vector<18x64xbf16> to vector<16x64xbf16>
    %c1_229 = arith.constant 1 : index
    %c1_230 = arith.constant 1 : index
    %c0_231 = arith.constant 0 : index
    %c0_232 = arith.constant 0 : index
    %652 = vector.load %arg17[%c1_229, %c1_230, %c0_231, %c0_232] : memref<2x3x64x32xbf16, #tpu.memory_space<vmem>>, vector<1x1x64x32xbf16>
    %653 = vector.shape_cast %652 : vector<1x1x64x32xbf16> to vector<64x32xbf16>
    %cst_233 = arith.constant dense<0.000000e+00> : vector<16x32xf32>
    %654 = tpu.matmul %651, %653, %cst_233 {dimension_numbers = #tpu.dot_dimension_numbers<[1], [0], [0], [1], [0, 0, 1, 1], [], []>} : vector<16x64xbf16>, vector<64x32xbf16>, vector<16x32xf32> -> vector<16x32xf32>
    %655 = arith.addf %650, %654 : vector<16x32xf32>
    %656 = vector.extract_strided_slice %644 {offsets = [2, 0], sizes = [16, 64], strides = [1, 1]} : vector<18x64xbf16> to vector<16x64xbf16>
    %c1_234 = arith.constant 1 : index
    %c2_235 = arith.constant 2 : index
    %c0_236 = arith.constant 0 : index
    %c0_237 = arith.constant 0 : index
    %657 = vector.load %arg17[%c1_234, %c2_235, %c0_236, %c0_237] : memref<2x3x64x32xbf16, #tpu.memory_space<vmem>>, vector<1x1x64x32xbf16>
    %658 = vector.shape_cast %657 : vector<1x1x64x32xbf16> to vector<64x32xbf16>
    %cst_238 = arith.constant dense<0.000000e+00> : vector<16x32xf32>
    %659 = tpu.matmul %656, %658, %cst_238 {dimension_numbers = #tpu.dot_dimension_numbers<[1], [0], [0], [1], [0, 0, 1, 1], [], []>} : vector<16x64xbf16>, vector<64x32xbf16>, vector<16x32xf32> -> vector<16x32xf32>
    %660 = arith.addf %655, %659 : vector<16x32xf32>
    %c1_239 = arith.constant 1 : index
    %c0_240 = arith.constant 0 : index
    %c0_241 = arith.constant 0 : index
    %661 = vector.load %arg18[%c1_239, %c0_240, %c0_241] : memref<2x1x32xf32, #tpu.memory_space<vmem>>, vector<1x1x32xf32>
    %662 = vector.shape_cast %661 : vector<1x1x32xf32> to vector<1x32xf32>
    %663 = vector.broadcast %662 : vector<1x32xf32> to vector<16x32xf32>
    %664 = arith.addf %660, %663 : vector<16x32xf32>
    %665 = vector.broadcast %4 : vector<16x1xf32> to vector<16x32xf32>
    %666 = arith.mulf %664, %665 : vector<16x32xf32>
    %667 = arith.extf %611 : vector<16x32xbf16> to vector<16x32xf32>
    %668 = arith.addf %667, %666 : vector<16x32xf32>
    %c1_242 = arith.constant 1 : index
    %c0_243 = arith.constant 0 : index
    %c0_244 = arith.constant 0 : index
    %669 = vector.load %arg19[%c1_242, %c0_243, %c0_244] : memref<2x1x32xf32, #tpu.memory_space<vmem>>, vector<1x1x32xf32>
    %670 = vector.shape_cast %669 : vector<1x1x32xf32> to vector<1x32xf32>
    %c1_245 = arith.constant 1 : index
    %c0_246 = arith.constant 0 : index
    %c0_247 = arith.constant 0 : index
    %671 = vector.load %arg20[%c1_245, %c0_246, %c0_247] : memref<2x1x32xf32, #tpu.memory_space<vmem>>, vector<1x1x32xf32>
    %672 = vector.shape_cast %671 : vector<1x1x32xf32> to vector<1x32xf32>
    %cst_248 = arith.constant dense<0.000000e+00> : vector<16xf32>
    %673 = vector.multi_reduction <add>, %668, %cst_248 [1] : vector<16x32xf32> to vector<16xf32>
    %674 = vector.shape_cast %673 : vector<16xf32> to vector<16x1xf32>
    %cst_249 = arith.constant 3.200000e+01 : f32
    %675 = vector.broadcast %cst_249 : f32 to vector<16x1xf32>
    %676 = arith.divf %674, %675 : vector<16x1xf32>
    %677 = vector.broadcast %676 : vector<16x1xf32> to vector<16x32xf32>
    %678 = arith.subf %668, %677 : vector<16x32xf32>
    %679 = arith.mulf %678, %678 : vector<16x32xf32>
    %cst_250 = arith.constant dense<0.000000e+00> : vector<16xf32>
    %680 = vector.multi_reduction <add>, %679, %cst_250 [1] : vector<16x32xf32> to vector<16xf32>
    %681 = vector.shape_cast %680 : vector<16xf32> to vector<16x1xf32>
    %cst_251 = arith.constant 3.200000e+01 : f32
    %682 = vector.broadcast %cst_251 : f32 to vector<16x1xf32>
    %683 = arith.divf %681, %682 : vector<16x1xf32>
    %cst_252 = arith.constant 9.99999974E-6 : f32
    %684 = vector.broadcast %cst_252 : f32 to vector<16x1xf32>
    %685 = arith.addf %683, %684 : vector<16x1xf32>
    %686 = math.rsqrt %685 : vector<16x1xf32>
    %687 = vector.broadcast %686 : vector<16x1xf32> to vector<16x32xf32>
    %688 = arith.mulf %678, %687 : vector<16x32xf32>
    %689 = vector.broadcast %670 : vector<1x32xf32> to vector<16x32xf32>
    %690 = arith.mulf %688, %689 : vector<16x32xf32>
    %691 = vector.broadcast %672 : vector<1x32xf32> to vector<16x32xf32>
    %692 = arith.addf %690, %691 : vector<16x32xf32>
    %693 = arith.truncf %692 : vector<16x32xf32> to vector<16x32xbf16>
    %694 = vector.broadcast %3 : vector<16x1xbf16> to vector<16x32xbf16>
    %695 = arith.mulf %693, %694 : vector<16x32xbf16>
    %c0_253 = arith.constant 0 : index
    %c0_254 = arith.constant 0 : index
    %696 = vector.load %arg21[%c0_253, %c0_254] : memref<32x8xbf16, #tpu.memory_space<vmem>>, vector<32x8xbf16>
    %cst_255 = arith.constant dense<0.000000e+00> : vector<16x8xf32>
    %697 = tpu.matmul %695, %696, %cst_255 {dimension_numbers = #tpu.dot_dimension_numbers<[1], [0], [0], [1], [0, 0, 1, 1], [], []>} : vector<16x32xbf16>, vector<32x8xbf16>, vector<16x8xf32> -> vector<16x8xf32>
    %c0_256 = arith.constant 0 : index
    %c0_257 = arith.constant 0 : index
    %698 = vector.load %arg22[%c0_256, %c0_257] : memref<1x8xf32, #tpu.memory_space<vmem>>, vector<1x8xf32>
    %699 = vector.broadcast %698 : vector<1x8xf32> to vector<16x8xf32>
    %700 = arith.addf %697, %699 : vector<16x8xf32>
    %701 = vector.broadcast %4 : vector<16x1xf32> to vector<16x8xf32>
    %702 = arith.mulf %700, %701 : vector<16x8xf32>
    %703 = vector.extract_strided_slice %702 {offsets = [0, 0], sizes = [16, 4], strides = [1, 1]} : vector<16x8xf32> to vector<16x4xf32>
    %704 = vector.extract_strided_slice %702 {offsets = [0, 4], sizes = [16, 4], strides = [1, 1]} : vector<16x8xf32> to vector<16x4xf32>
    %c0_258 = arith.constant 0 : index
    %c0_259 = arith.constant 0 : index
    %c0_260 = arith.constant 0 : index
    %705 = vector.load %arg4[%c0_258, %c0_259, %c0_260] : memref<1x16x4xf32, #tpu.memory_space<vmem>>, vector<1x16x4xf32>
    %706 = vector.shape_cast %705 : vector<1x16x4xf32> to vector<16x4xf32>
    %707 = math.exp %704 : vector<16x4xf32>
    %708 = arith.mulf %706, %707 : vector<16x4xf32>
    %709 = vector.broadcast %4 : vector<16x1xf32> to vector<16x4xf32>
    %710 = arith.mulf %708, %709 : vector<16x4xf32>
    %cst_261 = arith.constant 1.000000e+00 : f32
    %711 = vector.broadcast %cst_261 : f32 to vector<16x4xf32>
    %712 = arith.mulf %710, %711 : vector<16x4xf32>
    %713 = arith.addf %703, %712 : vector<16x4xf32>
    %c0_262 = arith.constant 0 : index
    %c0_263 = arith.constant 0 : index
    %c0_264 = arith.constant 0 : index
    %714 = vector.load %arg23[%c0_262, %c0_263, %c0_264] : memref<1x16x8xf32, #tpu.memory_space<vmem>>, vector<1x16x8xf32>
    %715 = vector.shape_cast %714 : vector<1x16x8xf32> to vector<16x8xf32>
    %716 = vector.shape_cast %702 : vector<16x8xf32> to vector<1x16x8xf32>
    tpu.vector_store %arg23[%c0_262, %c0_263, %c0_264], %716 {strides = array<i32>} : memref<1x16x8xf32, #tpu.memory_space<vmem>>, vector<1x16x8xf32>,
    %c0_265 = arith.constant 0 : index
    %c0_266 = arith.constant 0 : index
    %c0_267 = arith.constant 0 : index
    %717 = vector.load %arg24[%c0_265, %c0_266, %c0_267] : memref<1x16x4xf32, #tpu.memory_space<vmem>>, vector<1x16x4xf32>
    %718 = vector.shape_cast %717 : vector<1x16x4xf32> to vector<16x4xf32>
    %719 = vector.shape_cast %713 : vector<16x4xf32> to vector<1x16x4xf32>
    tpu.vector_store %arg24[%c0_265, %c0_266, %c0_267], %719 {strides = array<i32>} : memref<1x16x4xf32, #tpu.memory_space<vmem>>, vector<1x16x4xf32>,
    return
  }
  func.func @transform_0(%arg0: i32) -> (i32, i32, i32) {
    %c0_i32 = arith.constant 0 : i32
    %c0_i32_0 = arith.constant 0 : i32
    %c0_i32_1 = arith.constant 0 : i32
    return %arg0, %c0_i32, %c0_i32_0 : i32, i32, i32
  }
  func.func @transform_1(%arg0: i32) -> (i32, i32, i32) {
    %c0_i32 = arith.constant 0 : i32
    %c0_i32_0 = arith.constant 0 : i32
    %c0_i32_1 = arith.constant 0 : i32
    return %arg0, %c0_i32, %c0_i32_0 : i32, i32, i32
  }
  func.func @transform_2(%arg0: i32) -> (i32, i32, i32) {
    %c0_i32 = arith.constant 0 : i32
    %c0_i32_0 = arith.constant 0 : i32
    %c0_i32_1 = arith.constant 0 : i32
    return %arg0, %c0_i32, %c0_i32_0 : i32, i32, i32
  }
  func.func @transform_3(%arg0: i32) -> (i32, i32, i32) {
    %c0_i32 = arith.constant 0 : i32
    %c0_i32_0 = arith.constant 0 : i32
    %c0_i32_1 = arith.constant 0 : i32
    return %arg0, %c0_i32, %c0_i32_0 : i32, i32, i32
  }
  func.func @transform_4(%arg0: i32) -> (i32, i32) {
    %c0_i32 = arith.constant 0 : i32
    %c0_i32_0 = arith.constant 0 : i32
    %c0_i32_1 = arith.constant 0 : i32
    return %c0_i32, %c0_i32_0 : i32, i32
  }
  func.func @transform_5(%arg0: i32) -> (i32, i32) {
    %c0_i32 = arith.constant 0 : i32
    %c0_i32_0 = arith.constant 0 : i32
    %c0_i32_1 = arith.constant 0 : i32
    return %c0_i32, %c0_i32_0 : i32, i32
  }
  func.func @transform_6(%arg0: i32) -> (i32, i32, i32) {
    %c0_i32 = arith.constant 0 : i32
    %c0_i32_0 = arith.constant 0 : i32
    %c0_i32_1 = arith.constant 0 : i32
    %c0_i32_2 = arith.constant 0 : i32
    return %c0_i32, %c0_i32_0, %c0_i32_1 : i32, i32, i32
  }
  func.func @transform_7(%arg0: i32) -> (i32, i32, i32) {
    %c0_i32 = arith.constant 0 : i32
    %c0_i32_0 = arith.constant 0 : i32
    %c0_i32_1 = arith.constant 0 : i32
    %c0_i32_2 = arith.constant 0 : i32
    return %c0_i32, %c0_i32_0, %c0_i32_1 : i32, i32, i32
  }
  func.func @transform_8(%arg0: i32) -> (i32, i32, i32) {
    %c0_i32 = arith.constant 0 : i32
    %c0_i32_0 = arith.constant 0 : i32
    %c0_i32_1 = arith.constant 0 : i32
    %c0_i32_2 = arith.constant 0 : i32
    return %c0_i32, %c0_i32_0, %c0_i32_1 : i32, i32, i32
  }
  func.func @transform_9(%arg0: i32) -> (i32, i32, i32) {
    %c0_i32 = arith.constant 0 : i32
    %c0_i32_0 = arith.constant 0 : i32
    %c0_i32_1 = arith.constant 0 : i32
    %c0_i32_2 = arith.constant 0 : i32
    return %c0_i32, %c0_i32_0, %c0_i32_1 : i32, i32, i32
  }
  func.func @transform_10(%arg0: i32) -> (i32, i32, i32) {
    %c0_i32 = arith.constant 0 : i32
    %c0_i32_0 = arith.constant 0 : i32
    %c0_i32_1 = arith.constant 0 : i32
    %c0_i32_2 = arith.constant 0 : i32
    return %c0_i32, %c0_i32_0, %c0_i32_1 : i32, i32, i32
  }
  func.func @transform_11(%arg0: i32) -> (i32, i32, i32) {
    %c0_i32 = arith.constant 0 : i32
    %c0_i32_0 = arith.constant 0 : i32
    %c0_i32_1 = arith.constant 0 : i32
    %c0_i32_2 = arith.constant 0 : i32
    return %c0_i32, %c0_i32_0, %c0_i32_1 : i32, i32, i32
  }
  func.func @transform_12(%arg0: i32) -> (i32, i32, i32) {
    %c0_i32 = arith.constant 0 : i32
    %c0_i32_0 = arith.constant 0 : i32
    %c0_i32_1 = arith.constant 0 : i32
    %c0_i32_2 = arith.constant 0 : i32
    return %c0_i32, %c0_i32_0, %c0_i32_1 : i32, i32, i32
  }
  func.func @transform_13(%arg0: i32) -> (i32, i32, i32) {
    %c0_i32 = arith.constant 0 : i32
    %c0_i32_0 = arith.constant 0 : i32
    %c0_i32_1 = arith.constant 0 : i32
    %c0_i32_2 = arith.constant 0 : i32
    return %c0_i32, %c0_i32_0, %c0_i32_1 : i32, i32, i32
  }
  func.func @transform_14(%arg0: i32) -> (i32, i32, i32, i32) {
    %c0_i32 = arith.constant 0 : i32
    %c0_i32_0 = arith.constant 0 : i32
    %c0_i32_1 = arith.constant 0 : i32
    %c0_i32_2 = arith.constant 0 : i32
    %c0_i32_3 = arith.constant 0 : i32
    return %c0_i32, %c0_i32_0, %c0_i32_1, %c0_i32_2 : i32, i32, i32, i32
  }
  func.func @transform_15(%arg0: i32) -> (i32, i32, i32) {
    %c0_i32 = arith.constant 0 : i32
    %c0_i32_0 = arith.constant 0 : i32
    %c0_i32_1 = arith.constant 0 : i32
    %c0_i32_2 = arith.constant 0 : i32
    return %c0_i32, %c0_i32_0, %c0_i32_1 : i32, i32, i32
  }
  func.func @transform_16(%arg0: i32) -> (i32, i32, i32, i32) {
    %c0_i32 = arith.constant 0 : i32
    %c0_i32_0 = arith.constant 0 : i32
    %c0_i32_1 = arith.constant 0 : i32
    %c0_i32_2 = arith.constant 0 : i32
    %c0_i32_3 = arith.constant 0 : i32
    return %c0_i32, %c0_i32_0, %c0_i32_1, %c0_i32_2 : i32, i32, i32, i32
  }
  func.func @transform_17(%arg0: i32) -> (i32, i32, i32) {
    %c0_i32 = arith.constant 0 : i32
    %c0_i32_0 = arith.constant 0 : i32
    %c0_i32_1 = arith.constant 0 : i32
    %c0_i32_2 = arith.constant 0 : i32
    return %c0_i32, %c0_i32_0, %c0_i32_1 : i32, i32, i32
  }
  func.func @transform_18(%arg0: i32) -> (i32, i32, i32) {
    %c0_i32 = arith.constant 0 : i32
    %c0_i32_0 = arith.constant 0 : i32
    %c0_i32_1 = arith.constant 0 : i32
    %c0_i32_2 = arith.constant 0 : i32
    return %c0_i32, %c0_i32_0, %c0_i32_1 : i32, i32, i32
  }
  func.func @transform_19(%arg0: i32) -> (i32, i32, i32) {
    %c0_i32 = arith.constant 0 : i32
    %c0_i32_0 = arith.constant 0 : i32
    %c0_i32_1 = arith.constant 0 : i32
    %c0_i32_2 = arith.constant 0 : i32
    return %c0_i32, %c0_i32_0, %c0_i32_1 : i32, i32, i32
  }
  func.func @transform_20(%arg0: i32) -> (i32, i32) {
    %c0_i32 = arith.constant 0 : i32
    %c0_i32_0 = arith.constant 0 : i32
    %c0_i32_1 = arith.constant 0 : i32
    return %c0_i32, %c0_i32_0 : i32, i32
  }
  func.func @transform_21(%arg0: i32) -> (i32, i32) {
    %c0_i32 = arith.constant 0 : i32
    %c0_i32_0 = arith.constant 0 : i32
    %c0_i32_1 = arith.constant 0 : i32
    return %c0_i32, %c0_i32_0 : i32, i32
  }
  func.func @transform_22(%arg0: i32) -> (i32, i32, i32) {
    %c0_i32 = arith.constant 0 : i32
    %c0_i32_0 = arith.constant 0 : i32
    %c0_i32_1 = arith.constant 0 : i32
    return %arg0, %c0_i32, %c0_i32_0 : i32, i32, i32
  }
  func.func @transform_23(%arg0: i32) -> (i32, i32, i32) {
    %c0_i32 = arith.constant 0 : i32
    %c0_i32_0 = arith.constant 0 : i32
    %c0_i32_1 = arith.constant 0 : i32
    return %arg0, %c0_i32, %c0_i32_0 : i32, i32, i32
  }
}

</mosaic_0001>

<llo_original>
// kernel: tpu_custom_call.1
$region0: #{tpu_custom_call.1}
  #allocation0 [shape = 'u32[]', space=smem, size = 0x4, offset = 0x4, fixed_abs, tag = 'smem constant byte address 0x4 - core index']
  #allocation1 [shape = 'u32[144,128]{1,0:T(1,128)}', space=vmem, size = 0x12000, scoped, tag = 'internal scratch']
  %s0 = inlined_call_operand.vmem [shape: bf16[2,16,8], index: 0, kind: input, shape index: {}]
  %s1 = inlined_call_operand.vmem [shape: bf16[2,16,1], index: 1, kind: input, shape index: {}]
  %s2 = inlined_call_operand.vmem [shape: bf16[2,1,16], index: 2, kind: input, shape index: {}]
  %s3 = inlined_call_operand.vmem [shape: f32[2,16,4], index: 3, kind: input, shape index: {}]
  %s4 = inlined_call_operand.vmem [shape: bf16[8,32], index: 4, kind: input, shape index: {}]
  %s5 = inlined_call_operand.vmem [shape: f32[1,32], index: 5, kind: input, shape index: {}]
  %s6 = inlined_call_operand.vmem [shape: bf16[2,32,96], index: 6, kind: input, shape index: {}]
  %s7 = inlined_call_operand.vmem [shape: f32[2,1,96], index: 7, kind: input, shape index: {}]
  %s8 = inlined_call_operand.vmem [shape: bf16[2,9,16], index: 8, kind: input, shape index: {}]
  %s9 = inlined_call_operand.vmem [shape: bf16[2,9,16], index: 9, kind: input, shape index: {}]
  %s10 = inlined_call_operand.vmem [shape: bf16[2,32,32], index: 10, kind: input, shape index: {}]
  %s11 = inlined_call_operand.vmem [shape: f32[2,1,32], index: 11, kind: input, shape index: {}]
  %s12 = inlined_call_operand.vmem [shape: f32[2,1,32], index: 12, kind: input, shape index: {}]
  %s13 = inlined_call_operand.vmem [shape: f32[2,1,32], index: 13, kind: input, shape index: {}]
  %s14 = inlined_call_operand.vmem [shape: bf16[2,3,32,64], index: 14, kind: input, shape index: {}]
  %s15 = inlined_call_operand.vmem [shape: f32[2,1,64], index: 15, kind: input, shape index: {}]
  %s16 = inlined_call_operand.vmem [shape: bf16[2,3,64,32], index: 16, kind: input, shape index: {}]
  %s17 = inlined_call_operand.vmem [shape: f32[2,1,32], index: 17, kind: input, shape index: {}]
  %s18 = inlined_call_operand.vmem [shape: f32[2,1,32], index: 18, kind: input, shape index: {}]
  %s19 = inlined_call_operand.vmem [shape: f32[2,1,32], index: 19, kind: input, shape index: {}]
  %s20 = inlined_call_operand.vmem [shape: bf16[32,8], index: 20, kind: input, shape index: {}]
  %s21 = inlined_call_operand.vmem [shape: f32[1,8], index: 21, kind: input, shape index: {}]
  %s22 = inlined_call_operand.vmem [shape: f32[2,16,8], index: 22, kind: output, shape index: {0}]
  %s23 = inlined_call_operand.vmem [shape: f32[2,16,4], index: 23, kind: output, shape index: {1}]
  %24 = xla_tuple %s22, %s23
  %s25 = sld [smem:[#allocation0]]
  $region129: #{tpu_custom_call.1} parent=0
    _
  %s27 = ssub.s32 1, %s25
  %s28 = scalar_select 0, %s27, %s25
  loop: start=0, step=1, limit=4
  $region2: #{tpu_custom_call.1} parent=0 // loop_pre_header
    _
  $region3: #{tpu_custom_call.1} parent=0 // loop_header
    %s30 = sphi 0, %s34
    %p31 = scmp.ge.s32.totalorder %s30, 4
    %s40 = sphi 0, %s42
    %s43 = sphi 0, %s40
    %s44 = sphi 0, %s43
    %s60 = sphi 0, %s44
    %s66 = sphi 0, %s68
    %s69 = sphi 0, %s66
    %s70 = sphi 0, %s69
    %s86 = sphi 0, %s70
    %s92 = sphi 0, %s94
    %s95 = sphi 0, %s92
    %s96 = sphi 0, %s95
    %s112 = sphi 0, %s96
    %s118 = sphi 0, %s120
    %s121 = sphi 0, %s118
    %s122 = sphi 0, %s121
    %s138 = sphi 0, %s122
    %s142 = sphi 0, %s142
    %s144 = sphi 0, %s142
    %s145 = sphi 0, %s144
    %s159 = sphi 0, %s145
    %s163 = sphi 0, %s163
    %s165 = sphi 0, %s163
    %s166 = sphi 0, %s165
    %s180 = sphi 0, %s166
    %s184 = sphi 0, %s184
    %s186 = sphi 0, %s184
    %s187 = sphi 0, %s186
    %s201 = sphi 0, %s187
    %s205 = sphi 0, %s205
    %s207 = sphi 0, %s205
    %s208 = sphi 0, %s207
    %s222 = sphi 0, %s208
    %s226 = sphi 0, %s226
    %s228 = sphi 0, %s226
    %s229 = sphi 0, %s228
    %s243 = sphi 0, %s229
    %s247 = sphi 0, %s247
    %s249 = sphi 0, %s247
    %s250 = sphi 0, %s249
    %s264 = sphi 0, %s250
    %s268 = sphi 0, %s268
    %s270 = sphi 0, %s268
    %s271 = sphi 0, %s270
    %s285 = sphi 0, %s271
    %s289 = sphi 0, %s289
    %s291 = sphi 0, %s289
    %s292 = sphi 0, %s291
    %s306 = sphi 0, %s292
    %s310 = sphi 0, %s310
    %s312 = sphi 0, %s310
    %s313 = sphi 0, %s312
    %s327 = sphi 0, %s313
    %s331 = sphi 0, %s331
    %s333 = sphi 0, %s331
    %s334 = sphi 0, %s333
    %s348 = sphi 0, %s334
    %s352 = sphi 0, %s352
    %s354 = sphi 0, %s352
    %s355 = sphi 0, %s354
    %s369 = sphi 0, %s355
    %s373 = sphi 0, %s373
    %s375 = sphi 0, %s373
    %s376 = sphi 0, %s375
    %s390 = sphi 0, %s376
    %s394 = sphi 0, %s394
    %s396 = sphi 0, %s394
    %s397 = sphi 0, %s396
    %s411 = sphi 0, %s397
    %s415 = sphi 0, %s415
    %s417 = sphi 0, %s415
    %s418 = sphi 0, %s417
    %s432 = sphi 0, %s418
    %s436 = sphi 0, %s436
    %s438 = sphi 0, %s436
    %s439 = sphi 0, %s438
    %s453 = sphi 0, %s439
    %s457 = sphi 0, %s457
    %s459 = sphi 0, %s457
    %s460 = sphi 0, %s459
    %s474 = sphi 0, %s460
    %s478 = sphi 0, %s478
    %s480 = sphi 0, %s478
    %s481 = sphi 0, %s480
    %s495 = sphi 0, %s481
    %s499 = sphi 0, %s499
    %s501 = sphi 0, %s499
    %s502 = sphi 0, %s501
    %s516 = sphi 0, %s502
    %s522 = sphi 0, %s524
    %s525 = sphi 0, %s522
    %s526 = sphi 0, %s525
    %s542 = sphi 0, %s526
    %s548 = sphi 0, %s550
    %s551 = sphi 0, %s548
    %s552 = sphi 0, %s551
    %s568 = sphi 0, %s552
  $region4: #{tpu_custom_call.1} parent=0 // loop_header_branch
    %33 = sbr.rel (%p31) target = $region8
  $region5: #{tpu_custom_call.1} parent=0 // loop_body
    %s35 = ssub.s32 %s30, 1
    %s36 = ssub.s32 %s30, 2
    %s37 = sadd.s32 %s30, 1
    %s38 = ssub.s32 %s30, %s37
    %p39 = scmp.eq.s32.totalorder %s38, 0
    %s41 = sadd.s32 %s40, 1
    %s42 = scalar_select %p39, %s40, %s41
    %p45 = pneg %p39
    %p46 = scmp.eq.s32.totalorder %s30, 1
    %p47 = por %p45, %p46
    %p48 = scmp.ne.s32.totalorder %s40, %s43
    %p49 = scmp.eq.s32.totalorder %s30, 0
    %p50 = por %p48, %p49
    %p51 = scmp.ne.s32.totalorder %s40, %s43
    %p52 = scmp.eq.s32.totalorder %s35, 1
    %p53 = por %p51, %p52
    %p54 = scmp.ne.s32.totalorder %s43, %s44
    %p55 = scmp.eq.s32.totalorder %s35, 0
    %p56 = por %p54, %p55
    %p57 = scmp.ne.s32.totalorder %s43, %s44
    %p58 = scmp.eq.s32.totalorder %s36, 1
    %p59 = por %p57, %p58
    %p61 = scmp.ne.s32.totalorder %s44, %s60
    %p62 = scmp.eq.s32.totalorder %s36, 0
    %p63 = por %p61, %p62
    %s64 = ssub.s32 %s30, %s37
    %p65 = scmp.eq.s32.totalorder %s64, 0
    %s67 = sadd.s32 %s66, 1
    %s68 = scalar_select %p65, %s66, %s67
    %p71 = pneg %p65
    %p72 = scmp.eq.s32.totalorder %s30, 1
    %p73 = por %p71, %p72
    %p74 = scmp.ne.s32.totalorder %s66, %s69
    %p75 = scmp.eq.s32.totalorder %s30, 0
    %p76 = por %p74, %p75
    %p77 = scmp.ne.s32.totalorder %s66, %s69
    %p78 = scmp.eq.s32.totalorder %s35, 1
    %p79 = por %p77, %p78
    %p80 = scmp.ne.s32.totalorder %s69, %s70
    %p81 = scmp.eq.s32.totalorder %s35, 0
    %p82 = por %p80, %p81
    %p83 = scmp.ne.s32.totalorder %s69, %s70
    %p84 = scmp.eq.s32.totalorder %s36, 1
    %p85 = por %p83, %p84
    %p87 = scmp.ne.s32.totalorder %s70, %s86
    %p88 = scmp.eq.s32.totalorder %s36, 0
    %p89 = por %p87, %p88
    %s90 = ssub.s32 %s30, %s37
    %p91 = scmp.eq.s32.totalorder %s90, 0
    %s93 = sadd.s32 %s92, 1
    %s94 = scalar_select %p91, %s92, %s93
    %p97 = pneg %p91
    %p98 = scmp.eq.s32.totalorder %s30, 1
    %p99 = por %p97, %p98
    %p100 = scmp.ne.s32.totalorder %s92, %s95
    %p101 = scmp.eq.s32.totalorder %s30, 0
    %p102 = por %p100, %p101
    %p103 = scmp.ne.s32.totalorder %s92, %s95
    %p104 = scmp.eq.s32.totalorder %s35, 1
    %p105 = por %p103, %p104
    %p106 = scmp.ne.s32.totalorder %s95, %s96
    %p107 = scmp.eq.s32.totalorder %s35, 0
    %p108 = por %p106, %p107
    %p109 = scmp.ne.s32.totalorder %s95, %s96
    %p110 = scmp.eq.s32.totalorder %s36, 1
    %p111 = por %p109, %p110
    %p113 = scmp.ne.s32.totalorder %s96, %s112
    %p114 = scmp.eq.s32.totalorder %s36, 0
    %p115 = por %p113, %p114
    %s116 = ssub.s32 %s30, %s37
    %p117 = scmp.eq.s32.totalorder %s116, 0
    %s119 = sadd.s32 %s118, 1
    %s120 = scalar_select %p117, %s118, %s119
    %p123 = pneg %p117
    %p124 = scmp.eq.s32.totalorder %s30, 1
    %p125 = por %p123, %p124
    %p126 = scmp.ne.s32.totalorder %s118, %s121
    %p127 = scmp.eq.s32.totalorder %s30, 0
    %p128 = por %p126, %p127
    %p129 = scmp.ne.s32.totalorder %s118, %s121
    %p130 = scmp.eq.s32.totalorder %s35, 1
    %p131 = por %p129, %p130
    %p132 = scmp.ne.s32.totalorder %s121, %s122
    %p133 = scmp.eq.s32.totalorder %s35, 0
    %p134 = por %p132, %p133
    %p135 = scmp.ne.s32.totalorder %s121, %s122
    %p136 = scmp.eq.s32.totalorder %s36, 1
    %p137 = por %p135, %p136
    %p139 = scmp.ne.s32.totalorder %s122, %s138
    %p140 = scmp.eq.s32.totalorder %s36, 0
    %p141 = por %p139, %p140
    %s143 = sadd.s32 %s142, 1
    %p146 = scmp.eq.s32.totalorder %s30, 1
    %p147 = scmp.ne.s32.totalorder %s142, %s144
    %p148 = scmp.eq.s32.totalorder %s30, 0
    %p149 = por %p147, %p148
    %p150 = scmp.ne.s32.totalorder %s142, %s144
    %p151 = scmp.eq.s32.totalorder %s35, 1
    %p152 = por %p150, %p151
    %p153 = scmp.ne.s32.totalorder %s144, %s145
    %p154 = scmp.eq.s32.totalorder %s35, 0
    %p155 = por %p153, %p154
    %p156 = scmp.ne.s32.totalorder %s144, %s145
    %p157 = scmp.eq.s32.totalorder %s36, 1
    %p158 = por %p156, %p157
    %p160 = scmp.ne.s32.totalorder %s145, %s159
    %p161 = scmp.eq.s32.totalorder %s36, 0
    %p162 = por %p160, %p161
    %s164 = sadd.s32 %s163, 1
    %p167 = scmp.eq.s32.totalorder %s30, 1
    %p168 = scmp.ne.s32.totalorder %s163, %s165
    %p169 = scmp.eq.s32.totalorder %s30, 0
    %p170 = por %p168, %p169
    %p171 = scmp.ne.s32.totalorder %s163, %s165
    %p172 = scmp.eq.s32.totalorder %s35, 1
    %p173 = por %p171, %p172
    %p174 = scmp.ne.s32.totalorder %s165, %s166
    %p175 = scmp.eq.s32.totalorder %s35, 0
    %p176 = por %p174, %p175
    %p177 = scmp.ne.s32.totalorder %s165, %s166
    %p178 = scmp.eq.s32.totalorder %s36, 1
    %p179 = por %p177, %p178
    %p181 = scmp.ne.s32.totalorder %s166, %s180
    %p182 = scmp.eq.s32.totalorder %s36, 0
    %p183 = por %p181, %p182
    %s185 = sadd.s32 %s184, 1
    %p188 = scmp.eq.s32.totalorder %s30, 1
    %p189 = scmp.ne.s32.totalorder %s184, %s186
    %p190 = scmp.eq.s32.totalorder %s30, 0
    %p191 = por %p189, %p190
    %p192 = scmp.ne.s32.totalorder %s184, %s186
    %p193 = scmp.eq.s32.totalorder %s35, 1
    %p194 = por %p192, %p193
    %p195 = scmp.ne.s32.totalorder %s186, %s187
    %p196 = scmp.eq.s32.totalorder %s35, 0
    %p197 = por %p195, %p196
    %p198 = scmp.ne.s32.totalorder %s186, %s187
    %p199 = scmp.eq.s32.totalorder %s36, 1
    %p200 = por %p198, %p199
    %p202 = scmp.ne.s32.totalorder %s187, %s201
    %p203 = scmp.eq.s32.totalorder %s36, 0
    %p204 = por %p202, %p203
    %s206 = sadd.s32 %s205, 1
    %p209 = scmp.eq.s32.totalorder %s30, 1
    %p210 = scmp.ne.s32.totalorder %s205, %s207
    %p211 = scmp.eq.s32.totalorder %s30, 0
    %p212 = por %p210, %p211
    %p213 = scmp.ne.s32.totalorder %s205, %s207
    %p214 = scmp.eq.s32.totalorder %s35, 1
    %p215 = por %p213, %p214
    %p216 = scmp.ne.s32.totalorder %s207, %s208
    %p217 = scmp.eq.s32.totalorder %s35, 0
    %p218 = por %p216, %p217
    %p219 = scmp.ne.s32.totalorder %s207, %s208
    %p220 = scmp.eq.s32.totalorder %s36, 1
    %p221 = por %p219, %p220
    %p223 = scmp.ne.s32.totalorder %s208, %s222
    %p224 = scmp.eq.s32.totalorder %s36, 0
    %p225 = por %p223, %p224
    %s227 = sadd.s32 %s226, 1
    %p230 = scmp.eq.s32.totalorder %s30, 1
    %p231 = scmp.ne.s32.totalorder %s226, %s228
    %p232 = scmp.eq.s32.totalorder %s30, 0
    %p233 = por %p231, %p232
    %p234 = scmp.ne.s32.totalorder %s226, %s228
    %p235 = scmp.eq.s32.totalorder %s35, 1
    %p236 = por %p234, %p235
    %p237 = scmp.ne.s32.totalorder %s228, %s229
    %p238 = scmp.eq.s32.totalorder %s35, 0
    %p239 = por %p237, %p238
    %p240 = scmp.ne.s32.totalorder %s228, %s229
    %p241 = scmp.eq.s32.totalorder %s36, 1
    %p242 = por %p240, %p241
    %p244 = scmp.ne.s32.totalorder %s229, %s243
    %p245 = scmp.eq.s32.totalorder %s36, 0
    %p246 = por %p244, %p245
    %s248 = sadd.s32 %s247, 1
    %p251 = scmp.eq.s32.totalorder %s30, 1
    %p252 = scmp.ne.s32.totalorder %s247, %s249
    %p253 = scmp.eq.s32.totalorder %s30, 0
    %p254 = por %p252, %p253
    %p255 = scmp.ne.s32.totalorder %s247, %s249
    %p256 = scmp.eq.s32.totalorder %s35, 1
    %p257 = por %p255, %p256
    %p258 = scmp.ne.s32.totalorder %s249, %s250
    %p259 = scmp.eq.s32.totalorder %s35, 0
    %p260 = por %p258, %p259
    %p261 = scmp.ne.s32.totalorder %s249, %s250
    %p262 = scmp.eq.s32.totalorder %s36, 1
    %p263 = por %p261, %p262
    %p265 = scmp.ne.s32.totalorder %s250, %s264
    %p266 = scmp.eq.s32.totalorder %s36, 0
    %p267 = por %p265, %p266
    %s269 = sadd.s32 %s268, 1
    %p272 = scmp.eq.s32.totalorder %s30, 1
    %p273 = scmp.ne.s32.totalorder %s268, %s270
    %p274 = scmp.eq.s32.totalorder %s30, 0
    %p275 = por %p273, %p274
    %p276 = scmp.ne.s32.totalorder %s268, %s270
    %p277 = scmp.eq.s32.totalorder %s35, 1
    %p278 = por %p276, %p277
    %p279 = scmp.ne.s32.totalorder %s270, %s271
    %p280 = scmp.eq.s32.totalorder %s35, 0
    %p281 = por %p279, %p280
    %p282 = scmp.ne.s32.totalorder %s270, %s271
    %p283 = scmp.eq.s32.totalorder %s36, 1
    %p284 = por %p282, %p283
    %p286 = scmp.ne.s32.totalorder %s271, %s285
    %p287 = scmp.eq.s32.totalorder %s36, 0
    %p288 = por %p286, %p287
    %s290 = sadd.s32 %s289, 1
    %p293 = scmp.eq.s32.totalorder %s30, 1
    %p294 = scmp.ne.s32.totalorder %s289, %s291
    %p295 = scmp.eq.s32.totalorder %s30, 0
    %p296 = por %p294, %p295
    %p297 = scmp.ne.s32.totalorder %s289, %s291
    %p298 = scmp.eq.s32.totalorder %s35, 1
    %p299 = por %p297, %p298
    %p300 = scmp.ne.s32.totalorder %s291, %s292
    %p301 = scmp.eq.s32.totalorder %s35, 0
    %p302 = por %p300, %p301
    %p303 = scmp.ne.s32.totalorder %s291, %s292
    %p304 = scmp.eq.s32.totalorder %s36, 1
    %p305 = por %p303, %p304
    %p307 = scmp.ne.s32.totalorder %s292, %s306
    %p308 = scmp.eq.s32.totalorder %s36, 0
    %p309 = por %p307, %p308
    %s311 = sadd.s32 %s310, 1
    %p314 = scmp.eq.s32.totalorder %s30, 1
    %p315 = scmp.ne.s32.totalorder %s310, %s312
    %p316 = scmp.eq.s32.totalorder %s30, 0
    %p317 = por %p315, %p316
    %p318 = scmp.ne.s32.totalorder %s310, %s312
    %p319 = scmp.eq.s32.totalorder %s35, 1
    %p320 = por %p318, %p319
    %p321 = scmp.ne.s32.totalorder %s312, %s313
    %p322 = scmp.eq.s32.totalorder %s35, 0
    %p323 = por %p321, %p322
    %p324 = scmp.ne.s32.totalorder %s312, %s313
    %p325 = scmp.eq.s32.totalorder %s36, 1
    %p326 = por %p324, %p325
    %p328 = scmp.ne.s32.totalorder %s313, %s327
    %p329 = scmp.eq.s32.totalorder %s36, 0
    %p330 = por %p328, %p329
    %s332 = sadd.s32 %s331, 1
    %p335 = scmp.eq.s32.totalorder %s30, 1
    %p336 = scmp.ne.s32.totalorder %s331, %s333
    %p337 = scmp.eq.s32.totalorder %s30, 0
    %p338 = por %p336, %p337
    %p339 = scmp.ne.s32.totalorder %s331, %s333
    %p340 = scmp.eq.s32.totalorder %s35, 1
    %p341 = por %p339, %p340
    %p342 = scmp.ne.s32.totalorder %s333, %s334
    %p343 = scmp.eq.s32.totalorder %s35, 0
    %p344 = por %p342, %p343
    %p345 = scmp.ne.s32.totalorder %s333, %s334
    %p346 = scmp.eq.s32.totalorder %s36, 1
    %p347 = por %p345, %p346
    %p349 = scmp.ne.s32.totalorder %s334, %s348
    %p350 = scmp.eq.s32.totalorder %s36, 0
    %p351 = por %p349, %p350
    %s353 = sadd.s32 %s352, 1
    %p356 = scmp.eq.s32.totalorder %s30, 1
    %p357 = scmp.ne.s32.totalorder %s352, %s354
    %p358 = scmp.eq.s32.totalorder %s30, 0
    %p359 = por %p357, %p358
    %p360 = scmp.ne.s32.totalorder %s352, %s354
    %p361 = scmp.eq.s32.totalorder %s35, 1
    %p362 = por %p360, %p361
    %p363 = scmp.ne.s32.totalorder %s354, %s355
    %p364 = scmp.eq.s32.totalorder %s35, 0
    %p365 = por %p363, %p364
    %p366 = scmp.ne.s32.totalorder %s354, %s355
    %p367 = scmp.eq.s32.totalorder %s36, 1
    %p368 = por %p366, %p367
    %p370 = scmp.ne.s32.totalorder %s355, %s369
    %p371 = scmp.eq.s32.totalorder %s36, 0
    %p372 = por %p370, %p371
    %s374 = sadd.s32 %s373, 1
    %p377 = scmp.eq.s32.totalorder %s30, 1
    %p378 = scmp.ne.s32.totalorder %s373, %s375
    %p379 = scmp.eq.s32.totalorder %s30, 0
    %p380 = por %p378, %p379
    %p381 = scmp.ne.s32.totalorder %s373, %s375
    %p382 = scmp.eq.s32.totalorder %s35, 1
    %p383 = por %p381, %p382
    %p384 = scmp.ne.s32.totalorder %s375, %s376
    %p385 = scmp.eq.s32.totalorder %s35, 0
    %p386 = por %p384, %p385
    %p387 = scmp.ne.s32.totalorder %s375, %s376
    %p388 = scmp.eq.s32.totalorder %s36, 1
    %p389 = por %p387, %p388
    %p391 = scmp.ne.s32.totalorder %s376, %s390
    %p392 = scmp.eq.s32.totalorder %s36, 0
    %p393 = por %p391, %p392
    %s395 = sadd.s32 %s394, 1
    %p398 = scmp.eq.s32.totalorder %s30, 1
    %p399 = scmp.ne.s32.totalorder %s394, %s396
    %p400 = scmp.eq.s32.totalorder %s30, 0
    %p401 = por %p399, %p400
    %p402 = scmp.ne.s32.totalorder %s394, %s396
    %p403 = scmp.eq.s32.totalorder %s35, 1
    %p404 = por %p402, %p403
    %p405 = scmp.ne.s32.totalorder %s396, %s397
    %p406 = scmp.eq.s32.totalorder %s35, 0
    %p407 = por %p405, %p406
    %p408 = scmp.ne.s32.totalorder %s396, %s397
    %p409 = scmp.eq.s32.totalorder %s36, 1
    %p410 = por %p408, %p409
    %p412 = scmp.ne.s32.totalorder %s397, %s411
    %p413 = scmp.eq.s32.totalorder %s36, 0
    %p414 = por %p412, %p413
    %s416 = sadd.s32 %s415, 1
    %p419 = scmp.eq.s32.totalorder %s30, 1
    %p420 = scmp.ne.s32.totalorder %s415, %s417
    %p421 = scmp.eq.s32.totalorder %s30, 0
    %p422 = por %p420, %p421
    %p423 = scmp.ne.s32.totalorder %s415, %s417
    %p424 = scmp.eq.s32.totalorder %s35, 1
    %p425 = por %p423, %p424
    %p426 = scmp.ne.s32.totalorder %s417, %s418
    %p427 = scmp.eq.s32.totalorder %s35, 0
    %p428 = por %p426, %p427
    %p429 = scmp.ne.s32.totalorder %s417, %s418
    %p430 = scmp.eq.s32.totalorder %s36, 1
    %p431 = por %p429, %p430
    %p433 = scmp.ne.s32.totalorder %s418, %s432
    %p434 = scmp.eq.s32.totalorder %s36, 0
    %p435 = por %p433, %p434
    %s437 = sadd.s32 %s436, 1
    %p440 = scmp.eq.s32.totalorder %s30, 1
    %p441 = scmp.ne.s32.totalorder %s436, %s438
    %p442 = scmp.eq.s32.totalorder %s30, 0
    %p443 = por %p441, %p442
    %p444 = scmp.ne.s32.totalorder %s436, %s438
    %p445 = scmp.eq.s32.totalorder %s35, 1
    %p446 = por %p444, %p445
    %p447 = scmp.ne.s32.totalorder %s438, %s439
    %p448 = scmp.eq.s32.totalorder %s35, 0
    %p449 = por %p447, %p448
    %p450 = scmp.ne.s32.totalorder %s438, %s439
    %p451 = scmp.eq.s32.totalorder %s36, 1
    %p452 = por %p450, %p451
    %p454 = scmp.ne.s32.totalorder %s439, %s453
    %p455 = scmp.eq.s32.totalorder %s36, 0
    %p456 = por %p454, %p455
    %s458 = sadd.s32 %s457, 1
    %p461 = scmp.eq.s32.totalorder %s30, 1
    %p462 = scmp.ne.s32.totalorder %s457, %s459
    %p463 = scmp.eq.s32.totalorder %s30, 0
    %p464 = por %p462, %p463
    %p465 = scmp.ne.s32.totalorder %s457, %s459
    %p466 = scmp.eq.s32.totalorder %s35, 1
    %p467 = por %p465, %p466
    %p468 = scmp.ne.s32.totalorder %s459, %s460
    %p469 = scmp.eq.s32.totalorder %s35, 0
    %p470 = por %p468, %p469
    %p471 = scmp.ne.s32.totalorder %s459, %s460
    %p472 = scmp.eq.s32.totalorder %s36, 1
    %p473 = por %p471, %p472
    %p475 = scmp.ne.s32.totalorder %s460, %s474
    %p476 = scmp.eq.s32.totalorder %s36, 0
    %p477 = por %p475, %p476
    %s479 = sadd.s32 %s478, 1
    %p482 = scmp.eq.s32.totalorder %s30, 1
    %p483 = scmp.ne.s32.totalorder %s478, %s480
    %p484 = scmp.eq.s32.totalorder %s30, 0
    %p485 = por %p483, %p484
    %p486 = scmp.ne.s32.totalorder %s478, %s480
    %p487 = scmp.eq.s32.totalorder %s35, 1
    %p488 = por %p486, %p487
    %p489 = scmp.ne.s32.totalorder %s480, %s481
    %p490 = scmp.eq.s32.totalorder %s35, 0
    %p491 = por %p489, %p490
    %p492 = scmp.ne.s32.totalorder %s480, %s481
    %p493 = scmp.eq.s32.totalorder %s36, 1
    %p494 = por %p492, %p493
    %p496 = scmp.ne.s32.totalorder %s481, %s495
    %p497 = scmp.eq.s32.totalorder %s36, 0
    %p498 = por %p496, %p497
    %s500 = sadd.s32 %s499, 1
    %p503 = scmp.eq.s32.totalorder %s30, 1
    %p504 = scmp.ne.s32.totalorder %s499, %s501
    %p505 = scmp.eq.s32.totalorder %s30, 0
    %p506 = por %p504, %p505
    %p507 = scmp.ne.s32.totalorder %s499, %s501
    %p508 = scmp.eq.s32.totalorder %s35, 1
    %p509 = por %p507, %p508
    %p510 = scmp.ne.s32.totalorder %s501, %s502
    %p511 = scmp.eq.s32.totalorder %s35, 0
    %p512 = por %p510, %p511
    %p513 = scmp.ne.s32.totalorder %s501, %s502
    %p514 = scmp.eq.s32.totalorder %s36, 1
    %p515 = por %p513, %p514
    %p517 = scmp.ne.s32.totalorder %s502, %s516
    %p518 = scmp.eq.s32.totalorder %s36, 0
    %p519 = por %p517, %p518
    %s520 = ssub.s32 %s30, %s37
    %p521 = scmp.eq.s32.totalorder %s520, 0
    %s523 = sadd.s32 %s522, 1
    %s524 = scalar_select %p521, %s522, %s523
    %p527 = pneg %p521
    %p528 = scmp.eq.s32.totalorder %s30, 1
    %p529 = por %p527, %p528
    %p530 = scmp.ne.s32.totalorder %s522, %s525
    %p531 = scmp.eq.s32.totalorder %s30, 0
    %p532 = por %p530, %p531
    %p533 = scmp.ne.s32.totalorder %s522, %s525
    %p534 = scmp.eq.s32.totalorder %s35, 1
    %p535 = por %p533, %p534
    %p536 = scmp.ne.s32.totalorder %s525, %s526
    %p537 = scmp.eq.s32.totalorder %s35, 0
    %p538 = por %p536, %p537
    %p539 = scmp.ne.s32.totalorder %s525, %s526
    %p540 = scmp.eq.s32.totalorder %s36, 1
    %p541 = por %p539, %p540
    %p543 = scmp.ne.s32.totalorder %s526, %s542
    %p544 = scmp.eq.s32.totalorder %s36, 0
    %p545 = por %p543, %p544
    %s546 = ssub.s32 %s30, %s37
    %p547 = scmp.eq.s32.totalorder %s546, 0
    %s549 = sadd.s32 %s548, 1
    %s550 = scalar_select %p547, %s548, %s549
    %p553 = pneg %p547
    %p554 = scmp.eq.s32.totalorder %s30, 1
    %p555 = por %p553, %p554
    %p556 = scmp.ne.s32.totalorder %s548, %s551
    %p557 = scmp.eq.s32.totalorder %s30, 0
    %p558 = por %p556, %p557
    %p559 = scmp.ne.s32.totalorder %s548, %s551
    %p560 = scmp.eq.s32.totalorder %s35, 1
    %p561 = por %p559, %p560
    %p562 = scmp.ne.s32.totalorder %s551, %s552
    %p563 = scmp.eq.s32.totalorder %s35, 0
    %p564 = por %p562, %p563
    %p565 = scmp.ne.s32.totalorder %s551, %s552
    %p566 = scmp.eq.s32.totalorder %s36, 1
    %p567 = por %p565, %p566
    %p569 = scmp.ne.s32.totalorder %s552, %s568
    %p570 = scmp.eq.s32.totalorder %s36, 0
    %p571 = por %p569, %p570
    %p572 = scmp.le.s32.totalorder 1, %s30
    %p573 = scmp.lt.s32.totalorder %s30, 3
    %p574 = pnand %p572, %p573
    %p575 = pneg %p574
    // Predicated region
    $region9: #{tpu_custom_call.1} parent=5 // pred_check
      _
    $region10: #{tpu_custom_call.1} parent=5 // pred_check_branch
      %577 = sbr.rel (%p574) target = $region12
    $region11: #{tpu_custom_call.1} parent=5 // pred_region
      %s578 = ssub.s32 %s30, 1
      // Predicated region
      $region13: #{tpu_custom_call.1} parent=11 // pred_check
        %p579 = pneg %p155
      $region14: #{tpu_custom_call.1} parent=11 // pred_check_branch
        %581 = sbr.rel (%p579) target = $region16
      $region15: #{tpu_custom_call.1} parent=11 // pred_region
        _
      $region16: #{tpu_custom_call.1} parent=11 // pred_fallthru
        _
      // Predicated region
      $region17: #{tpu_custom_call.1} parent=11 // pred_check
        %p582 = pneg %p176
      $region18: #{tpu_custom_call.1} parent=11 // pred_check_branch
        %584 = sbr.rel (%p582) target = $region20
      $region19: #{tpu_custom_call.1} parent=11 // pred_region
        _
      $region20: #{tpu_custom_call.1} parent=11 // pred_fallthru
        _
      // Predicated region
      $region21: #{tpu_custom_call.1} parent=11 // pred_check
        %p585 = pneg %p197
      $region22: #{tpu_custom_call.1} parent=11 // pred_check_branch
        %587 = sbr.rel (%p585) target = $region24
      $region23: #{tpu_custom_call.1} parent=11 // pred_region
        _
      $region24: #{tpu_custom_call.1} parent=11 // pred_fallthru
        _
      // Predicated region
      $region25: #{tpu_custom_call.1} parent=11 // pred_check
        %p588 = pneg %p218
      $region26: #{tpu_custom_call.1} parent=11 // pred_check_branch
        %590 = sbr.rel (%p588) target = $region28
      $region27: #{tpu_custom_call.1} parent=11 // pred_region
        _
      $region28: #{tpu_custom_call.1} parent=11 // pred_fallthru
        _
      // Predicated region
      $region29: #{tpu_custom_call.1} parent=11 // pred_check
        %p591 = pneg %p239
      $region30: #{tpu_custom_call.1} parent=11 // pred_check_branch
        %593 = sbr.rel (%p591) target = $region32
      $region31: #{tpu_custom_call.1} parent=11 // pred_region
        _
      $region32: #{tpu_custom_call.1} parent=11 // pred_fallthru
        _
      // Predicated region
      $region33: #{tpu_custom_call.1} parent=11 // pred_check
        %p594 = pneg %p260
      $region34: #{tpu_custom_call.1} parent=11 // pred_check_branch
        %596 = sbr.rel (%p594) target = $region36
      $region35: #{tpu_custom_call.1} parent=11 // pred_region
        _
      $region36: #{tpu_custom_call.1} parent=11 // pred_fallthru
        _
      // Predicated region
      $region37: #{tpu_custom_call.1} parent=11 // pred_check
        %p597 = pneg %p281
      $region38: #{tpu_custom_call.1} parent=11 // pred_check_branch
        %599 = sbr.rel (%p597) target = $region40
      $region39: #{tpu_custom_call.1} parent=11 // pred_region
        _
      $region40: #{tpu_custom_call.1} parent=11 // pred_fallthru
        _
      // Predicated region
      $region41: #{tpu_custom_call.1} parent=11 // pred_check
        %p600 = pneg %p302
      $region42: #{tpu_custom_call.1} parent=11 // pred_check_branch
        %602 = sbr.rel (%p600) target = $region44
      $region43: #{tpu_custom_call.1} parent=11 // pred_region
        _
      $region44: #{tpu_custom_call.1} parent=11 // pred_fallthru
        _
      // Predicated region
      $region45: #{tpu_custom_call.1} parent=11 // pred_check
        %p603 = pneg %p323
      $region46: #{tpu_custom_call.1} parent=11 // pred_check_branch
        %605 = sbr.rel (%p603) target = $region48
      $region47: #{tpu_custom_call.1} parent=11 // pred_region
        _
      $region48: #{tpu_custom_call.1} parent=11 // pred_fallthru
        _
      // Predicated region
      $region49: #{tpu_custom_call.1} parent=11 // pred_check
        %p606 = pneg %p344
      $region50: #{tpu_custom_call.1} parent=11 // pred_check_branch
        %608 = sbr.rel (%p606) target = $region52
      $region51: #{tpu_custom_call.1} parent=11 // pred_region
        _
      $region52: #{tpu_custom_call.1} parent=11 // pred_fallthru
        _
      // Predicated region
      $region53: #{tpu_custom_call.1} parent=11 // pred_check
        %p609 = pneg %p365
      $region54: #{tpu_custom_call.1} parent=11 // pred_check_branch
        %611 = sbr.rel (%p609) target = $region56
      $region55: #{tpu_custom_call.1} parent=11 // pred_region
        _
      $region56: #{tpu_custom_call.1} parent=11 // pred_fallthru
        _
      // Predicated region
      $region57: #{tpu_custom_call.1} parent=11 // pred_check
        %p612 = pneg %p386
      $region58: #{tpu_custom_call.1} parent=11 // pred_check_branch
        %614 = sbr.rel (%p612) target = $region60
      $region59: #{tpu_custom_call.1} parent=11 // pred_region
        _
      $region60: #{tpu_custom_call.1} parent=11 // pred_fallthru
        _
      // Predicated region
      $region61: #{tpu_custom_call.1} parent=11 // pred_check
        %p615 = pneg %p407
      $region62: #{tpu_custom_call.1} parent=11 // pred_check_branch
        %617 = sbr.rel (%p615) target = $region64
      $region63: #{tpu_custom_call.1} parent=11 // pred_region
        _
      $region64: #{tpu_custom_call.1} parent=11 // pred_fallthru
        _
      // Predicated region
      $region65: #{tpu_custom_call.1} parent=11 // pred_check
        %p618 = pneg %p428
      $region66: #{tpu_custom_call.1} parent=11 // pred_check_branch
        %620 = sbr.rel (%p618) target = $region68
      $region67: #{tpu_custom_call.1} parent=11 // pred_region
        _
      $region68: #{tpu_custom_call.1} parent=11 // pred_fallthru
        _
      // Predicated region
      $region69: #{tpu_custom_call.1} parent=11 // pred_check
        %p621 = pneg %p449
      $region70: #{tpu_custom_call.1} parent=11 // pred_check_branch
        %623 = sbr.rel (%p621) target = $region72
      $region71: #{tpu_custom_call.1} parent=11 // pred_region
        _
      $region72: #{tpu_custom_call.1} parent=11 // pred_fallthru
        _
      // Predicated region
      $region73: #{tpu_custom_call.1} parent=11 // pred_check
        %p624 = pneg %p470
      $region74: #{tpu_custom_call.1} parent=11 // pred_check_branch
        %626 = sbr.rel (%p624) target = $region76
      $region75: #{tpu_custom_call.1} parent=11 // pred_region
        _
      $region76: #{tpu_custom_call.1} parent=11 // pred_fallthru
        _
      // Predicated region
      $region77: #{tpu_custom_call.1} parent=11 // pred_check
        %p627 = pneg %p491
      $region78: #{tpu_custom_call.1} parent=11 // pred_check_branch
        %629 = sbr.rel (%p627) target = $region80
      $region79: #{tpu_custom_call.1} parent=11 // pred_region
        _
      $region80: #{tpu_custom_call.1} parent=11 // pred_fallthru
        _
      // Predicated region
      $region81: #{tpu_custom_call.1} parent=11 // pred_check
        %p630 = pneg %p512
      $region82: #{tpu_custom_call.1} parent=11 // pred_check_branch
        %632 = sbr.rel (%p630) target = $region84
      $region83: #{tpu_custom_call.1} parent=11 // pred_region
        _
      $region84: #{tpu_custom_call.1} parent=11 // pred_fallthru
        _
    $region12: #{tpu_custom_call.1} parent=5 // pred_fallthru
      _
    %p633 = scmp.lt.s32.totalorder %s30, 2
    // Predicated region
    $region85: #{tpu_custom_call.1} parent=5 // pred_check
      %p634 = pneg %p633
    $region86: #{tpu_custom_call.1} parent=5 // pred_check_branch
      %636 = sbr.rel (%p634) target = $region88
    $region87: #{tpu_custom_call.1} parent=5 // pred_region
      // Predicated region
      $region89: #{tpu_custom_call.1} parent=87 // pred_check
        %p637 = pneg %p50
      $region90: #{tpu_custom_call.1} parent=87 // pred_check_branch
        %639 = sbr.rel (%p637) target = $region92
      $region91: #{tpu_custom_call.1} parent=87 // pred_region
        %p640 = scmp.lt.s32.totalorder %s30, 1
        %s641 = scalar_select %p640, %s30, 1
        %s642 = smul.addr %s641, 2
        %s643 = smul.addr %s642, 4
        %s644 = scalar_lea.vmem %s0, %s643
      $region92: #{tpu_custom_call.1} parent=87 // pred_fallthru
        _
      // Predicated region
      $region93: #{tpu_custom_call.1} parent=87 // pred_check
        %p645 = pneg %p76
      $region94: #{tpu_custom_call.1} parent=87 // pred_check_branch
        %647 = sbr.rel (%p645) target = $region96
      $region95: #{tpu_custom_call.1} parent=87 // pred_region
        %p648 = scmp.lt.s32.totalorder %s30, 1
        %s649 = scalar_select %p648, %s30, 1
        %s650 = smul.addr %s649, 2
        %s651 = smul.addr %s650, 4
        %s652 = scalar_lea.vmem %s1, %s651
      $region96: #{tpu_custom_call.1} parent=87 // pred_fallthru
        _
      // Predicated region
      $region97: #{tpu_custom_call.1} parent=87 // pred_check
        %p653 = pneg %p102
      $region98: #{tpu_custom_call.1} parent=87 // pred_check_branch
        %655 = sbr.rel (%p653) target = $region100
      $region99: #{tpu_custom_call.1} parent=87 // pred_region
        %p656 = scmp.lt.s32.totalorder %s30, 1
        %s657 = scalar_select %p656, %s30, 1
        %s658 = scalar_lea.vmem %s2, %s657
      $region100: #{tpu_custom_call.1} parent=87 // pred_fallthru
        _
      // Predicated region
      $region101: #{tpu_custom_call.1} parent=87 // pred_check
        %p659 = pneg %p128
      $region102: #{tpu_custom_call.1} parent=87 // pred_check_branch
        %661 = sbr.rel (%p659) target = $region104
      $region103: #{tpu_custom_call.1} parent=87 // pred_region
        %p662 = scmp.lt.s32.totalorder %s30, 1
        %s663 = scalar_select %p662, %s30, 1
        %s664 = smul.addr %s663, 2
        %s665 = smul.addr %s664, 8
        %s666 = scalar_lea.vmem %s3, %s665
      $region104: #{tpu_custom_call.1} parent=87 // pred_fallthru
        _
    $region88: #{tpu_custom_call.1} parent=5 // pred_fallthru
      _
    %p667 = scmp.le.s32.totalorder 1, %s30
    %p668 = scmp.lt.s32.totalorder %s30, 3
    %p669 = pnand %p667, %p668
    %p670 = pneg %p669
    // Predicated region
    $region105: #{tpu_custom_call.1} parent=5 // pred_check
      _
    $region106: #{tpu_custom_call.1} parent=5 // pred_check_branch
      %672 = sbr.rel (%p669) target = $region108
    $region107: #{tpu_custom_call.1} parent=5 // pred_region
      %s673 = ssub.s32 %s30, 1
      %p674 = scmp.lt.s32.totalorder %s35, 1
      %s675 = scalar_select %p674, %s35, 1
      %s676 = smul.addr %s675, 2
      %s677 = smul.addr %s676, 4
      %s678 = scalar_lea.vmem %s0, %s677
      %p679 = pneg %p56
      %p680 = pneg %p53
      %p681 = scmp.lt.s32.totalorder %s35, 1
      %s682 = scalar_select %p681, %s35, 1
      %s683 = smul.addr %s682, 2
      %s684 = smul.addr %s683, 4
      %s685 = scalar_lea.vmem %s1, %s684
      %p686 = pneg %p82
      %p687 = pneg %p79
      %p688 = scmp.lt.s32.totalorder %s35, 1
      %s689 = scalar_select %p688, %s35, 1
      %s690 = scalar_lea.vmem %s2, %s689
      %p691 = pneg %p108
      %p692 = pneg %p105
      %p693 = scmp.lt.s32.totalorder %s35, 1
      %s694 = scalar_select %p693, %s35, 1
      %s695 = smul.addr %s694, 2
      %s696 = smul.addr %s695, 8
      %s697 = scalar_lea.vmem %s3, %s696
      %p698 = pneg %p134
      %p699 = pneg %p131
      %p700 = pneg %p155
      %p701 = pneg %p152
      %p702 = pneg %p176
      %p703 = pneg %p173
      %p704 = pneg %p197
      %p705 = pneg %p194
      %p706 = pneg %p218
      %p707 = pneg %p215
      %p708 = pneg %p239
      %p709 = pneg %p236
      %p710 = pneg %p260
      %p711 = pneg %p257
      %p712 = pneg %p281
      %p713 = pneg %p278
      %p714 = pneg %p302
      %p715 = pneg %p299
      %p716 = pneg %p323
      %p717 = pneg %p320
      %p718 = pneg %p344
      %p719 = pneg %p341
      %p720 = pneg %p365
      %p721 = pneg %p362
      %p722 = pneg %p386
      %p723 = pneg %p383
      %p724 = pneg %p407
      %p725 = pneg %p404
      %p726 = pneg %p428
      %p727 = pneg %p425
      %p728 = pneg %p449
      %p729 = pneg %p446
      %p730 = pneg %p470
      %p731 = pneg %p467
      %p732 = pneg %p491
      %p733 = pneg %p488
      %p734 = pneg %p512
      %p735 = pneg %p509
      %p736 = pneg %p538
      %p737 = pneg %p535
      %p738 = scmp.lt.s32.totalorder %s35, 1
      %s739 = scalar_select %p738, %s35, 1
      %s740 = smul.addr %s739, 2
      %s741 = smul.addr %s740, 8
      %s742 = scalar_lea.vmem %s22, %s741
      %p743 = pneg %p564
      %p744 = pneg %p561
      %p745 = scmp.lt.s32.totalorder %s35, 1
      %s746 = scalar_select %p745, %s35, 1
      %s747 = smul.addr %s746, 2
      %s748 = smul.addr %s747, 8
      %s749 = scalar_lea.vmem %s23, %s748
      %p750 = scmp.lt.s32.totalorder %s35, 1
      %s751 = scalar_select %p750, %s35, 1
      %s752 = smul.addr %s751, 2
      %s753 = smul.addr %s752, 4
      %s754 = scalar_lea.vmem %s0, %s753
      %p755 = scmp.lt.s32.totalorder %s35, 1
      %s756 = scalar_select %p755, %s35, 1
      %s757 = smul.addr %s756, 2
      %s758 = smul.addr %s757, 4
      %s759 = scalar_lea.vmem %s1, %s758
      %p760 = scmp.lt.s32.totalorder %s35, 1
      %s761 = scalar_select %p760, %s35, 1
      %s762 = scalar_lea.vmem %s2, %s761
      %p763 = scmp.lt.s32.totalorder %s35, 1
      %s764 = scalar_select %p763, %s35, 1
      %s765 = smul.addr %s764, 2
      %s766 = smul.addr %s765, 8
      %s767 = scalar_lea.vmem %s3, %s766
      %p768 = scmp.lt.s32.totalorder %s35, 1
      %s769 = scalar_select %p768, %s35, 1
      %s770 = smul.addr %s769, 2
      %s771 = smul.addr %s770, 8
      %s772 = scalar_lea.vmem %s22, %s771
      %p773 = scmp.lt.s32.totalorder %s35, 1
      %s774 = scalar_select %p773, %s35, 1
      %s775 = smul.addr %s774, 2
      %s776 = smul.addr %s775, 8
      %s777 = scalar_lea.vmem %s23, %s776
      %v779 = vld [vmem:[%s754] sm:$0xf]
      %v780 = vld [vmem:[%s754 + $0x4] sm:$0xf]
      %v781 = vld [vmem:[%s759] sm:$0xf]
      %v782 = vld [vmem:[%s759 + $0x4] sm:$0xf]
      %v783 = vunpack.c.l.bf16 %v781
      %v784 = vunpack.c.l.bf16 %v782
      %v785 = vld [vmem:[%s762] sm:$0x1]
      %v786 = vunpack.c.l.bf16 %v785
      %788 = vset.pattern.permute.xlu0 0
      %789 = vperm.xlu0 %788, %v783
      %v790 = vpop.permute.xlu0 %789
      %793 = vset.pattern.permute.xlu0 0
      %794 = vperm.xlu0 %793, %v784
      %v795 = vpop.permute.xlu0 %794
      %v797 = vlaneseq
      %v798 = vshrl.u32 %v797, 7
      %v799 = vsub.s32 0, %v798
      %v800 = vrot.slane %v786, %v799
      %v801 = vmul.f32 %v790, %v800
      %v802 = vmul.f32 %v795, %v800
      %vm803 = vcmp.eq.f32.partialorder %v801, 0.0
      %vm804 = vcmp.eq.f32.partialorder %v802, 0.0
      %v805 = vlaneseq
      %v806 = vand.u32 %v805, 127
      %v807 = vlaneseq
      %v808 = vshrl.u32 %v807, 7
      %v809 = vadd.s32 %v808, 8
      %v810 = vsub.s32 %v806, %v808
      %v811 = vsub.s32 %v806, %v809
      %vm812 = vcmp.eq.s32.totalorder %v810, 4294967292
      %vm813 = vcmp.eq.s32.totalorder %v811, 4294967292
      %v814 = vsel %vm812, 1, 0
      %v815 = vsel %vm813, 1, 0
      %v816 = vcvt.s32.f32 %v814
      %v817 = vcvt.s32.f32 %v815
      %vm818 = vcmp.eq.s32.totalorder %v810, 4294967293
      %vm819 = vcmp.eq.s32.totalorder %v811, 4294967293
      %v820 = vsel %vm818, 1, 0
      %v821 = vsel %vm819, 1, 0
      %v822 = vcvt.s32.f32 %v820
      %v823 = vcvt.s32.f32 %v821
      %vm824 = vcmp.eq.s32.totalorder %v810, 4294967294
      %vm825 = vcmp.eq.s32.totalorder %v811, 4294967294
      %v826 = vsel %vm824, 1, 0
      %v827 = vsel %vm825, 1, 0
      %v828 = vcvt.s32.f32 %v826
      %v829 = vcvt.s32.f32 %v827
      %vm830 = vcmp.eq.s32.totalorder %v810, 4294967295
      %vm831 = vcmp.eq.s32.totalorder %v811, 4294967295
      %v832 = vsel %vm830, 1, 0
      %v833 = vsel %vm831, 1, 0
      %v834 = vcvt.s32.f32 %v832
      %v835 = vcvt.s32.f32 %v833
      %vm836 = vcmp.eq.s32.totalorder %v810, 0
      %vm837 = vcmp.eq.s32.totalorder %v811, 0
      %v838 = vsel %vm836, 1, 0
      %v839 = vsel %vm837, 1, 0
      %v840 = vcvt.s32.f32 %v838
      %v841 = vcvt.s32.f32 %v839
      %vm842 = vcmp.eq.s32.totalorder %v810, 1
      %vm843 = vcmp.eq.s32.totalorder %v811, 1
      %v844 = vsel %vm842, 1, 0
      %v845 = vsel %vm843, 1, 0
      %v846 = vcvt.s32.f32 %v844
      %v847 = vcvt.s32.f32 %v845
      %vm848 = vcmp.eq.s32.totalorder %v810, 2
      %vm849 = vcmp.eq.s32.totalorder %v811, 2
      %v850 = vsel %vm848, 1, 0
      %v851 = vsel %vm849, 1, 0
      %v852 = vcvt.s32.f32 %v850
      %v853 = vcvt.s32.f32 %v851
      %vm854 = vcmp.eq.s32.totalorder %v810, 3
      %vm855 = vcmp.eq.s32.totalorder %v811, 3
      %v856 = vsel %vm854, 1, 0
      %v857 = vsel %vm855, 1, 0
      %v858 = vcvt.s32.f32 %v856
      %v859 = vcvt.s32.f32 %v857
      %vm860 = vcmp.eq.s32.totalorder %v810, 4
      %vm861 = vcmp.eq.s32.totalorder %v811, 4
      %v862 = vsel %vm860, 1, 0
      %v863 = vsel %vm861, 1, 0
      %v864 = vcvt.s32.f32 %v862
      %v865 = vcvt.s32.f32 %v863
      %v866 = vld [vmem:[%s4] sm:$0xf]
      %v867 = vld [vmem:[%s5] sm:$0x1]
      %v869 = vlaneseq
      %v870 = vshrl.u32 %v869, 7
      %v871 = vsub.s32 0, %v870
      %v872 = vrot.slane %v867, %v871
      %v876 = vunpack.c.l.b16 %v779
      %v877 = vunpack.c.l.b16 %v780
      %v878 = vpack.c.b16 %v877, %v876
      %vm879 = vcmask 64512
      %v881 = vsel %vm879, %v878, 0
      %vm883 = vcmask 1043456
      %v885 = vsel %vm883, %v866, 0
      %887 = vmatprep.subr.bf16.mxu0 0
      %888 = vmatpush1.bf16.msra.mxu0 %v885
      %889 = vmatprep.subr.bf16.mxu0 0
      %890 = vmatpush1.bf16.msra.mxu0 0
      %891 = vmatprep.subr.bf16.mxu0 0
      %892 = vmatpush1.bf16.msra.mxu0 0
      %893 = vmatprep.subr.bf16.mxu0 0
      %894 = vmatpush1.bf16.msra.mxu0 0
      %895 = vmatprep.subr.bf16.mxu0 0
      %896 = vmatpush1.bf16.msra.mxu0 0
      %897 = vmatprep.subr.bf16.mxu0 0
      %898 = vmatpush1.bf16.msra.mxu0 0
      %899 = vmatprep.subr.bf16.mxu0 0
      %900 = vmatpush1.bf16.msra.mxu0 0
      %901 = vmatprep.subr.bf16.mxu0 0
      %902 = vmatpush1.bf16.msra.mxu0 0
      %903 = vmatprep.subr.bf16.mxu0 0
      %904 = vmatpush1.bf16.msra.mxu0 0
      %905 = vmatprep.subr.bf16.mxu0 0
      %906 = vmatpush1.bf16.msra.mxu0 0
      %907 = vmatprep.subr.bf16.mxu0 0
      %908 = vmatpush1.bf16.msra.mxu0 0
      %909 = vmatprep.subr.bf16.mxu0 0
      %910 = vmatpush1.bf16.msra.mxu0 0
      %911 = vmatprep.subr.bf16.mxu0 0
      %912 = vmatpush1.bf16.msra.mxu0 0
      %913 = vmatprep.subr.bf16.mxu0 0
      %914 = vmatpush1.bf16.msra.mxu0 0
      %915 = vmatprep.subr.bf16.mxu0 0
      %916 = vmatpush1.bf16.msra.mxu0 0
      %917 = vmatprep.subr.bf16.mxu0 0
      %918 = vmatpush1.bf16.msra.mxu0 0
      %919 = vmatprep.mubr.bf16.mxu0 0
      %920 = vmatmul.mubr.bf16.gmra.mrb[0].mxu0 %v881
      %v921 = vpop.f32.mrb[0].mxu0
      %v922 = vadd.f32 %v872, %v921
      %v923 = vpop.f32.mrb[0].mxu0
      %v924 = vpop.f32.mrb[0].mxu0
      %v925 = vadd.f32 %v872, %v924
      %v926 = vpop.f32.mrb[0].mxu0
      %927 = vdwg.mxu0
      %v928 = vmul.f32 %v922, %v790
      %v929 = vmul.f32 %v925, %v795
      %v930 = vpack.c.bf16 %v929, %v928
      %v931 = vld [vmem:[%s6] sm:$0xf]
      %v932 = vld [vmem:[%s6 + $0x4] sm:$0xf]
      %v933 = vld [vmem:[%s6 + $0x8] sm:$0xf]
      %v934 = vld [vmem:[%s6 + $0xc] sm:$0xf]
      %v935 = vld [vmem:[%s7] sm:$0x1]
      %v937 = vlaneseq
      %v938 = vshrl.u32 %v937, 7
      %v939 = vsub.s32 0, %v938
      %v940 = vrot.slane %v935, %v939
      %v946 = vunpack.c.l.b16 %v931
      %v947 = vunpack.c.l.b16 %v932
      %v948 = vunpack.c.l.b16 %v933
      %v949 = vunpack.c.l.b16 %v934
      %v950 = vpack.c.b16 %v947, %v946
      %v951 = vpack.c.b16 %v949, %v948
      %vm954 = vcmask 261120
      %v956 = vsel %vm954, %v930, 0
      %958 = vmatprep.subr.bf16.mxu0 0
      %959 = vmatpush1.bf16.msra.mxu0 %v950
      %960 = vmatprep.subr.bf16.mxu0 0
      %961 = vmatpush1.bf16.msra.mxu0 %v951
      %962 = vmatprep.subr.bf16.mxu0 0
      %963 = vmatpush1.bf16.msra.mxu0 0
      %964 = vmatprep.subr.bf16.mxu0 0
      %965 = vmatpush1.bf16.msra.mxu0 0
      %966 = vmatprep.subr.bf16.mxu0 0
      %967 = vmatpush1.bf16.msra.mxu0 0
      %968 = vmatprep.subr.bf16.mxu0 0
      %969 = vmatpush1.bf16.msra.mxu0 0
      %970 = vmatprep.subr.bf16.mxu0 0
      %971 = vmatpush1.bf16.msra.mxu0 0
      %972 = vmatprep.subr.bf16.mxu0 0
      %973 = vmatpush1.bf16.msra.mxu0 0
      %974 = vmatprep.subr.bf16.mxu0 0
      %975 = vmatpush1.bf16.msra.mxu0 0
      %976 = vmatprep.subr.bf16.mxu0 0
      %977 = vmatpush1.bf16.msra.mxu0 0
      %978 = vmatprep.subr.bf16.mxu0 0
      %979 = vmatpush1.bf16.msra.mxu0 0
      %980 = vmatprep.subr.bf16.mxu0 0
      %981 = vmatpush1.bf16.msra.mxu0 0
      %982 = vmatprep.subr.bf16.mxu0 0
      %983 = vmatpush1.bf16.msra.mxu0 0
      %984 = vmatprep.subr.bf16.mxu0 0
      %985 = vmatpush1.bf16.msra.mxu0 0
      %986 = vmatprep.subr.bf16.mxu0 0
      %987 = vmatpush1.bf16.msra.mxu0 0
      %988 = vmatprep.subr.bf16.mxu0 0
      %989 = vmatpush1.bf16.msra.mxu0 0
      %990 = vmatprep.mubr.bf16.mxu0 0
      %991 = vmatmul.mubr.bf16.gmra.mrb[0].mxu0 %v956
      %v992 = vpop.f32.mrb[0].mxu0
      %v993 = vadd.f32 %v940, %v992
      %v994 = vpop.f32.mrb[0].mxu0
      %v995 = vpop.f32.mrb[0].mxu0
      %v996 = vadd.f32 %v940, %v995
      %v997 = vpop.f32.mrb[0].mxu0
      %998 = vdwg.mxu0
      %v999 = vld [vmem:[%s8] sm:$0xf]
      %v1000 = vld [vmem:[%s8 + $0x4] sm:$0x1]
      %v1001 = vld [vmem:[%s9] sm:$0xf]
      %v1002 = vld [vmem:[%s9 + $0x4] sm:$0x1]
      %v1003 = vld [vmem:[%s10] sm:$0xf]
      %v1004 = vld [vmem:[%s10 + $0x4] sm:$0xf]
      %v1005 = vld [vmem:[%s10 + $0x8] sm:$0xf]
      %v1006 = vld [vmem:[%s10 + $0xc] sm:$0xf]
      %v1007 = vmul.f32 %v993, 0.25
      %v1008 = vmul.f32 %v996, 0.25
      %v1009 = vpack.c.bf16 %v1008, %v1007
      %v1010 = vpack.c.bf16 %v996, %v993
      %v1013 = vunpack.c.l.b16 %v999
      %v1014 = vunpack.c.l.b16 %v1000
      %v1015 = vpack.c.b16 %v1014, %v1013
      %vm1016 = vcmask 130048
      %v1018 = vsel %vm1016, %v1009, 0
      %v1021 = vsel %vm1016, %v1015, 0
      %1023 = vmatprep.subr.bf16.mxu0 0
      %1024 = vmatpush1.bf16.xpose.msra.mxu0 %v1021
      %1025 = vmatprep.subr.bf16.mxu0 0
      %1026 = vmatpush1.bf16.xpose.msra.mxu0 0
      %1027 = vmatprep.subr.bf16.mxu0 0
      %1028 = vmatpush1.bf16.xpose.msra.mxu0 0
      %1029 = vmatprep.subr.bf16.mxu0 0
      %1030 = vmatpush1.bf16.xpose.msra.mxu0 0
      %1031 = vmatprep.subr.bf16.mxu0 0
      %1032 = vmatpush1.bf16.xpose.msra.mxu0 0
      %1033 = vmatprep.subr.bf16.mxu0 0
      %1034 = vmatpush1.bf16.xpose.msra.mxu0 0
      %1035 = vmatprep.subr.bf16.mxu0 0
      %1036 = vmatpush1.bf16.xpose.msra.mxu0 0
      %1037 = vmatprep.subr.bf16.mxu0 0
      %1038 = vmatpush1.bf16.xpose.msra.mxu0 0
      %1039 = vmatprep.subr.bf16.mxu0 0
      %1040 = vmatpush1.bf16.xpose.msra.mxu0 0
      %1041 = vmatprep.subr.bf16.mxu0 0
      %1042 = vmatpush1.bf16.xpose.msra.mxu0 0
      %1043 = vmatprep.subr.bf16.mxu0 0
      %1044 = vmatpush1.bf16.xpose.msra.mxu0 0
      %1045 = vmatprep.subr.bf16.mxu0 0
      %1046 = vmatpush1.bf16.xpose.msra.mxu0 0
      %1047 = vmatprep.subr.bf16.mxu0 0
      %1048 = vmatpush1.bf16.xpose.msra.mxu0 0
      %1049 = vmatprep.subr.bf16.mxu0 0
      %1050 = vmatpush1.bf16.xpose.msra.mxu0 0
      %1051 = vmatprep.subr.bf16.mxu0 0
      %1052 = vmatpush1.bf16.xpose.msra.mxu0 0
      %1053 = vmatprep.subr.bf16.mxu0 0
      %1054 = vmatpush1.bf16.xpose.msra.mxu0 0
      %1055 = vmatprep.mubr.bf16.mxu0 0
      %1056 = vmatmul.mubr.bf16.gmra.mrb[0].mxu0 %v1018
      %v1057 = vpop.f32.mrb[0].mxu0
      %v1058 = vadd.f32 0.0, %v1057
      %v1059 = vpop.f32.mrb[0].mxu0
      %v1060 = vpop.f32.mrb[0].mxu0
      %v1061 = vadd.f32 0.0, %v1060
      %v1062 = vpop.f32.mrb[0].mxu0
      %1063 = vdwg.mxu0
      %1065 = vset.pattern.permute.xlu0 0
      %1066 = vperm.xlu0 %1065, %v1058
      %v1067 = vpop.permute.xlu0 %1066
      %1070 = vset.pattern.permute.xlu0 0
      %1071 = vperm.xlu0 %1070, %v1061
      %v1072 = vpop.permute.xlu0 %1071
      %v1074 = vmul.f32 %v1067, %v816
      %v1075 = vmul.f32 %v1072, %v817
      %1077 = vrot.lane.b32.xlu0 %v1010, 96
      %v1078 = vpop.permute.xlu0 %1077
      %v1080 = vsel %vm1016, %v1078, 0
      %1082 = vmatprep.subr.bf16.mxu0 0
      %1083 = vmatpush1.bf16.xpose.msra.mxu0 %v1080
      %1084 = vmatprep.subr.bf16.mxu0 0
      %1085 = vmatpush1.bf16.xpose.msra.mxu0 0
      %1086 = vmatprep.subr.bf16.mxu0 0
      %1087 = vmatpush1.bf16.xpose.msra.mxu0 0
      %1088 = vmatprep.subr.bf16.mxu0 0
      %1089 = vmatpush1.bf16.xpose.msra.mxu0 0
      %1090 = vmatprep.subr.bf16.mxu0 0
      %1091 = vmatpush1.bf16.xpose.msra.mxu0 0
      %1092 = vmatprep.subr.bf16.mxu0 0
      %1093 = vmatpush1.bf16.xpose.msra.mxu0 0
      %1094 = vmatprep.subr.bf16.mxu0 0
      %1095 = vmatpush1.bf16.xpose.msra.mxu0 0
      %1096 = vmatprep.subr.bf16.mxu0 0
      %1097 = vmatpush1.bf16.xpose.msra.mxu0 0
      %1098 = vmatprep.subr.bf16.mxu0 0
      %1099 = vmatpush1.bf16.xpose.msra.mxu0 0
      %1100 = vmatprep.subr.bf16.mxu0 0
      %1101 = vmatpush1.bf16.xpose.msra.mxu0 0
      %1102 = vmatprep.subr.bf16.mxu0 0
      %1103 = vmatpush1.bf16.xpose.msra.mxu0 0
      %1104 = vmatprep.subr.bf16.mxu0 0
      %1105 = vmatpush1.bf16.xpose.msra.mxu0 0
      %1106 = vmatprep.subr.bf16.mxu0 0
      %1107 = vmatpush1.bf16.xpose.msra.mxu0 0
      %1108 = vmatprep.subr.bf16.mxu0 0
      %1109 = vmatpush1.bf16.xpose.msra.mxu0 0
      %1110 = vmatprep.subr.bf16.mxu0 0
      %1111 = vmatpush1.bf16.xpose.msra.mxu0 0
      %1112 = vmatprep.subr.bf16.mxu0 0
      %1113 = vmatpush1.bf16.xpose.msra.mxu0 0
      %1114 = vmatprep.mubr.bf16.mxu0 0
      %1115 = vmatmul.mubr.bf16.gmra.mrb[0].mxu0 %v1018
      %v1116 = vpop.f32.mrb[0].mxu0
      %v1117 = vadd.f32 %v1074, %v1116
      %v1118 = vpop.f32.mrb[0].mxu0
      %v1119 = vpop.f32.mrb[0].mxu0
      %v1120 = vadd.f32 %v1075, %v1119
      %v1121 = vpop.f32.mrb[0].mxu0
      %1122 = vdwg.mxu0
      %1123 = vset.pattern.permute.xlu0 1
      %1124 = vperm.xlu0 %1123, %v1058
      %v1125 = vpop.permute.xlu0 %1124
      %1127 = vset.pattern.permute.xlu0 1
      %1128 = vperm.xlu0 %1127, %v1061
      %v1129 = vpop.permute.xlu0 %1128
      %v1131 = vmul.f32 %v1125, %v822
      %v1132 = vmul.f32 %v1129, %v823
      %v1133 = vadd.f32 %v1117, %v1131
      %v1134 = vadd.f32 %v1120, %v1132
      %1135 = vset.pattern.permute.xlu0 2
      %1136 = vperm.xlu0 %1135, %v1058
      %v1137 = vpop.permute.xlu0 %1136
      %1139 = vset.pattern.permute.xlu0 2
      %1140 = vperm.xlu0 %1139, %v1061
      %v1141 = vpop.permute.xlu0 %1140
      %v1143 = vmul.f32 %v1137, %v828
      %v1144 = vmul.f32 %v1141, %v829
      %v1145 = vadd.f32 %v1133, %v1143
      %v1146 = vadd.f32 %v1134, %v1144
      %1147 = vset.pattern.permute.xlu0 3
      %1148 = vperm.xlu0 %1147, %v1058
      %v1149 = vpop.permute.xlu0 %1148
      %1151 = vset.pattern.permute.xlu0 3
      %1152 = vperm.xlu0 %1151, %v1061
      %v1153 = vpop.permute.xlu0 %1152
      %v1155 = vmul.f32 %v1149, %v834
      %v1156 = vmul.f32 %v1153, %v835
      %v1157 = vadd.f32 %v1145, %v1155
      %v1158 = vadd.f32 %v1146, %v1156
      %1159 = vset.pattern.permute.xlu0 4
      %1160 = vperm.xlu0 %1159, %v1058
      %v1161 = vpop.permute.xlu0 %1160
      %1163 = vset.pattern.permute.xlu0 4
      %1164 = vperm.xlu0 %1163, %v1061
      %v1165 = vpop.permute.xlu0 %1164
      %v1167 = vmul.f32 %v1161, %v840
      %v1168 = vmul.f32 %v1165, %v841
      %v1169 = vadd.f32 %v1157, %v1167
      %v1170 = vadd.f32 %v1158, %v1168
      %1171 = vset.pattern.permute.xlu0 5
      %1172 = vperm.xlu0 %1171, %v1058
      %v1173 = vpop.permute.xlu0 %1172
      %1175 = vset.pattern.permute.xlu0 5
      %1176 = vperm.xlu0 %1175, %v1061
      %v1177 = vpop.permute.xlu0 %1176
      %v1179 = vmul.f32 %v1173, %v846
      %v1180 = vmul.f32 %v1177, %v847
      %v1181 = vadd.f32 %v1169, %v1179
      %v1182 = vadd.f32 %v1170, %v1180
      %1183 = vset.pattern.permute.xlu0 6
      %1184 = vperm.xlu0 %1183, %v1058
      %v1185 = vpop.permute.xlu0 %1184
      %1187 = vset.pattern.permute.xlu0 6
      %1188 = vperm.xlu0 %1187, %v1061
      %v1189 = vpop.permute.xlu0 %1188
      %v1191 = vmul.f32 %v1185, %v852
      %v1192 = vmul.f32 %v1189, %v853
      %v1193 = vadd.f32 %v1181, %v1191
      %v1194 = vadd.f32 %v1182, %v1192
      %1195 = vset.pattern.permute.xlu0 7
      %1196 = vperm.xlu0 %1195, %v1058
      %v1197 = vpop.permute.xlu0 %1196
      %1199 = vset.pattern.permute.xlu0 7
      %1200 = vperm.xlu0 %1199, %v1061
      %v1201 = vpop.permute.xlu0 %1200
      %v1203 = vmul.f32 %v1197, %v858
      %v1204 = vmul.f32 %v1201, %v859
      %v1205 = vadd.f32 %v1193, %v1203
      %v1206 = vadd.f32 %v1194, %v1204
      %1207 = vset.pattern.permute.xlu0 8
      %1208 = vperm.xlu0 %1207, %v1058
      %v1209 = vpop.permute.xlu0 %1208
      %1211 = vset.pattern.permute.xlu0 8
      %1212 = vperm.xlu0 %1211, %v1061
      %v1213 = vpop.permute.xlu0 %1212
      %v1215 = vmul.f32 %v1209, %v864
      %v1216 = vmul.f32 %v1213, %v865
      %v1217 = vadd.f32 %v1205, %v1215
      %v1218 = vadd.f32 %v1206, %v1216
      %v1219 = vsel %vm803, -10000.0, %v1217
      %v1220 = vsel %vm804, -10000.0, %v1218
      %v1221 = vsel %vm1016, %v1219, -inf
      %1222 = vmax.xlane.f32.xlu0 %v1221
      %v1223 = vpop.xlane.xlu0 %1222
      %v1224 = vsel %vm1016, %v1220, -inf
      %1225 = vmax.xlane.f32.xlu0 %v1224
      %v1226 = vpop.xlane.xlu0 %1225
      %v1227 = vsub.f32 %v1219, %v1223
      %v1228 = vsub.f32 %v1220, %v1226
      %v1229 = vmul.f32 %v1227, 1.442695
      %v1230 = vpow.pop %v1229
      %v1231 = vmul.f32 %v1228, 1.442695
      %v1232 = vpow.pop %v1231
      %v1233 = vsel %vm1016, %v1230, 0.0
      %1234 = vadd.xlane.f32.xlu0 %v1233
      %v1235 = vpop.xlane.xlu0 %1234
      %v1236 = vsel %vm1016, %v1232, 0.0
      %1237 = vadd.xlane.f32.xlu0 %v1236
      %v1238 = vpop.xlane.xlu0 %1237
      %v1239 = vrcp.pop %v1235
      %v1240 = vrcp.pop %v1238
      %v1241 = vmul.f32 %v1230, %v1239
      %v1242 = vmul.f32 %v1232, %v1240
      %v1243 = vpack.c.bf16 %v1242, %v1241
      %v1244 = vmul.f32 %v1241, %v816
      %v1245 = vmul.f32 %v1242, %v817
      %v1246 = vsel %vm1016, %v1244, 0.0
      %1247 = vadd.xlane.f32.xlu0 %v1246
      %v1248 = vpop.xlane.xlu0 %1247
      %v1249 = vsel %vm1016, %v1245, 0.0
      %1250 = vadd.xlane.f32.xlu0 %v1249
      %v1251 = vpop.xlane.xlu0 %1250
      %v1252 = vmul.f32 %v1241, %v822
      %v1253 = vmul.f32 %v1242, %v823
      %v1254 = vsel %vm1016, %v1252, 0.0
      %1255 = vadd.xlane.f32.xlu0 %v1254
      %v1256 = vpop.xlane.xlu0 %1255
      %v1257 = vsel %vm1016, %v1253, 0.0
      %1258 = vadd.xlane.f32.xlu0 %v1257
      %v1259 = vpop.xlane.xlu0 %1258
      %v1260 = vmul.f32 %v1241, %v828
      %v1261 = vmul.f32 %v1242, %v829
      %v1262 = vsel %vm1016, %v1260, 0.0
      %1263 = vadd.xlane.f32.xlu0 %v1262
      %v1264 = vpop.xlane.xlu0 %1263
      %v1265 = vsel %vm1016, %v1261, 0.0
      %1266 = vadd.xlane.f32.xlu0 %v1265
      %v1267 = vpop.xlane.xlu0 %1266
      %v1268 = vmul.f32 %v1241, %v834
      %v1269 = vmul.f32 %v1242, %v835
      %v1270 = vsel %vm1016, %v1268, 0.0
      %1271 = vadd.xlane.f32.xlu0 %v1270
      %v1272 = vpop.xlane.xlu0 %1271
      %v1273 = vsel %vm1016, %v1269, 0.0
      %1274 = vadd.xlane.f32.xlu0 %v1273
      %v1275 = vpop.xlane.xlu0 %1274
      %v1276 = vmul.f32 %v1241, %v840
      %v1277 = vmul.f32 %v1242, %v841
      %v1278 = vsel %vm1016, %v1276, 0.0
      %1279 = vadd.xlane.f32.xlu0 %v1278
      %v1280 = vpop.xlane.xlu0 %1279
      %v1281 = vsel %vm1016, %v1277, 0.0
      %1282 = vadd.xlane.f32.xlu0 %v1281
      %v1283 = vpop.xlane.xlu0 %1282
      %v1284 = vmul.f32 %v1241, %v846
      %v1285 = vmul.f32 %v1242, %v847
      %v1286 = vsel %vm1016, %v1284, 0.0
      %1287 = vadd.xlane.f32.xlu0 %v1286
      %v1288 = vpop.xlane.xlu0 %1287
      %v1289 = vsel %vm1016, %v1285, 0.0
      %1290 = vadd.xlane.f32.xlu0 %v1289
      %v1291 = vpop.xlane.xlu0 %1290
      %v1292 = vmul.f32 %v1241, %v852
      %v1293 = vmul.f32 %v1242, %v853
      %v1294 = vsel %vm1016, %v1292, 0.0
      %1295 = vadd.xlane.f32.xlu0 %v1294
      %v1296 = vpop.xlane.xlu0 %1295
      %v1297 = vsel %vm1016, %v1293, 0.0
      %1298 = vadd.xlane.f32.xlu0 %v1297
      %v1299 = vpop.xlane.xlu0 %1298
      %v1300 = vmul.f32 %v1241, %v858
      %v1301 = vmul.f32 %v1242, %v859
      %v1302 = vsel %vm1016, %v1300, 0.0
      %1303 = vadd.xlane.f32.xlu0 %v1302
      %v1304 = vpop.xlane.xlu0 %1303
      %v1305 = vsel %vm1016, %v1301, 0.0
      %1306 = vadd.xlane.f32.xlu0 %v1305
      %v1307 = vpop.xlane.xlu0 %1306
      %v1308 = vmul.f32 %v1241, %v864
      %v1309 = vmul.f32 %v1242, %v865
      %v1310 = vsel %vm1016, %v1308, 0.0
      %1311 = vadd.xlane.f32.xlu0 %v1310
      %v1312 = vpop.xlane.xlu0 %1311
      %v1313 = vsel %vm1016, %v1309, 0.0
      %1314 = vadd.xlane.f32.xlu0 %v1313
      %v1315 = vpop.xlane.xlu0 %1314
      %vm1316 = vcmask 7168
      %v1317 = vsel %vm1316, %v1248, %v1256
      %v1318 = vsel %vm1316, %v1251, %v1259
      %vm1319 = vcmask 15360
      %v1320 = vsel %vm1319, %v1317, %v1264
      %v1321 = vsel %vm1319, %v1318, %v1267
      %vm1322 = vcmask 23552
      %v1323 = vsel %vm1322, %v1320, %v1272
      %v1324 = vsel %vm1322, %v1321, %v1275
      %vm1325 = vcmask 31744
      %v1326 = vsel %vm1325, %v1323, %v1280
      %v1327 = vsel %vm1325, %v1324, %v1283
      %vm1328 = vcmask 39936
      %v1329 = vsel %vm1328, %v1326, %v1288
      %v1330 = vsel %vm1328, %v1327, %v1291
      %vm1331 = vcmask 48128
      %v1332 = vsel %vm1331, %v1329, %v1296
      %v1333 = vsel %vm1331, %v1330, %v1299
      %vm1334 = vcmask 56320
      %v1335 = vsel %vm1334, %v1332, %v1304
      %v1336 = vsel %vm1334, %v1333, %v1307
      %v1337 = vsel %vm879, %v1335, %v1312
      %v1338 = vsel %vm879, %v1336, %v1315
      %v1339 = vpack.c.bf16 %v1338, %v1337
      %v1342 = vunpack.c.l.b16 %v1001
      %v1343 = vunpack.c.l.b16 %v1002
      %v1344 = vpack.c.b16 %v1343, %v1342
      %vm1345 = vcmask 72704
      %v1347 = vsel %vm1345, %v1339, 0
      %vm1349 = vcmask 1044480
      %v1350 = vsel %vm883, 4294967295, 65535
      %v1351 = vsel %vm1349, %v1350, 0
      %v1353 = vand.u32 %v1344, %v1351
      %1355 = vmatprep.subr.bf16.mxu0 0
      %1356 = vmatpush1.bf16.msra.mxu0 %v1353
      %1357 = vmatprep.subr.bf16.mxu0 0
      %1358 = vmatpush1.bf16.msra.mxu0 0
      %1359 = vmatprep.subr.bf16.mxu0 0
      %1360 = vmatpush1.bf16.msra.mxu0 0
      %1361 = vmatprep.subr.bf16.mxu0 0
      %1362 = vmatpush1.bf16.msra.mxu0 0
      %1363 = vmatprep.subr.bf16.mxu0 0
      %1364 = vmatpush1.bf16.msra.mxu0 0
      %1365 = vmatprep.subr.bf16.mxu0 0
      %1366 = vmatpush1.bf16.msra.mxu0 0
      %1367 = vmatprep.subr.bf16.mxu0 0
      %1368 = vmatpush1.bf16.msra.mxu0 0
      %1369 = vmatprep.subr.bf16.mxu0 0
      %1370 = vmatpush1.bf16.msra.mxu0 0
      %1371 = vmatprep.subr.bf16.mxu0 0
      %1372 = vmatpush1.bf16.msra.mxu0 0
      %1373 = vmatprep.subr.bf16.mxu0 0
      %1374 = vmatpush1.bf16.msra.mxu0 0
      %1375 = vmatprep.subr.bf16.mxu0 0
      %1376 = vmatpush1.bf16.msra.mxu0 0
      %1377 = vmatprep.subr.bf16.mxu0 0
      %1378 = vmatpush1.bf16.msra.mxu0 0
      %1379 = vmatprep.subr.bf16.mxu0 0
      %1380 = vmatpush1.bf16.msra.mxu0 0
      %1381 = vmatprep.subr.bf16.mxu0 0
      %1382 = vmatpush1.bf16.msra.mxu0 0
      %1383 = vmatprep.subr.bf16.mxu0 0
      %1384 = vmatpush1.bf16.msra.mxu0 0
      %1385 = vmatprep.subr.bf16.mxu0 0
      %1386 = vmatpush1.bf16.msra.mxu0 0
      %1387 = vmatprep.mubr.bf16.mxu0 0
      %1388 = vmatmul.mubr.bf16.gmra.mrb[0].mxu0 %v1347
      %v1389 = vpop.f32.mrb[0].mxu0
      %v1390 = vadd.f32 0.0, %v1389
      %v1391 = vpop.f32.mrb[0].mxu0
      %v1392 = vpop.f32.mrb[0].mxu0
      %v1393 = vadd.f32 0.0, %v1392
      %v1394 = vpop.f32.mrb[0].mxu0
      %1395 = vdwg.mxu0
      %1396 = vrot.lane.b32.xlu0 %v1010, 64
      %v1397 = vpop.permute.xlu0 %1396
      %v1400 = vsel %vm1016, %v1243, 0
      %1402 = vmatprep.subr.bf16.mxu0 0
      %1403 = vmatpush1.bf16.msra.mxu0 %v1397
      %1404 = vmatprep.subr.bf16.mxu0 0
      %1405 = vmatpush1.bf16.msra.mxu0 0
      %1406 = vmatprep.subr.bf16.mxu0 0
      %1407 = vmatpush1.bf16.msra.mxu0 0
      %1408 = vmatprep.subr.bf16.mxu0 0
      %1409 = vmatpush1.bf16.msra.mxu0 0
      %1410 = vmatprep.subr.bf16.mxu0 0
      %1411 = vmatpush1.bf16.msra.mxu0 0
      %1412 = vmatprep.subr.bf16.mxu0 0
      %1413 = vmatpush1.bf16.msra.mxu0 0
      %1414 = vmatprep.subr.bf16.mxu0 0
      %1415 = vmatpush1.bf16.msra.mxu0 0
      %1416 = vmatprep.subr.bf16.mxu0 0
      %1417 = vmatpush1.bf16.msra.mxu0 0
      %1418 = vmatprep.subr.bf16.mxu0 0
      %1419 = vmatpush1.bf16.msra.mxu0 0
      %1420 = vmatprep.subr.bf16.mxu0 0
      %1421 = vmatpush1.bf16.msra.mxu0 0
      %1422 = vmatprep.subr.bf16.mxu0 0
      %1423 = vmatpush1.bf16.msra.mxu0 0
      %1424 = vmatprep.subr.bf16.mxu0 0
      %1425 = vmatpush1.bf16.msra.mxu0 0
      %1426 = vmatprep.subr.bf16.mxu0 0
      %1427 = vmatpush1.bf16.msra.mxu0 0
      %1428 = vmatprep.subr.bf16.mxu0 0
      %1429 = vmatpush1.bf16.msra.mxu0 0
      %1430 = vmatprep.subr.bf16.mxu0 0
      %1431 = vmatpush1.bf16.msra.mxu0 0
      %1432 = vmatprep.subr.bf16.mxu0 0
      %1433 = vmatpush1.bf16.msra.mxu0 0
      %1434 = vmatprep.mubr.bf16.mxu0 0
      %1435 = vmatmul.mubr.bf16.gmra.mrb[0].mxu0 %v1400
      %v1436 = vpop.f32.mrb[0].mxu0
      %v1437 = vadd.f32 %v1390, %v1436
      %v1438 = vpop.f32.mrb[0].mxu0
      %v1439 = vpop.f32.mrb[0].mxu0
      %v1440 = vadd.f32 %v1393, %v1439
      %v1441 = vpop.f32.mrb[0].mxu0
      %1442 = vdwg.mxu0
      %v1443 = vpack.c.bf16 %v1440, %v1437
      %1445 = vrot.lane.b32.xlu0 %v1009, 112
      %v1446 = vpop.permute.xlu0 %1445
      %v1448 = vsel %vm1016, %v1446, 0
      %1450 = vmatprep.subr.bf16.mxu0 0
      %1451 = vmatpush1.bf16.xpose.msra.mxu0 %v1021
      %1452 = vmatprep.subr.bf16.mxu0 0
      %1453 = vmatpush1.bf16.xpose.msra.mxu0 0
      %1454 = vmatprep.subr.bf16.mxu0 0
      %1455 = vmatpush1.bf16.xpose.msra.mxu0 0
      %1456 = vmatprep.subr.bf16.mxu0 0
      %1457 = vmatpush1.bf16.xpose.msra.mxu0 0
      %1458 = vmatprep.subr.bf16.mxu0 0
      %1459 = vmatpush1.bf16.xpose.msra.mxu0 0
      %1460 = vmatprep.subr.bf16.mxu0 0
      %1461 = vmatpush1.bf16.xpose.msra.mxu0 0
      %1462 = vmatprep.subr.bf16.mxu0 0
      %1463 = vmatpush1.bf16.xpose.msra.mxu0 0
      %1464 = vmatprep.subr.bf16.mxu0 0
      %1465 = vmatpush1.bf16.xpose.msra.mxu0 0
      %1466 = vmatprep.subr.bf16.mxu0 0
      %1467 = vmatpush1.bf16.xpose.msra.mxu0 0
      %1468 = vmatprep.subr.bf16.mxu0 0
      %1469 = vmatpush1.bf16.xpose.msra.mxu0 0
      %1470 = vmatprep.subr.bf16.mxu0 0
      %1471 = vmatpush1.bf16.xpose.msra.mxu0 0
      %1472 = vmatprep.subr.bf16.mxu0 0
      %1473 = vmatpush1.bf16.xpose.msra.mxu0 0
      %1474 = vmatprep.subr.bf16.mxu0 0
      %1475 = vmatpush1.bf16.xpose.msra.mxu0 0
      %1476 = vmatprep.subr.bf16.mxu0 0
      %1477 = vmatpush1.bf16.xpose.msra.mxu0 0
      %1478 = vmatprep.subr.bf16.mxu0 0
      %1479 = vmatpush1.bf16.xpose.msra.mxu0 0
      %1480 = vmatprep.subr.bf16.mxu0 0
      %1481 = vmatpush1.bf16.xpose.msra.mxu0 0
      %1482 = vmatprep.mubr.bf16.mxu0 0
      %1483 = vmatmul.mubr.bf16.gmra.mrb[0].mxu0 %v1448
      %v1484 = vpop.f32.mrb[0].mxu0
      %v1485 = vadd.f32 0.0, %v1484
      %v1486 = vpop.f32.mrb[0].mxu0
      %v1487 = vpop.f32.mrb[0].mxu0
      %v1488 = vadd.f32 0.0, %v1487
      %v1489 = vpop.f32.mrb[0].mxu0
      %1490 = vdwg.mxu0
      %1492 = vset.pattern.permute.xlu0 0
      %1493 = vperm.xlu0 %1492, %v1485
      %v1494 = vpop.permute.xlu0 %1493
      %1497 = vset.pattern.permute.xlu0 0
      %1498 = vperm.xlu0 %1497, %v1488
      %v1499 = vpop.permute.xlu0 %1498
      %v1501 = vmul.f32 %v1494, %v816
      %v1502 = vmul.f32 %v1499, %v817
      %1503 = vrot.lane.b32.xlu0 %v1010, 80
      %v1504 = vpop.permute.xlu0 %1503
      %v1506 = vsel %vm1016, %v1504, 0
      %1508 = vmatprep.subr.bf16.mxu0 0
      %1509 = vmatpush1.bf16.xpose.msra.mxu0 %v1506
      %1510 = vmatprep.subr.bf16.mxu0 0
      %1511 = vmatpush1.bf16.xpose.msra.mxu0 0
      %1512 = vmatprep.subr.bf16.mxu0 0
      %1513 = vmatpush1.bf16.xpose.msra.mxu0 0
      %1514 = vmatprep.subr.bf16.mxu0 0
      %1515 = vmatpush1.bf16.xpose.msra.mxu0 0
      %1516 = vmatprep.subr.bf16.mxu0 0
      %1517 = vmatpush1.bf16.xpose.msra.mxu0 0
      %1518 = vmatprep.subr.bf16.mxu0 0
      %1519 = vmatpush1.bf16.xpose.msra.mxu0 0
      %1520 = vmatprep.subr.bf16.mxu0 0
      %1521 = vmatpush1.bf16.xpose.msra.mxu0 0
      %1522 = vmatprep.subr.bf16.mxu0 0
      %1523 = vmatpush1.bf16.xpose.msra.mxu0 0
      %1524 = vmatprep.subr.bf16.mxu0 0
      %1525 = vmatpush1.bf16.xpose.msra.mxu0 0
      %1526 = vmatprep.subr.bf16.mxu0 0
      %1527 = vmatpush1.bf16.xpose.msra.mxu0 0
      %1528 = vmatprep.subr.bf16.mxu0 0
      %1529 = vmatpush1.bf16.xpose.msra.mxu0 0
      %1530 = vmatprep.subr.bf16.mxu0 0
      %1531 = vmatpush1.bf16.xpose.msra.mxu0 0
      %1532 = vmatprep.subr.bf16.mxu0 0
      %1533 = vmatpush1.bf16.xpose.msra.mxu0 0
      %1534 = vmatprep.subr.bf16.mxu0 0
      %1535 = vmatpush1.bf16.xpose.msra.mxu0 0
      %1536 = vmatprep.subr.bf16.mxu0 0
      %1537 = vmatpush1.bf16.xpose.msra.mxu0 0
      %1538 = vmatprep.subr.bf16.mxu0 0
      %1539 = vmatpush1.bf16.xpose.msra.mxu0 0
      %1540 = vmatprep.mubr.bf16.mxu0 0
      %1541 = vmatmul.mubr.bf16.gmra.mrb[0].mxu0 %v1448
      %v1542 = vpop.f32.mrb[0].mxu0
      %v1543 = vadd.f32 %v1501, %v1542
      %v1544 = vpop.f32.mrb[0].mxu0
      %v1545 = vpop.f32.mrb[0].mxu0
      %v1546 = vadd.f32 %v1502, %v1545
      %v1547 = vpop.f32.mrb[0].mxu0
      %1548 = vdwg.mxu0
      %1549 = vset.pattern.permute.xlu0 1
      %1550 = vperm.xlu0 %1549, %v1485
      %v1551 = vpop.permute.xlu0 %1550
      %1553 = vset.pattern.permute.xlu0 1
      %1554 = vperm.xlu0 %1553, %v1488
      %v1555 = vpop.permute.xlu0 %1554
      %v1557 = vmul.f32 %v1551, %v822
      %v1558 = vmul.f32 %v1555, %v823
      %v1559 = vadd.f32 %v1543, %v1557
      %v1560 = vadd.f32 %v1546, %v1558
      %1561 = vset.pattern.permute.xlu0 2
      %1562 = vperm.xlu0 %1561, %v1485
      %v1563 = vpop.permute.xlu0 %1562
      %1565 = vset.pattern.permute.xlu0 2
      %1566 = vperm.xlu0 %1565, %v1488
      %v1567 = vpop.permute.xlu0 %1566
      %v1569 = vmul.f32 %v1563, %v828
      %v1570 = vmul.f32 %v1567, %v829
      %v1571 = vadd.f32 %v1559, %v1569
      %v1572 = vadd.f32 %v1560, %v1570
      %1573 = vset.pattern.permute.xlu0 3
      %1574 = vperm.xlu0 %1573, %v1485
      %v1575 = vpop.permute.xlu0 %1574
      %1577 = vset.pattern.permute.xlu0 3
      %1578 = vperm.xlu0 %1577, %v1488
      %v1579 = vpop.permute.xlu0 %1578
      %v1581 = vmul.f32 %v1575, %v834
      %v1582 = vmul.f32 %v1579, %v835
      %v1583 = vadd.f32 %v1571, %v1581
      %v1584 = vadd.f32 %v1572, %v1582
      %1585 = vset.pattern.permute.xlu0 4
      %1586 = vperm.xlu0 %1585, %v1485
      %v1587 = vpop.permute.xlu0 %1586
      %1589 = vset.pattern.permute.xlu0 4
      %1590 = vperm.xlu0 %1589, %v1488
      %v1591 = vpop.permute.xlu0 %1590
      %v1593 = vmul.f32 %v1587, %v840
      %v1594 = vmul.f32 %v1591, %v841
      %v1595 = vadd.f32 %v1583, %v1593
      %v1596 = vadd.f32 %v1584, %v1594
      %1597 = vset.pattern.permute.xlu0 5
      %1598 = vperm.xlu0 %1597, %v1485
      %v1599 = vpop.permute.xlu0 %1598
      %1601 = vset.pattern.permute.xlu0 5
      %1602 = vperm.xlu0 %1601, %v1488
      %v1603 = vpop.permute.xlu0 %1602
      %v1605 = vmul.f32 %v1599, %v846
      %v1606 = vmul.f32 %v1603, %v847
      %v1607 = vadd.f32 %v1595, %v1605
      %v1608 = vadd.f32 %v1596, %v1606
      %1609 = vset.pattern.permute.xlu0 6
      %1610 = vperm.xlu0 %1609, %v1485
      %v1611 = vpop.permute.xlu0 %1610
      %1613 = vset.pattern.permute.xlu0 6
      %1614 = vperm.xlu0 %1613, %v1488
      %v1615 = vpop.permute.xlu0 %1614
      %v1617 = vmul.f32 %v1611, %v852
      %v1618 = vmul.f32 %v1615, %v853
      %v1619 = vadd.f32 %v1607, %v1617
      %v1620 = vadd.f32 %v1608, %v1618
      %1621 = vset.pattern.permute.xlu0 7
      %1622 = vperm.xlu0 %1621, %v1485
      %v1623 = vpop.permute.xlu0 %1622
      %1625 = vset.pattern.permute.xlu0 7
      %1626 = vperm.xlu0 %1625, %v1488
      %v1627 = vpop.permute.xlu0 %1626
      %v1629 = vmul.f32 %v1623, %v858
      %v1630 = vmul.f32 %v1627, %v859
      %v1631 = vadd.f32 %v1619, %v1629
      %v1632 = vadd.f32 %v1620, %v1630
      %1633 = vset.pattern.permute.xlu0 8
      %1634 = vperm.xlu0 %1633, %v1485
      %v1635 = vpop.permute.xlu0 %1634
      %1637 = vset.pattern.permute.xlu0 8
      %1638 = vperm.xlu0 %1637, %v1488
      %v1639 = vpop.permute.xlu0 %1638
      %v1641 = vmul.f32 %v1635, %v864
      %v1642 = vmul.f32 %v1639, %v865
      %v1643 = vadd.f32 %v1631, %v1641
      %v1644 = vadd.f32 %v1632, %v1642
      %v1645 = vsel %vm803, -10000.0, %v1643
      %v1646 = vsel %vm804, -10000.0, %v1644
      %v1647 = vsel %vm1016, %v1645, -inf
      %1648 = vmax.xlane.f32.xlu0 %v1647
      %v1649 = vpop.xlane.xlu0 %1648
      %v1650 = vsel %vm1016, %v1646, -inf
      %1651 = vmax.xlane.f32.xlu0 %v1650
      %v1652 = vpop.xlane.xlu0 %1651
      %v1653 = vsub.f32 %v1645, %v1649
      %v1654 = vsub.f32 %v1646, %v1652
      %v1655 = vmul.f32 %v1653, 1.442695
      %v1656 = vpow.pop %v1655
      %v1657 = vmul.f32 %v1654, 1.442695
      %v1658 = vpow.pop %v1657
      %v1659 = vsel %vm1016, %v1656, 0.0
      %1660 = vadd.xlane.f32.xlu0 %v1659
      %v1661 = vpop.xlane.xlu0 %1660
      %v1662 = vsel %vm1016, %v1658, 0.0
      %1663 = vadd.xlane.f32.xlu0 %v1662
      %v1664 = vpop.xlane.xlu0 %1663
      %v1665 = vrcp.pop %v1661
      %v1666 = vrcp.pop %v1664
      %v1667 = vmul.f32 %v1656, %v1665
      %v1668 = vmul.f32 %v1658, %v1666
      %v1669 = vpack.c.bf16 %v1668, %v1667
      %v1670 = vmul.f32 %v1667, %v816
      %v1671 = vmul.f32 %v1668, %v817
      %v1672 = vsel %vm1016, %v1670, 0.0
      %1673 = vadd.xlane.f32.xlu0 %v1672
      %v1674 = vpop.xlane.xlu0 %1673
      %v1675 = vsel %vm1016, %v1671, 0.0
      %1676 = vadd.xlane.f32.xlu0 %v1675
      %v1677 = vpop.xlane.xlu0 %1676
      %v1678 = vmul.f32 %v1667, %v822
      %v1679 = vmul.f32 %v1668, %v823
      %v1680 = vsel %vm1016, %v1678, 0.0
      %1681 = vadd.xlane.f32.xlu0 %v1680
      %v1682 = vpop.xlane.xlu0 %1681
      %v1683 = vsel %vm1016, %v1679, 0.0
      %1684 = vadd.xlane.f32.xlu0 %v1683
      %v1685 = vpop.xlane.xlu0 %1684
      %v1686 = vmul.f32 %v1667, %v828
      %v1687 = vmul.f32 %v1668, %v829
      %v1688 = vsel %vm1016, %v1686, 0.0
      %1689 = vadd.xlane.f32.xlu0 %v1688
      %v1690 = vpop.xlane.xlu0 %1689
      %v1691 = vsel %vm1016, %v1687, 0.0
      %1692 = vadd.xlane.f32.xlu0 %v1691
      %v1693 = vpop.xlane.xlu0 %1692
      %v1694 = vmul.f32 %v1667, %v834
      %v1695 = vmul.f32 %v1668, %v835
      %v1696 = vsel %vm1016, %v1694, 0.0
      %1697 = vadd.xlane.f32.xlu0 %v1696
      %v1698 = vpop.xlane.xlu0 %1697
      %v1699 = vsel %vm1016, %v1695, 0.0
      %1700 = vadd.xlane.f32.xlu0 %v1699
      %v1701 = vpop.xlane.xlu0 %1700
      %v1702 = vmul.f32 %v1667, %v840
      %v1703 = vmul.f32 %v1668, %v841
      %v1704 = vsel %vm1016, %v1702, 0.0
      %1705 = vadd.xlane.f32.xlu0 %v1704
      %v1706 = vpop.xlane.xlu0 %1705
      %v1707 = vsel %vm1016, %v1703, 0.0
      %1708 = vadd.xlane.f32.xlu0 %v1707
      %v1709 = vpop.xlane.xlu0 %1708
      %v1710 = vmul.f32 %v1667, %v846
      %v1711 = vmul.f32 %v1668, %v847
      %v1712 = vsel %vm1016, %v1710, 0.0
      %1713 = vadd.xlane.f32.xlu0 %v1712
      %v1714 = vpop.xlane.xlu0 %1713
      %v1715 = vsel %vm1016, %v1711, 0.0
      %1716 = vadd.xlane.f32.xlu0 %v1715
      %v1717 = vpop.xlane.xlu0 %1716
      %v1718 = vmul.f32 %v1667, %v852
      %v1719 = vmul.f32 %v1668, %v853
      %v1720 = vsel %vm1016, %v1718, 0.0
      %1721 = vadd.xlane.f32.xlu0 %v1720
      %v1722 = vpop.xlane.xlu0 %1721
      %v1723 = vsel %vm1016, %v1719, 0.0
      %1724 = vadd.xlane.f32.xlu0 %v1723
      %v1725 = vpop.xlane.xlu0 %1724
      %v1726 = vmul.f32 %v1667, %v858
      %v1727 = vmul.f32 %v1668, %v859
      %v1728 = vsel %vm1016, %v1726, 0.0
      %1729 = vadd.xlane.f32.xlu0 %v1728
      %v1730 = vpop.xlane.xlu0 %1729
      %v1731 = vsel %vm1016, %v1727, 0.0
      %1732 = vadd.xlane.f32.xlu0 %v1731
      %v1733 = vpop.xlane.xlu0 %1732
      %v1734 = vmul.f32 %v1667, %v864
      %v1735 = vmul.f32 %v1668, %v865
      %v1736 = vsel %vm1016, %v1734, 0.0
      %1737 = vadd.xlane.f32.xlu0 %v1736
      %v1738 = vpop.xlane.xlu0 %1737
      %v1739 = vsel %vm1016, %v1735, 0.0
      %1740 = vadd.xlane.f32.xlu0 %v1739
      %v1741 = vpop.xlane.xlu0 %1740
      %v1742 = vsel %vm1316, %v1674, %v1682
      %v1743 = vsel %vm1316, %v1677, %v1685
      %v1744 = vsel %vm1319, %v1742, %v1690
      %v1745 = vsel %vm1319, %v1743, %v1693
      %v1746 = vsel %vm1322, %v1744, %v1698
      %v1747 = vsel %vm1322, %v1745, %v1701
      %v1748 = vsel %vm1325, %v1746, %v1706
      %v1749 = vsel %vm1325, %v1747, %v1709
      %v1750 = vsel %vm1328, %v1748, %v1714
      %v1751 = vsel %vm1328, %v1749, %v1717
      %v1752 = vsel %vm1331, %v1750, %v1722
      %v1753 = vsel %vm1331, %v1751, %v1725
      %v1754 = vsel %vm1334, %v1752, %v1730
      %v1755 = vsel %vm1334, %v1753, %v1733
      %v1756 = vsel %vm879, %v1754, %v1738
      %v1757 = vsel %vm879, %v1755, %v1741
      %v1758 = vpack.c.bf16 %v1757, %v1756
      %v1760 = vsel %vm1345, %v1758, 0
      %1762 = vmatprep.subr.bf16.mxu0 0
      %1763 = vmatpush1.bf16.msra.mxu0 %v1353
      %1764 = vmatprep.subr.bf16.mxu0 0
      %1765 = vmatpush1.bf16.msra.mxu0 0
      %1766 = vmatprep.subr.bf16.mxu0 0
      %1767 = vmatpush1.bf16.msra.mxu0 0
      %1768 = vmatprep.subr.bf16.mxu0 0
      %1769 = vmatpush1.bf16.msra.mxu0 0
      %1770 = vmatprep.subr.bf16.mxu0 0
      %1771 = vmatpush1.bf16.msra.mxu0 0
      %1772 = vmatprep.subr.bf16.mxu0 0
      %1773 = vmatpush1.bf16.msra.mxu0 0
      %1774 = vmatprep.subr.bf16.mxu0 0
      %1775 = vmatpush1.bf16.msra.mxu0 0
      %1776 = vmatprep.subr.bf16.mxu0 0
      %1777 = vmatpush1.bf16.msra.mxu0 0
      %1778 = vmatprep.subr.bf16.mxu0 0
      %1779 = vmatpush1.bf16.msra.mxu0 0
      %1780 = vmatprep.subr.bf16.mxu0 0
      %1781 = vmatpush1.bf16.msra.mxu0 0
      %1782 = vmatprep.subr.bf16.mxu0 0
      %1783 = vmatpush1.bf16.msra.mxu0 0
      %1784 = vmatprep.subr.bf16.mxu0 0
      %1785 = vmatpush1.bf16.msra.mxu0 0
      %1786 = vmatprep.subr.bf16.mxu0 0
      %1787 = vmatpush1.bf16.msra.mxu0 0
      %1788 = vmatprep.subr.bf16.mxu0 0
      %1789 = vmatpush1.bf16.msra.mxu0 0
      %1790 = vmatprep.subr.bf16.mxu0 0
      %1791 = vmatpush1.bf16.msra.mxu0 0
      %1792 = vmatprep.subr.bf16.mxu0 0
      %1793 = vmatpush1.bf16.msra.mxu0 0
      %1794 = vmatprep.mubr.bf16.mxu0 0
      %1795 = vmatmul.mubr.bf16.gmra.mrb[0].mxu0 %v1760
      %v1796 = vpop.f32.mrb[0].mxu0
      %v1797 = vadd.f32 0.0, %v1796
      %v1798 = vpop.f32.mrb[0].mxu0
      %v1799 = vpop.f32.mrb[0].mxu0
      %v1800 = vadd.f32 0.0, %v1799
      %v1801 = vpop.f32.mrb[0].mxu0
      %1802 = vdwg.mxu0
      %1803 = vrot.lane.b32.xlu0 %v1010, 48
      %v1804 = vpop.permute.xlu0 %1803
      %v1807 = vsel %vm1016, %v1669, 0
      %1809 = vmatprep.subr.bf16.mxu0 0
      %1810 = vmatpush1.bf16.msra.mxu0 %v1804
      %1811 = vmatprep.subr.bf16.mxu0 0
      %1812 = vmatpush1.bf16.msra.mxu0 0
      %1813 = vmatprep.subr.bf16.mxu0 0
      %1814 = vmatpush1.bf16.msra.mxu0 0
      %1815 = vmatprep.subr.bf16.mxu0 0
      %1816 = vmatpush1.bf16.msra.mxu0 0
      %1817 = vmatprep.subr.bf16.mxu0 0
      %1818 = vmatpush1.bf16.msra.mxu0 0
      %1819 = vmatprep.subr.bf16.mxu0 0
      %1820 = vmatpush1.bf16.msra.mxu0 0
      %1821 = vmatprep.subr.bf16.mxu0 0
      %1822 = vmatpush1.bf16.msra.mxu0 0
      %1823 = vmatprep.subr.bf16.mxu0 0
      %1824 = vmatpush1.bf16.msra.mxu0 0
      %1825 = vmatprep.subr.bf16.mxu0 0
      %1826 = vmatpush1.bf16.msra.mxu0 0
      %1827 = vmatprep.subr.bf16.mxu0 0
      %1828 = vmatpush1.bf16.msra.mxu0 0
      %1829 = vmatprep.subr.bf16.mxu0 0
      %1830 = vmatpush1.bf16.msra.mxu0 0
      %1831 = vmatprep.subr.bf16.mxu0 0
      %1832 = vmatpush1.bf16.msra.mxu0 0
      %1833 = vmatprep.subr.bf16.mxu0 0
      %1834 = vmatpush1.bf16.msra.mxu0 0
      %1835 = vmatprep.subr.bf16.mxu0 0
      %1836 = vmatpush1.bf16.msra.mxu0 0
      %1837 = vmatprep.subr.bf16.mxu0 0
      %1838 = vmatpush1.bf16.msra.mxu0 0
      %1839 = vmatprep.subr.bf16.mxu0 0
      %1840 = vmatpush1.bf16.msra.mxu0 0
      %1841 = vmatprep.mubr.bf16.mxu0 0
      %1842 = vmatmul.mubr.bf16.gmra.mrb[0].mxu0 %v1807
      %v1843 = vpop.f32.mrb[0].mxu0
      %v1844 = vadd.f32 %v1797, %v1843
      %v1845 = vpop.f32.mrb[0].mxu0
      %v1846 = vpop.f32.mrb[0].mxu0
      %v1847 = vadd.f32 %v1800, %v1846
      %v1848 = vpop.f32.mrb[0].mxu0
      %1849 = vdwg.mxu0
      %v1850 = vpack.c.bf16 %v1847, %v1844
      %v1853 = vunpack.c.l.b16 %v1005
      %v1854 = vunpack.c.l.b16 %v1006
      %v1855 = vpack.c.b16 %v1854, %v1853
      %v1858 = vsel %vm1016, %v1850, 0
      %1860 = vmatprep.subr.bf16.mxu0 0
      %1861 = vmatpush1.bf16.msra.mxu0 %v1855
      %1862 = vmatprep.subr.bf16.mxu0 0
      %1863 = vmatpush1.bf16.msra.mxu0 0
      %1864 = vmatprep.subr.bf16.mxu0 0
      %1865 = vmatpush1.bf16.msra.mxu0 0
      %1866 = vmatprep.subr.bf16.mxu0 0
      %1867 = vmatpush1.bf16.msra.mxu0 0
      %1868 = vmatprep.subr.bf16.mxu0 0
      %1869 = vmatpush1.bf16.msra.mxu0 0
      %1870 = vmatprep.subr.bf16.mxu0 0
      %1871 = vmatpush1.bf16.msra.mxu0 0
      %1872 = vmatprep.subr.bf16.mxu0 0
      %1873 = vmatpush1.bf16.msra.mxu0 0
      %1874 = vmatprep.subr.bf16.mxu0 0
      %1875 = vmatpush1.bf16.msra.mxu0 0
      %1876 = vmatprep.subr.bf16.mxu0 0
      %1877 = vmatpush1.bf16.msra.mxu0 0
      %1878 = vmatprep.subr.bf16.mxu0 0
      %1879 = vmatpush1.bf16.msra.mxu0 0
      %1880 = vmatprep.subr.bf16.mxu0 0
      %1881 = vmatpush1.bf16.msra.mxu0 0
      %1882 = vmatprep.subr.bf16.mxu0 0
      %1883 = vmatpush1.bf16.msra.mxu0 0
      %1884 = vmatprep.subr.bf16.mxu0 0
      %1885 = vmatpush1.bf16.msra.mxu0 0
      %1886 = vmatprep.subr.bf16.mxu0 0
      %1887 = vmatpush1.bf16.msra.mxu0 0
      %1888 = vmatprep.subr.bf16.mxu0 0
      %1889 = vmatpush1.bf16.msra.mxu0 0
      %1890 = vmatprep.subr.bf16.mxu0 0
      %1891 = vmatpush1.bf16.msra.mxu0 0
      %1892 = vmatprep.mubr.bf16.mxu0 0
      %1893 = vmatmul.mubr.bf16.gmra.mrb[0].mxu0 %v1858
      %v1894 = vpop.f32.mrb[0].mxu0
      %v1895 = vadd.f32 0.0, %v1894
      %v1896 = vpop.f32.mrb[0].mxu0
      %v1897 = vpop.f32.mrb[0].mxu0
      %v1898 = vadd.f32 0.0, %v1897
      %v1899 = vpop.f32.mrb[0].mxu0
      %1900 = vdwg.mxu0
      %v1903 = vunpack.c.l.b16 %v1003
      %v1904 = vunpack.c.l.b16 %v1004
      %v1905 = vpack.c.b16 %v1904, %v1903
      %v1908 = vsel %vm1016, %v1443, 0
      %1910 = vmatprep.subr.bf16.mxu0 0
      %1911 = vmatpush1.bf16.msra.mxu0 %v1905
      %1912 = vmatprep.subr.bf16.mxu0 0
      %1913 = vmatpush1.bf16.msra.mxu0 0
      %1914 = vmatprep.subr.bf16.mxu0 0
      %1915 = vmatpush1.bf16.msra.mxu0 0
      %1916 = vmatprep.subr.bf16.mxu0 0
      %1917 = vmatpush1.bf16.msra.mxu0 0
      %1918 = vmatprep.subr.bf16.mxu0 0
      %1919 = vmatpush1.bf16.msra.mxu0 0
      %1920 = vmatprep.subr.bf16.mxu0 0
      %1921 = vmatpush1.bf16.msra.mxu0 0
      %1922 = vmatprep.subr.bf16.mxu0 0
      %1923 = vmatpush1.bf16.msra.mxu0 0
      %1924 = vmatprep.subr.bf16.mxu0 0
      %1925 = vmatpush1.bf16.msra.mxu0 0
      %1926 = vmatprep.subr.bf16.mxu0 0
      %1927 = vmatpush1.bf16.msra.mxu0 0
      %1928 = vmatprep.subr.bf16.mxu0 0
      %1929 = vmatpush1.bf16.msra.mxu0 0
      %1930 = vmatprep.subr.bf16.mxu0 0
      %1931 = vmatpush1.bf16.msra.mxu0 0
      %1932 = vmatprep.subr.bf16.mxu0 0
      %1933 = vmatpush1.bf16.msra.mxu0 0
      %1934 = vmatprep.subr.bf16.mxu0 0
      %1935 = vmatpush1.bf16.msra.mxu0 0
      %1936 = vmatprep.subr.bf16.mxu0 0
      %1937 = vmatpush1.bf16.msra.mxu0 0
      %1938 = vmatprep.subr.bf16.mxu0 0
      %1939 = vmatpush1.bf16.msra.mxu0 0
      %1940 = vmatprep.subr.bf16.mxu0 0
      %1941 = vmatpush1.bf16.msra.mxu0 0
      %1942 = vmatprep.mubr.bf16.mxu0 0
      %1943 = vmatmul.mubr.bf16.gmra.mrb[0].mxu0 %v1908
      %v1944 = vpop.f32.mrb[0].mxu0
      %v1945 = vadd.f32 %v1895, %v1944
      %v1946 = vpop.f32.mrb[0].mxu0
      %v1947 = vpop.f32.mrb[0].mxu0
      %v1948 = vadd.f32 %v1898, %v1947
      %v1949 = vpop.f32.mrb[0].mxu0
      %1950 = vdwg.mxu0
      %v1951 = vld [vmem:[%s11] sm:$0x1]
      %v1953 = vlaneseq
      %v1954 = vshrl.u32 %v1953, 7
      %v1955 = vsub.s32 0, %v1954
      %v1956 = vrot.slane %v1951, %v1955
      %v1958 = vadd.f32 %v1945, %v1956
      %v1959 = vadd.f32 %v1948, %v1956
      %v1960 = vunpack.c.l.bf16 %v930
      %v1961 = vunpack.c.h.bf16 %v930
      %v1962 = vadd.f32 %v1960, %v1958
      %v1963 = vadd.f32 %v1961, %v1959
      %v1964 = vld [vmem:[%s12] sm:$0x1]
      %v1965 = vld [vmem:[%s13] sm:$0x1]
      %v1966 = vsel %vm954, %v1962, 0.0
      %1967 = vadd.xlane.f32.xlu0 %v1966
      %v1968 = vpop.xlane.xlu0 %1967
      %v1969 = vsel %vm954, %v1963, 0.0
      %1970 = vadd.xlane.f32.xlu0 %v1969
      %v1971 = vpop.xlane.xlu0 %1970
      %v1972 = vrcp.pop 32.0
      %v1973 = vmul.f32 %v1968, %v1972
      %v1974 = vmul.f32 %v1971, %v1972
      %v1975 = vsub.f32 %v1962, %v1973
      %v1976 = vsub.f32 %v1963, %v1974
      %v1977 = vmul.f32 %v1975, %v1975
      %v1978 = vmul.f32 %v1976, %v1976
      %v1979 = vsel %vm954, %v1977, 0.0
      %1980 = vadd.xlane.f32.xlu0 %v1979
      %v1981 = vpop.xlane.xlu0 %1980
      %v1982 = vsel %vm954, %v1978, 0.0
      %1983 = vadd.xlane.f32.xlu0 %v1982
      %v1984 = vpop.xlane.xlu0 %1983
      %v1985 = vmul.f32 %v1981, %v1972
      %v1986 = vmul.f32 %v1984, %v1972
      %v1987 = vadd.f32 %v1985, 1e-05
      %v1988 = vadd.f32 %v1986, 1e-05
      %v1989 = vrsqrt.pop %v1987
      %v1990 = vrsqrt.pop %v1988
      %v1991 = vmul.f32 %v1975, %v1989
      %v1992 = vmul.f32 %v1976, %v1990
      %v1994 = vlaneseq
      %v1995 = vshrl.u32 %v1994, 7
      %v1996 = vsub.s32 0, %v1995
      %v1997 = vrot.slane %v1964, %v1996
      %v1999 = vmul.f32 %v1991, %v1997
      %v2000 = vmul.f32 %v1992, %v1997
      %v2002 = vlaneseq
      %v2003 = vshrl.u32 %v2002, 7
      %v2004 = vsub.s32 0, %v2003
      %v2005 = vrot.slane %v1965, %v2004
      %v2007 = vadd.f32 %v1999, %v2005
      %v2008 = vadd.f32 %v2000, %v2005
      %v2009 = vpack.c.bf16 %v2008, %v2007
      %2011 = vset.pattern.permute.xlu0 0
      %2012 = vperm.xlu0 %2011, %v781
      %v2013 = vpop.permute.xlu0 %2012
      %v2016 = vunpack.c.l.s4 839922192
      %v2017 = vunpack.c.0.s8 %v2016
      %v2018 = vlaneseq
      %v2019 = vshrl.u32 %v2018, 7
      %v2020 = vsub.s32 %v2017, %v2019
      %v2021 = vrot.slane %v2013, %v2020
      %2023 = vset.pattern.permute.xlu0 0
      %2024 = vperm.xlu0 %2023, %v782
      %v2025 = vpop.permute.xlu0 %2024
      %v2028 = vunpack.c.l.s4 839922192
      %v2029 = vunpack.c.0.s8 %v2028
      %v2030 = vlaneseq
      %v2031 = vshrl.u32 %v2030, 7
      %v2032 = vsub.s32 %v2029, %v2031
      %v2033 = vrot.slane %v2025, %v2032
      %v2036 = vunpack.c.l.b16 %v2021
      %v2037 = vunpack.c.l.b16 %v2033
      %v2038 = vpack.c.b16 %v2037, %v2036
      %v2040 = vmul.bf16 %v2009, %v2038
      %v2042 = vshrl.u32 %v2040, 16
      %v2044 = vrot.slane %v2042, 7
      %v2045 = vshll.u32 %v2040, 16
      %v2047 = vor.u32 %v2044, %v2045
      %vm2050 = vcmask 1040384
      %vm2051 = vsmask.f32 256
      %vm2052 = vmand %vm2050, %vm2051
      %v2053 = vsel %vm2052, 0, %v2047
      %v2054 = vsel %vm2052, %v2044, 0
      %v2055 = vld [vmem:[%s14] sm:$0xf]
      %v2056 = vld [vmem:[%s14 + $0x4] sm:$0xf]
      %v2057 = vld [vmem:[%s14 + $0x8] sm:$0xf]
      %v2058 = vld [vmem:[%s14 + $0xc] sm:$0xf]
      %s2059 = scalar_lea.vmem %s14, 16
      %v2060 = vld [vmem:[%s2059] sm:$0xf]
      %v2061 = vld [vmem:[%s2059 + $0x4] sm:$0xf]
      %v2062 = vld [vmem:[%s2059 + $0x8] sm:$0xf]
      %v2063 = vld [vmem:[%s2059 + $0xc] sm:$0xf]
      %vm2064 = vsmask.f32 7424
      %v2066 = vshrl.u32 %v2053, 16
      %v2068 = vshll.u32 %v2053, 16
      %v2070 = vrot.slane %v2068, 1
      %v2071 = vor.u32 %v2066, %v2070
      %v2073 = vshll.u32 %v2054, 16
      %v2075 = vrot.slane %v2073, 1
      %v2076 = vsel %vm2064, %v2071, %v2075
      %v2081 = vunpack.c.l.b16 %v2060
      %v2082 = vunpack.c.l.b16 %v2061
      %v2083 = vunpack.c.l.b16 %v2062
      %v2084 = vunpack.c.l.b16 %v2063
      %v2085 = vpack.c.b16 %v2082, %v2081
      %v2086 = vpack.c.b16 %v2084, %v2083
      %v2090 = vsel %vm954, %v2076, 0
      %2092 = vmatprep.subr.bf16.mxu0 0
      %2093 = vmatpush1.bf16.msra.mxu0 %v2085
      %2094 = vmatprep.subr.bf16.mxu0 0
      %2095 = vmatpush1.bf16.msra.mxu0 %v2086
      %2096 = vmatprep.subr.bf16.mxu0 0
      %2097 = vmatpush1.bf16.msra.mxu0 0
      %2098 = vmatprep.subr.bf16.mxu0 0
      %2099 = vmatpush1.bf16.msra.mxu0 0
      %2100 = vmatprep.subr.bf16.mxu0 0
      %2101 = vmatpush1.bf16.msra.mxu0 0
      %2102 = vmatprep.subr.bf16.mxu0 0
      %2103 = vmatpush1.bf16.msra.mxu0 0
      %2104 = vmatprep.subr.bf16.mxu0 0
      %2105 = vmatpush1.bf16.msra.mxu0 0
      %2106 = vmatprep.subr.bf16.mxu0 0
      %2107 = vmatpush1.bf16.msra.mxu0 0
      %2108 = vmatprep.subr.bf16.mxu0 0
      %2109 = vmatpush1.bf16.msra.mxu0 0
      %2110 = vmatprep.subr.bf16.mxu0 0
      %2111 = vmatpush1.bf16.msra.mxu0 0
      %2112 = vmatprep.subr.bf16.mxu0 0
      %2113 = vmatpush1.bf16.msra.mxu0 0
      %2114 = vmatprep.subr.bf16.mxu0 0
      %2115 = vmatpush1.bf16.msra.mxu0 0
      %2116 = vmatprep.subr.bf16.mxu0 0
      %2117 = vmatpush1.bf16.msra.mxu0 0
      %2118 = vmatprep.subr.bf16.mxu0 0
      %2119 = vmatpush1.bf16.msra.mxu0 0
      %2120 = vmatprep.subr.bf16.mxu0 0
      %2121 = vmatpush1.bf16.msra.mxu0 0
      %2122 = vmatprep.subr.bf16.mxu0 0
      %2123 = vmatpush1.bf16.msra.mxu0 0
      %2124 = vmatprep.mubr.bf16.mxu0 0
      %2125 = vmatmul.mubr.bf16.gmra.mrb[0].mxu0 %v2090
      %v2126 = vpop.f32.mrb[0].mxu0
      %v2127 = vadd.f32 0.0, %v2126
      %v2128 = vpop.f32.mrb[0].mxu0
      %v2129 = vpop.f32.mrb[0].mxu0
      %v2130 = vadd.f32 0.0, %v2129
      %v2131 = vpop.f32.mrb[0].mxu0
      %2132 = vdwg.mxu0
      %v2137 = vunpack.c.l.b16 %v2055
      %v2138 = vunpack.c.l.b16 %v2056
      %v2139 = vunpack.c.l.b16 %v2057
      %v2140 = vunpack.c.l.b16 %v2058
      %v2141 = vpack.c.b16 %v2138, %v2137
      %v2142 = vpack.c.b16 %v2140, %v2139
      %v2145 = vsel %vm954, %v2053, 0
      %2147 = vmatprep.subr.bf16.mxu0 0
      %2148 = vmatpush1.bf16.msra.mxu0 %v2141
      %2149 = vmatprep.subr.bf16.mxu0 0
      %2150 = vmatpush1.bf16.msra.mxu0 %v2142
      %2151 = vmatprep.subr.bf16.mxu0 0
      %2152 = vmatpush1.bf16.msra.mxu0 0
      %2153 = vmatprep.subr.bf16.mxu0 0
      %2154 = vmatpush1.bf16.msra.mxu0 0
      %2155 = vmatprep.subr.bf16.mxu0 0
      %2156 = vmatpush1.bf16.msra.mxu0 0
      %2157 = vmatprep.subr.bf16.mxu0 0
      %2158 = vmatpush1.bf16.msra.mxu0 0
      %2159 = vmatprep.subr.bf16.mxu0 0
      %2160 = vmatpush1.bf16.msra.mxu0 0
      %2161 = vmatprep.subr.bf16.mxu0 0
      %2162 = vmatpush1.bf16.msra.mxu0 0
      %2163 = vmatprep.subr.bf16.mxu0 0
      %2164 = vmatpush1.bf16.msra.mxu0 0
      %2165 = vmatprep.subr.bf16.mxu0 0
      %2166 = vmatpush1.bf16.msra.mxu0 0
      %2167 = vmatprep.subr.bf16.mxu0 0
      %2168 = vmatpush1.bf16.msra.mxu0 0
      %2169 = vmatprep.subr.bf16.mxu0 0
      %2170 = vmatpush1.bf16.msra.mxu0 0
      %2171 = vmatprep.subr.bf16.mxu0 0
      %2172 = vmatpush1.bf16.msra.mxu0 0
      %2173 = vmatprep.subr.bf16.mxu0 0
      %2174 = vmatpush1.bf16.msra.mxu0 0
      %2175 = vmatprep.subr.bf16.mxu0 0
      %2176 = vmatpush1.bf16.msra.mxu0 0
      %2177 = vmatprep.subr.bf16.mxu0 0
      %2178 = vmatpush1.bf16.msra.mxu0 0
      %2179 = vmatprep.mubr.bf16.mxu0 0
      %2180 = vmatmul.mubr.bf16.gmra.mrb[0].mxu0 %v2145
      %v2181 = vpop.f32.mrb[0].mxu0
      %v2182 = vadd.f32 %v2127, %v2181
      %v2183 = vpop.f32.mrb[0].mxu0
      %v2184 = vpop.f32.mrb[0].mxu0
      %v2185 = vadd.f32 %v2130, %v2184
      %v2186 = vpop.f32.mrb[0].mxu0
      %2187 = vdwg.mxu0
      %s2188 = scalar_lea.vmem %s14, 32
      %v2189 = vld [vmem:[%s2188] sm:$0xf]
      %v2190 = vld [vmem:[%s2188 + $0x4] sm:$0xf]
      %v2191 = vld [vmem:[%s2188 + $0x8] sm:$0xf]
      %v2192 = vld [vmem:[%s2188 + $0xc] sm:$0xf]
      %vm2195 = vcmask 1046528
      %v2196 = vrot.slane %v2053, 1
      %v2197 = vrot.slane %v2054, 1
      %v2198 = vsel %vm2195, %v2196, %v2197
      %v2203 = vunpack.c.l.b16 %v2189
      %v2204 = vunpack.c.l.b16 %v2190
      %v2205 = vunpack.c.l.b16 %v2191
      %v2206 = vunpack.c.l.b16 %v2192
      %v2207 = vpack.c.b16 %v2204, %v2203
      %v2208 = vpack.c.b16 %v2206, %v2205
      %v2212 = vsel %vm954, %v2198, 0
      %2214 = vmatprep.subr.bf16.mxu0 0
      %2215 = vmatpush1.bf16.msra.mxu0 %v2207
      %2216 = vmatprep.subr.bf16.mxu0 0
      %2217 = vmatpush1.bf16.msra.mxu0 %v2208
      %2218 = vmatprep.subr.bf16.mxu0 0
      %2219 = vmatpush1.bf16.msra.mxu0 0
      %2220 = vmatprep.subr.bf16.mxu0 0
      %2221 = vmatpush1.bf16.msra.mxu0 0
      %2222 = vmatprep.subr.bf16.mxu0 0
      %2223 = vmatpush1.bf16.msra.mxu0 0
      %2224 = vmatprep.subr.bf16.mxu0 0
      %2225 = vmatpush1.bf16.msra.mxu0 0
      %2226 = vmatprep.subr.bf16.mxu0 0
      %2227 = vmatpush1.bf16.msra.mxu0 0
      %2228 = vmatprep.subr.bf16.mxu0 0
      %2229 = vmatpush1.bf16.msra.mxu0 0
      %2230 = vmatprep.subr.bf16.mxu0 0
      %2231 = vmatpush1.bf16.msra.mxu0 0
      %2232 = vmatprep.subr.bf16.mxu0 0
      %2233 = vmatpush1.bf16.msra.mxu0 0
      %2234 = vmatprep.subr.bf16.mxu0 0
      %2235 = vmatpush1.bf16.msra.mxu0 0
      %2236 = vmatprep.subr.bf16.mxu0 0
      %2237 = vmatpush1.bf16.msra.mxu0 0
      %2238 = vmatprep.subr.bf16.mxu0 0
      %2239 = vmatpush1.bf16.msra.mxu0 0
      %2240 = vmatprep.subr.bf16.mxu0 0
      %2241 = vmatpush1.bf16.msra.mxu0 0
      %2242 = vmatprep.subr.bf16.mxu0 0
      %2243 = vmatpush1.bf16.msra.mxu0 0
      %2244 = vmatprep.subr.bf16.mxu0 0
      %2245 = vmatpush1.bf16.msra.mxu0 0
      %2246 = vmatprep.mubr.bf16.mxu0 0
      %2247 = vmatmul.mubr.bf16.gmra.mrb[0].mxu0 %v2212
      %v2248 = vpop.f32.mrb[0].mxu0
      %v2249 = vadd.f32 0.0, %v2248
      %v2250 = vpop.f32.mrb[0].mxu0
      %v2251 = vpop.f32.mrb[0].mxu0
      %v2252 = vadd.f32 0.0, %v2251
      %v2253 = vpop.f32.mrb[0].mxu0
      %2254 = vdwg.mxu0
      %v2255 = vadd.f32 %v2182, %v2249
      %v2256 = vadd.f32 %v2185, %v2252
      %v2257 = vld [vmem:[%s15] sm:$0x1]
      %v2259 = vlaneseq
      %v2260 = vshrl.u32 %v2259, 7
      %v2261 = vsub.s32 0, %v2260
      %v2262 = vrot.slane %v2257, %v2261
      %v2264 = vadd.f32 %v2255, %v2262
      %v2265 = vadd.f32 %v2256, %v2262
      %v2266 = vmax.f32 %v2264, 0.0
      %v2267 = vmax.f32 %v2265, 0.0
      %v2268 = vmul.f32 %v2266, %v790
      %v2269 = vmul.f32 %v2267, %v795
      %v2270 = vpack.c.bf16 %v2269, %v2268
      %v2272 = vshrl.u32 %v2270, 16
      %v2274 = vrot.slane %v2272, 7
      %v2275 = vshll.u32 %v2270, 16
      %v2277 = vor.u32 %v2274, %v2275
      %v2280 = vsel %vm2052, 0, %v2277
      %v2281 = vsel %vm2052, %v2274, 0
      %v2282 = vld [vmem:[%s16] sm:$0xf]
      %v2283 = vld [vmem:[%s16 + $0x4] sm:$0xf]
      %v2284 = vld [vmem:[%s16 + $0x8] sm:$0xf]
      %v2285 = vld [vmem:[%s16 + $0xc] sm:$0xf]
      %v2286 = vld [vmem:[%s16 + $0x10] sm:$0xf]
      %v2287 = vld [vmem:[%s16 + $0x14] sm:$0xf]
      %v2288 = vld [vmem:[%s16 + $0x18] sm:$0xf]
      %v2289 = vld [vmem:[%s16 + $0x1c] sm:$0xf]
      %s2290 = scalar_lea.vmem %s16, 32
      %v2291 = vld [vmem:[%s2290] sm:$0xf]
      %v2292 = vld [vmem:[%s2290 + $0x4] sm:$0xf]
      %v2293 = vld [vmem:[%s2290 + $0x8] sm:$0xf]
      %v2294 = vld [vmem:[%s2290 + $0xc] sm:$0xf]
      %v2295 = vld [vmem:[%s2290 + $0x10] sm:$0xf]
      %v2296 = vld [vmem:[%s2290 + $0x14] sm:$0xf]
      %v2297 = vld [vmem:[%s2290 + $0x18] sm:$0xf]
      %v2298 = vld [vmem:[%s2290 + $0x1c] sm:$0xf]
      %v2300 = vshrl.u32 %v2280, 16
      %v2302 = vshll.u32 %v2280, 16
      %v2304 = vrot.slane %v2302, 1
      %v2305 = vor.u32 %v2300, %v2304
      %v2307 = vshll.u32 %v2281, 16
      %v2309 = vrot.slane %v2307, 1
      %v2310 = vsel %vm2064, %v2305, %v2309
      %v2319 = vunpack.c.l.b16 %v2291
      %v2320 = vunpack.c.l.b16 %v2292
      %v2321 = vunpack.c.l.b16 %v2293
      %v2322 = vunpack.c.l.b16 %v2294
      %v2323 = vunpack.c.l.b16 %v2295
      %v2324 = vunpack.c.l.b16 %v2296
      %v2325 = vunpack.c.l.b16 %v2297
      %v2326 = vunpack.c.l.b16 %v2298
      %v2327 = vpack.c.b16 %v2320, %v2319
      %v2328 = vpack.c.b16 %v2322, %v2321
      %v2329 = vpack.c.b16 %v2324, %v2323
      %v2330 = vpack.c.b16 %v2326, %v2325
      %vm2335 = vcmask 523264
      %v2337 = vsel %vm2335, %v2310, 0
      %2339 = vmatprep.subr.bf16.mxu0 0
      %2340 = vmatpush1.bf16.msra.mxu0 %v2327
      %2341 = vmatprep.subr.bf16.mxu0 0
      %2342 = vmatpush1.bf16.msra.mxu0 %v2328
      %2343 = vmatprep.subr.bf16.mxu0 0
      %2344 = vmatpush1.bf16.msra.mxu0 %v2329
      %2345 = vmatprep.subr.bf16.mxu0 0
      %2346 = vmatpush1.bf16.msra.mxu0 %v2330
      %2347 = vmatprep.subr.bf16.mxu0 0
      %2348 = vmatpush1.bf16.msra.mxu0 0
      %2349 = vmatprep.subr.bf16.mxu0 0
      %2350 = vmatpush1.bf16.msra.mxu0 0
      %2351 = vmatprep.subr.bf16.mxu0 0
      %2352 = vmatpush1.bf16.msra.mxu0 0
      %2353 = vmatprep.subr.bf16.mxu0 0
      %2354 = vmatpush1.bf16.msra.mxu0 0
      %2355 = vmatprep.subr.bf16.mxu0 0
      %2356 = vmatpush1.bf16.msra.mxu0 0
      %2357 = vmatprep.subr.bf16.mxu0 0
      %2358 = vmatpush1.bf16.msra.mxu0 0
      %2359 = vmatprep.subr.bf16.mxu0 0
      %2360 = vmatpush1.bf16.msra.mxu0 0
      %2361 = vmatprep.subr.bf16.mxu0 0
      %2362 = vmatpush1.bf16.msra.mxu0 0
      %2363 = vmatprep.subr.bf16.mxu0 0
      %2364 = vmatpush1.bf16.msra.mxu0 0
      %2365 = vmatprep.subr.bf16.mxu0 0
      %2366 = vmatpush1.bf16.msra.mxu0 0
      %2367 = vmatprep.subr.bf16.mxu0 0
      %2368 = vmatpush1.bf16.msra.mxu0 0
      %2369 = vmatprep.subr.bf16.mxu0 0
      %2370 = vmatpush1.bf16.msra.mxu0 0
      %2371 = vmatprep.mubr.bf16.mxu0 0
      %2372 = vmatmul.mubr.bf16.gmra.mrb[0].mxu0 %v2337
      %v2373 = vpop.f32.mrb[0].mxu0
      %v2374 = vadd.f32 0.0, %v2373
      %v2375 = vpop.f32.mrb[0].mxu0
      %v2376 = vpop.f32.mrb[0].mxu0
      %v2377 = vadd.f32 0.0, %v2376
      %v2378 = vpop.f32.mrb[0].mxu0
      %2379 = vdwg.mxu0
      %v2388 = vunpack.c.l.b16 %v2282
      %v2389 = vunpack.c.l.b16 %v2283
      %v2390 = vunpack.c.l.b16 %v2284
      %v2391 = vunpack.c.l.b16 %v2285
      %v2392 = vunpack.c.l.b16 %v2286
      %v2393 = vunpack.c.l.b16 %v2287
      %v2394 = vunpack.c.l.b16 %v2288
      %v2395 = vunpack.c.l.b16 %v2289
      %v2396 = vpack.c.b16 %v2389, %v2388
      %v2397 = vpack.c.b16 %v2391, %v2390
      %v2398 = vpack.c.b16 %v2393, %v2392
      %v2399 = vpack.c.b16 %v2395, %v2394
      %v2404 = vsel %vm2335, %v2280, 0
      %2406 = vmatprep.subr.bf16.mxu0 0
      %2407 = vmatpush1.bf16.msra.mxu0 %v2396
      %2408 = vmatprep.subr.bf16.mxu0 0
      %2409 = vmatpush1.bf16.msra.mxu0 %v2397
      %2410 = vmatprep.subr.bf16.mxu0 0
      %2411 = vmatpush1.bf16.msra.mxu0 %v2398
      %2412 = vmatprep.subr.bf16.mxu0 0
      %2413 = vmatpush1.bf16.msra.mxu0 %v2399
      %2414 = vmatprep.subr.bf16.mxu0 0
      %2415 = vmatpush1.bf16.msra.mxu0 0
      %2416 = vmatprep.subr.bf16.mxu0 0
      %2417 = vmatpush1.bf16.msra.mxu0 0
      %2418 = vmatprep.subr.bf16.mxu0 0
      %2419 = vmatpush1.bf16.msra.mxu0 0
      %2420 = vmatprep.subr.bf16.mxu0 0
      %2421 = vmatpush1.bf16.msra.mxu0 0
      %2422 = vmatprep.subr.bf16.mxu0 0
      %2423 = vmatpush1.bf16.msra.mxu0 0
      %2424 = vmatprep.subr.bf16.mxu0 0
      %2425 = vmatpush1.bf16.msra.mxu0 0
      %2426 = vmatprep.subr.bf16.mxu0 0
      %2427 = vmatpush1.bf16.msra.mxu0 0
      %2428 = vmatprep.subr.bf16.mxu0 0
      %2429 = vmatpush1.bf16.msra.mxu0 0
      %2430 = vmatprep.subr.bf16.mxu0 0
      %2431 = vmatpush1.bf16.msra.mxu0 0
      %2432 = vmatprep.subr.bf16.mxu0 0
      %2433 = vmatpush1.bf16.msra.mxu0 0
      %2434 = vmatprep.subr.bf16.mxu0 0
      %2435 = vmatpush1.bf16.msra.mxu0 0
      %2436 = vmatprep.subr.bf16.mxu0 0
      %2437 = vmatpush1.bf16.msra.mxu0 0
      %2438 = vmatprep.mubr.bf16.mxu0 0
      %2439 = vmatmul.mubr.bf16.gmra.mrb[0].mxu0 %v2404
      %v2440 = vpop.f32.mrb[0].mxu0
      %v2441 = vadd.f32 %v2374, %v2440
      %v2442 = vpop.f32.mrb[0].mxu0
      %v2443 = vpop.f32.mrb[0].mxu0
      %v2444 = vadd.f32 %v2377, %v2443
      %v2445 = vpop.f32.mrb[0].mxu0
      %2446 = vdwg.mxu0
      %s2447 = scalar_lea.vmem %s16, 64
      %v2448 = vld [vmem:[%s2447] sm:$0xf]
      %v2449 = vld [vmem:[%s2447 + $0x4] sm:$0xf]
      %v2450 = vld [vmem:[%s2447 + $0x8] sm:$0xf]
      %v2451 = vld [vmem:[%s2447 + $0xc] sm:$0xf]
      %v2452 = vld [vmem:[%s2447 + $0x10] sm:$0xf]
      %v2453 = vld [vmem:[%s2447 + $0x14] sm:$0xf]
      %v2454 = vld [vmem:[%s2447 + $0x18] sm:$0xf]
      %v2455 = vld [vmem:[%s2447 + $0x1c] sm:$0xf]
      %v2458 = vrot.slane %v2280, 1
      %v2459 = vrot.slane %v2281, 1
      %v2460 = vsel %vm2195, %v2458, %v2459
      %v2469 = vunpack.c.l.b16 %v2448
      %v2470 = vunpack.c.l.b16 %v2449
      %v2471 = vunpack.c.l.b16 %v2450
      %v2472 = vunpack.c.l.b16 %v2451
      %v2473 = vunpack.c.l.b16 %v2452
      %v2474 = vunpack.c.l.b16 %v2453
      %v2475 = vunpack.c.l.b16 %v2454
      %v2476 = vunpack.c.l.b16 %v2455
      %v2477 = vpack.c.b16 %v2470, %v2469
      %v2478 = vpack.c.b16 %v2472, %v2471
      %v2479 = vpack.c.b16 %v2474, %v2473
      %v2480 = vpack.c.b16 %v2476, %v2475
      %v2486 = vsel %vm2335, %v2460, 0
      %2488 = vmatprep.subr.bf16.mxu0 0
      %2489 = vmatpush1.bf16.msra.mxu0 %v2477
      %2490 = vmatprep.subr.bf16.mxu0 0
      %2491 = vmatpush1.bf16.msra.mxu0 %v2478
      %2492 = vmatprep.subr.bf16.mxu0 0
      %2493 = vmatpush1.bf16.msra.mxu0 %v2479
      %2494 = vmatprep.subr.bf16.mxu0 0
      %2495 = vmatpush1.bf16.msra.mxu0 %v2480
      %2496 = vmatprep.subr.bf16.mxu0 0
      %2497 = vmatpush1.bf16.msra.mxu0 0
      %2498 = vmatprep.subr.bf16.mxu0 0
      %2499 = vmatpush1.bf16.msra.mxu0 0
      %2500 = vmatprep.subr.bf16.mxu0 0
      %2501 = vmatpush1.bf16.msra.mxu0 0
      %2502 = vmatprep.subr.bf16.mxu0 0
      %2503 = vmatpush1.bf16.msra.mxu0 0
      %2504 = vmatprep.subr.bf16.mxu0 0
      %2505 = vmatpush1.bf16.msra.mxu0 0
      %2506 = vmatprep.subr.bf16.mxu0 0
      %2507 = vmatpush1.bf16.msra.mxu0 0
      %2508 = vmatprep.subr.bf16.mxu0 0
      %2509 = vmatpush1.bf16.msra.mxu0 0
      %2510 = vmatprep.subr.bf16.mxu0 0
      %2511 = vmatpush1.bf16.msra.mxu0 0
      %2512 = vmatprep.subr.bf16.mxu0 0
      %2513 = vmatpush1.bf16.msra.mxu0 0
      %2514 = vmatprep.subr.bf16.mxu0 0
      %2515 = vmatpush1.bf16.msra.mxu0 0
      %2516 = vmatprep.subr.bf16.mxu0 0
      %2517 = vmatpush1.bf16.msra.mxu0 0
      %2518 = vmatprep.subr.bf16.mxu0 0
      %2519 = vmatpush1.bf16.msra.mxu0 0
      %2520 = vmatprep.mubr.bf16.mxu0 0
      %2521 = vmatmul.mubr.bf16.gmra.mrb[0].mxu0 %v2486
      %v2522 = vpop.f32.mrb[0].mxu0
      %v2523 = vadd.f32 0.0, %v2522
      %v2524 = vpop.f32.mrb[0].mxu0
      %v2525 = vpop.f32.mrb[0].mxu0
      %v2526 = vadd.f32 0.0, %v2525
      %v2527 = vpop.f32.mrb[0].mxu0
      %2528 = vdwg.mxu0
      %v2529 = vadd.f32 %v2441, %v2523
      %v2530 = vadd.f32 %v2444, %v2526
      %v2531 = vld [vmem:[%s17] sm:$0x1]
      %v2533 = vlaneseq
      %v2534 = vshrl.u32 %v2533, 7
      %v2535 = vsub.s32 0, %v2534
      %v2536 = vrot.slane %v2531, %v2535
      %v2538 = vadd.f32 %v2529, %v2536
      %v2539 = vadd.f32 %v2530, %v2536
      %v2540 = vmul.f32 %v2538, %v790
      %v2541 = vmul.f32 %v2539, %v795
      %v2542 = vunpack.c.l.bf16 %v2009
      %v2543 = vunpack.c.h.bf16 %v2009
      %v2544 = vadd.f32 %v2542, %v2540
      %v2545 = vadd.f32 %v2543, %v2541
      %v2546 = vld [vmem:[%s18] sm:$0x1]
      %v2547 = vld [vmem:[%s19] sm:$0x1]
      %v2548 = vsel %vm954, %v2544, 0.0
      %2549 = vadd.xlane.f32.xlu0 %v2548
      %v2550 = vpop.xlane.xlu0 %2549
      %v2551 = vsel %vm954, %v2545, 0.0
      %2552 = vadd.xlane.f32.xlu0 %v2551
      %v2553 = vpop.xlane.xlu0 %2552
      %v2554 = vmul.f32 %v2550, %v1972
      %v2555 = vmul.f32 %v2553, %v1972
      %v2556 = vsub.f32 %v2544, %v2554
      %v2557 = vsub.f32 %v2545, %v2555
      %v2558 = vmul.f32 %v2556, %v2556
      %v2559 = vmul.f32 %v2557, %v2557
      %v2560 = vsel %vm954, %v2558, 0.0
      %2561 = vadd.xlane.f32.xlu0 %v2560
      %v2562 = vpop.xlane.xlu0 %2561
      %v2563 = vsel %vm954, %v2559, 0.0
      %2564 = vadd.xlane.f32.xlu0 %v2563
      %v2565 = vpop.xlane.xlu0 %2564
      %v2566 = vmul.f32 %v2562, %v1972
      %v2567 = vmul.f32 %v2565, %v1972
      %v2568 = vadd.f32 %v2566, 1e-05
      %v2569 = vadd.f32 %v2567, 1e-05
      %v2570 = vrsqrt.pop %v2568
      %v2571 = vrsqrt.pop %v2569
      %v2572 = vmul.f32 %v2556, %v2570
      %v2573 = vmul.f32 %v2557, %v2571
      %v2575 = vlaneseq
      %v2576 = vshrl.u32 %v2575, 7
      %v2577 = vsub.s32 0, %v2576
      %v2578 = vrot.slane %v2546, %v2577
      %v2580 = vmul.f32 %v2572, %v2578
      %v2581 = vmul.f32 %v2573, %v2578
      %v2583 = vlaneseq
      %v2584 = vshrl.u32 %v2583, 7
      %v2585 = vsub.s32 0, %v2584
      %v2586 = vrot.slane %v2547, %v2585
      %v2588 = vadd.f32 %v2580, %v2586
      %v2589 = vadd.f32 %v2581, %v2586
      %v2590 = vpack.c.bf16 %v2589, %v2588
      %s2591 = scalar_lea.vmem %s6, 16
      %v2592 = vld [vmem:[%s2591] sm:$0xf]
      %v2593 = vld [vmem:[%s2591 + $0x4] sm:$0xf]
      %v2594 = vld [vmem:[%s2591 + $0x8] sm:$0xf]
      %v2595 = vld [vmem:[%s2591 + $0xc] sm:$0xf]
      %s2596 = scalar_lea.vmem %s7, 1
      %v2597 = vld [vmem:[%s2596] sm:$0x1]
      %v2599 = vlaneseq
      %v2600 = vshrl.u32 %v2599, 7
      %v2601 = vsub.s32 0, %v2600
      %v2602 = vrot.slane %v2597, %v2601
      %v2608 = vunpack.c.l.b16 %v2592
      %v2609 = vunpack.c.l.b16 %v2593
      %v2610 = vunpack.c.l.b16 %v2594
      %v2611 = vunpack.c.l.b16 %v2595
      %v2612 = vpack.c.b16 %v2609, %v2608
      %v2613 = vpack.c.b16 %v2611, %v2610
      %v2617 = vsel %vm954, %v2590, 0
      %2619 = vmatprep.subr.bf16.mxu0 0
      %2620 = vmatpush1.bf16.msra.mxu0 %v2612
      %2621 = vmatprep.subr.bf16.mxu0 0
      %2622 = vmatpush1.bf16.msra.mxu0 %v2613
      %2623 = vmatprep.subr.bf16.mxu0 0
      %2624 = vmatpush1.bf16.msra.mxu0 0
      %2625 = vmatprep.subr.bf16.mxu0 0
      %2626 = vmatpush1.bf16.msra.mxu0 0
      %2627 = vmatprep.subr.bf16.mxu0 0
      %2628 = vmatpush1.bf16.msra.mxu0 0
      %2629 = vmatprep.subr.bf16.mxu0 0
      %2630 = vmatpush1.bf16.msra.mxu0 0
      %2631 = vmatprep.subr.bf16.mxu0 0
      %2632 = vmatpush1.bf16.msra.mxu0 0
      %2633 = vmatprep.subr.bf16.mxu0 0
      %2634 = vmatpush1.bf16.msra.mxu0 0
      %2635 = vmatprep.subr.bf16.mxu0 0
      %2636 = vmatpush1.bf16.msra.mxu0 0
      %2637 = vmatprep.subr.bf16.mxu0 0
      %2638 = vmatpush1.bf16.msra.mxu0 0
      %2639 = vmatprep.subr.bf16.mxu0 0
      %2640 = vmatpush1.bf16.msra.mxu0 0
      %2641 = vmatprep.subr.bf16.mxu0 0
      %2642 = vmatpush1.bf16.msra.mxu0 0
      %2643 = vmatprep.subr.bf16.mxu0 0
      %2644 = vmatpush1.bf16.msra.mxu0 0
      %2645 = vmatprep.subr.bf16.mxu0 0
      %2646 = vmatpush1.bf16.msra.mxu0 0
      %2647 = vmatprep.subr.bf16.mxu0 0
      %2648 = vmatpush1.bf16.msra.mxu0 0
      %2649 = vmatprep.subr.bf16.mxu0 0
      %2650 = vmatpush1.bf16.msra.mxu0 0
      %2651 = vmatprep.mubr.bf16.mxu0 0
      %2652 = vmatmul.mubr.bf16.gmra.mrb[0].mxu0 %v2617
      %v2653 = vpop.f32.mrb[0].mxu0
      %v2654 = vadd.f32 %v2602, %v2653
      %v2655 = vpop.f32.mrb[0].mxu0
      %v2656 = vpop.f32.mrb[0].mxu0
      %v2657 = vadd.f32 %v2602, %v2656
      %v2658 = vpop.f32.mrb[0].mxu0
      %2659 = vdwg.mxu0
      %s2660 = scalar_lea.vmem %s8, 8
      %v2661 = vld [vmem:[%s2660] sm:$0xf]
      %v2662 = vld [vmem:[%s2660 + $0x4] sm:$0x1]
      %s2663 = scalar_lea.vmem %s9, 8
      %v2664 = vld [vmem:[%s2663] sm:$0xf]
      %v2665 = vld [vmem:[%s2663 + $0x4] sm:$0x1]
      %s2666 = scalar_lea.vmem %s10, 16
      %v2667 = vld [vmem:[%s2666] sm:$0xf]
      %v2668 = vld [vmem:[%s2666 + $0x4] sm:$0xf]
      %v2669 = vld [vmem:[%s2666 + $0x8] sm:$0xf]
      %v2670 = vld [vmem:[%s2666 + $0xc] sm:$0xf]
      %v2671 = vmul.f32 %v2654, 0.25
      %v2672 = vmul.f32 %v2657, 0.25
      %v2673 = vpack.c.bf16 %v2672, %v2671
      %v2674 = vpack.c.bf16 %v2657, %v2654
      %v2677 = vunpack.c.l.b16 %v2661
      %v2678 = vunpack.c.l.b16 %v2662
      %v2679 = vpack.c.b16 %v2678, %v2677
      %v2681 = vsel %vm1016, %v2673, 0
      %v2684 = vsel %vm1016, %v2679, 0
      %2686 = vmatprep.subr.bf16.mxu0 0
      %2687 = vmatpush1.bf16.xpose.msra.mxu0 %v2684
      %2688 = vmatprep.subr.bf16.mxu0 0
      %2689 = vmatpush1.bf16.xpose.msra.mxu0 0
      %2690 = vmatprep.subr.bf16.mxu0 0
      %2691 = vmatpush1.bf16.xpose.msra.mxu0 0
      %2692 = vmatprep.subr.bf16.mxu0 0
      %2693 = vmatpush1.bf16.xpose.msra.mxu0 0
      %2694 = vmatprep.subr.bf16.mxu0 0
      %2695 = vmatpush1.bf16.xpose.msra.mxu0 0
      %2696 = vmatprep.subr.bf16.mxu0 0
      %2697 = vmatpush1.bf16.xpose.msra.mxu0 0
      %2698 = vmatprep.subr.bf16.mxu0 0
      %2699 = vmatpush1.bf16.xpose.msra.mxu0 0
      %2700 = vmatprep.subr.bf16.mxu0 0
      %2701 = vmatpush1.bf16.xpose.msra.mxu0 0
      %2702 = vmatprep.subr.bf16.mxu0 0
      %2703 = vmatpush1.bf16.xpose.msra.mxu0 0
      %2704 = vmatprep.subr.bf16.mxu0 0
      %2705 = vmatpush1.bf16.xpose.msra.mxu0 0
      %2706 = vmatprep.subr.bf16.mxu0 0
      %2707 = vmatpush1.bf16.xpose.msra.mxu0 0
      %2708 = vmatprep.subr.bf16.mxu0 0
      %2709 = vmatpush1.bf16.xpose.msra.mxu0 0
      %2710 = vmatprep.subr.bf16.mxu0 0
      %2711 = vmatpush1.bf16.xpose.msra.mxu0 0
      %2712 = vmatprep.subr.bf16.mxu0 0
      %2713 = vmatpush1.bf16.xpose.msra.mxu0 0
      %2714 = vmatprep.subr.bf16.mxu0 0
      %2715 = vmatpush1.bf16.xpose.msra.mxu0 0
      %2716 = vmatprep.subr.bf16.mxu0 0
      %2717 = vmatpush1.bf16.xpose.msra.mxu0 0
      %2718 = vmatprep.mubr.bf16.mxu0 0
      %2719 = vmatmul.mubr.bf16.gmra.mrb[0].mxu0 %v2681
      %v2720 = vpop.f32.mrb[0].mxu0
      %v2721 = vadd.f32 0.0, %v2720
      %v2722 = vpop.f32.mrb[0].mxu0
      %v2723 = vpop.f32.mrb[0].mxu0
      %v2724 = vadd.f32 0.0, %v2723
      %v2725 = vpop.f32.mrb[0].mxu0
      %2726 = vdwg.mxu0
      %2728 = vset.pattern.permute.xlu0 0
      %2729 = vperm.xlu0 %2728, %v2721
      %v2730 = vpop.permute.xlu0 %2729
      %2733 = vset.pattern.permute.xlu0 0
      %2734 = vperm.xlu0 %2733, %v2724
      %v2735 = vpop.permute.xlu0 %2734
      %v2737 = vmul.f32 %v2730, %v816
      %v2738 = vmul.f32 %v2735, %v817
      %2740 = vrot.lane.b32.xlu0 %v2674, 96
      %v2741 = vpop.permute.xlu0 %2740
      %v2743 = vsel %vm1016, %v2741, 0
      %2745 = vmatprep.subr.bf16.mxu0 0
      %2746 = vmatpush1.bf16.xpose.msra.mxu0 %v2743
      %2747 = vmatprep.subr.bf16.mxu0 0
      %2748 = vmatpush1.bf16.xpose.msra.mxu0 0
      %2749 = vmatprep.subr.bf16.mxu0 0
      %2750 = vmatpush1.bf16.xpose.msra.mxu0 0
      %2751 = vmatprep.subr.bf16.mxu0 0
      %2752 = vmatpush1.bf16.xpose.msra.mxu0 0
      %2753 = vmatprep.subr.bf16.mxu0 0
      %2754 = vmatpush1.bf16.xpose.msra.mxu0 0
      %2755 = vmatprep.subr.bf16.mxu0 0
      %2756 = vmatpush1.bf16.xpose.msra.mxu0 0
      %2757 = vmatprep.subr.bf16.mxu0 0
      %2758 = vmatpush1.bf16.xpose.msra.mxu0 0
      %2759 = vmatprep.subr.bf16.mxu0 0
      %2760 = vmatpush1.bf16.xpose.msra.mxu0 0
      %2761 = vmatprep.subr.bf16.mxu0 0
      %2762 = vmatpush1.bf16.xpose.msra.mxu0 0
      %2763 = vmatprep.subr.bf16.mxu0 0
      %2764 = vmatpush1.bf16.xpose.msra.mxu0 0
      %2765 = vmatprep.subr.bf16.mxu0 0
      %2766 = vmatpush1.bf16.xpose.msra.mxu0 0
      %2767 = vmatprep.subr.bf16.mxu0 0
      %2768 = vmatpush1.bf16.xpose.msra.mxu0 0
      %2769 = vmatprep.subr.bf16.mxu0 0
      %2770 = vmatpush1.bf16.xpose.msra.mxu0 0
      %2771 = vmatprep.subr.bf16.mxu0 0
      %2772 = vmatpush1.bf16.xpose.msra.mxu0 0
      %2773 = vmatprep.subr.bf16.mxu0 0
      %2774 = vmatpush1.bf16.xpose.msra.mxu0 0
      %2775 = vmatprep.subr.bf16.mxu0 0
      %2776 = vmatpush1.bf16.xpose.msra.mxu0 0
      %2777 = vmatprep.mubr.bf16.mxu0 0
      %2778 = vmatmul.mubr.bf16.gmra.mrb[0].mxu0 %v2681
      %v2779 = vpop.f32.mrb[0].mxu0
      %v2780 = vadd.f32 %v2737, %v2779
      %v2781 = vpop.f32.mrb[0].mxu0
      %v2782 = vpop.f32.mrb[0].mxu0
      %v2783 = vadd.f32 %v2738, %v2782
      %v2784 = vpop.f32.mrb[0].mxu0
      %2785 = vdwg.mxu0
      %2786 = vset.pattern.permute.xlu0 1
      %2787 = vperm.xlu0 %2786, %v2721
      %v2788 = vpop.permute.xlu0 %2787
      %2790 = vset.pattern.permute.xlu0 1
      %2791 = vperm.xlu0 %2790, %v2724
      %v2792 = vpop.permute.xlu0 %2791
      %v2794 = vmul.f32 %v2788, %v822
      %v2795 = vmul.f32 %v2792, %v823
      %v2796 = vadd.f32 %v2780, %v2794
      %v2797 = vadd.f32 %v2783, %v2795
      %2798 = vset.pattern.permute.xlu0 2
      %2799 = vperm.xlu0 %2798, %v2721
      %v2800 = vpop.permute.xlu0 %2799
      %2802 = vset.pattern.permute.xlu0 2
      %2803 = vperm.xlu0 %2802, %v2724
      %v2804 = vpop.permute.xlu0 %2803
      %v2806 = vmul.f32 %v2800, %v828
      %v2807 = vmul.f32 %v2804, %v829
      %v2808 = vadd.f32 %v2796, %v2806
      %v2809 = vadd.f32 %v2797, %v2807
      %2810 = vset.pattern.permute.xlu0 3
      %2811 = vperm.xlu0 %2810, %v2721
      %v2812 = vpop.permute.xlu0 %2811
      %2814 = vset.pattern.permute.xlu0 3
      %2815 = vperm.xlu0 %2814, %v2724
      %v2816 = vpop.permute.xlu0 %2815
      %v2818 = vmul.f32 %v2812, %v834
      %v2819 = vmul.f32 %v2816, %v835
      %v2820 = vadd.f32 %v2808, %v2818
      %v2821 = vadd.f32 %v2809, %v2819
      %2822 = vset.pattern.permute.xlu0 4
      %2823 = vperm.xlu0 %2822, %v2721
      %v2824 = vpop.permute.xlu0 %2823
      %2826 = vset.pattern.permute.xlu0 4
      %2827 = vperm.xlu0 %2826, %v2724
      %v2828 = vpop.permute.xlu0 %2827
      %v2830 = vmul.f32 %v2824, %v840
      %v2831 = vmul.f32 %v2828, %v841
      %v2832 = vadd.f32 %v2820, %v2830
      %v2833 = vadd.f32 %v2821, %v2831
      %2834 = vset.pattern.permute.xlu0 5
      %2835 = vperm.xlu0 %2834, %v2721
      %v2836 = vpop.permute.xlu0 %2835
      %2838 = vset.pattern.permute.xlu0 5
      %2839 = vperm.xlu0 %2838, %v2724
      %v2840 = vpop.permute.xlu0 %2839
      %v2842 = vmul.f32 %v2836, %v846
      %v2843 = vmul.f32 %v2840, %v847
      %v2844 = vadd.f32 %v2832, %v2842
      %v2845 = vadd.f32 %v2833, %v2843
      %2846 = vset.pattern.permute.xlu0 6
      %2847 = vperm.xlu0 %2846, %v2721
      %v2848 = vpop.permute.xlu0 %2847
      %2850 = vset.pattern.permute.xlu0 6
      %2851 = vperm.xlu0 %2850, %v2724
      %v2852 = vpop.permute.xlu0 %2851
      %v2854 = vmul.f32 %v2848, %v852
      %v2855 = vmul.f32 %v2852, %v853
      %v2856 = vadd.f32 %v2844, %v2854
      %v2857 = vadd.f32 %v2845, %v2855
      %2858 = vset.pattern.permute.xlu0 7
      %2859 = vperm.xlu0 %2858, %v2721
      %v2860 = vpop.permute.xlu0 %2859
      %2862 = vset.pattern.permute.xlu0 7
      %2863 = vperm.xlu0 %2862, %v2724
      %v2864 = vpop.permute.xlu0 %2863
      %v2866 = vmul.f32 %v2860, %v858
      %v2867 = vmul.f32 %v2864, %v859
      %v2868 = vadd.f32 %v2856, %v2866
      %v2869 = vadd.f32 %v2857, %v2867
      %2870 = vset.pattern.permute.xlu0 8
      %2871 = vperm.xlu0 %2870, %v2721
      %v2872 = vpop.permute.xlu0 %2871
      %2874 = vset.pattern.permute.xlu0 8
      %2875 = vperm.xlu0 %2874, %v2724
      %v2876 = vpop.permute.xlu0 %2875
      %v2878 = vmul.f32 %v2872, %v864
      %v2879 = vmul.f32 %v2876, %v865
      %v2880 = vadd.f32 %v2868, %v2878
      %v2881 = vadd.f32 %v2869, %v2879
      %v2882 = vsel %vm803, -10000.0, %v2880
      %v2883 = vsel %vm804, -10000.0, %v2881
      %v2884 = vsel %vm1016, %v2882, -inf
      %2885 = vmax.xlane.f32.xlu0 %v2884
      %v2886 = vpop.xlane.xlu0 %2885
      %v2887 = vsel %vm1016, %v2883, -inf
      %2888 = vmax.xlane.f32.xlu0 %v2887
      %v2889 = vpop.xlane.xlu0 %2888
      %v2890 = vsub.f32 %v2882, %v2886
      %v2891 = vsub.f32 %v2883, %v2889
      %v2892 = vmul.f32 %v2890, 1.442695
      %v2893 = vpow.pop %v2892
      %v2894 = vmul.f32 %v2891, 1.442695
      %v2895 = vpow.pop %v2894
      %v2896 = vsel %vm1016, %v2893, 0.0
      %2897 = vadd.xlane.f32.xlu0 %v2896
      %v2898 = vpop.xlane.xlu0 %2897
      %v2899 = vsel %vm1016, %v2895, 0.0
      %2900 = vadd.xlane.f32.xlu0 %v2899
      %v2901 = vpop.xlane.xlu0 %2900
      %v2902 = vrcp.pop %v2898
      %v2903 = vrcp.pop %v2901
      %v2904 = vmul.f32 %v2893, %v2902
      %v2905 = vmul.f32 %v2895, %v2903
      %v2906 = vpack.c.bf16 %v2905, %v2904
      %v2907 = vmul.f32 %v2904, %v816
      %v2908 = vmul.f32 %v2905, %v817
      %v2909 = vsel %vm1016, %v2907, 0.0
      %2910 = vadd.xlane.f32.xlu0 %v2909
      %v2911 = vpop.xlane.xlu0 %2910
      %v2912 = vsel %vm1016, %v2908, 0.0
      %2913 = vadd.xlane.f32.xlu0 %v2912
      %v2914 = vpop.xlane.xlu0 %2913
      %v2915 = vmul.f32 %v2904, %v822
      %v2916 = vmul.f32 %v2905, %v823
      %v2917 = vsel %vm1016, %v2915, 0.0
      %2918 = vadd.xlane.f32.xlu0 %v2917
      %v2919 = vpop.xlane.xlu0 %2918
      %v2920 = vsel %vm1016, %v2916, 0.0
      %2921 = vadd.xlane.f32.xlu0 %v2920
      %v2922 = vpop.xlane.xlu0 %2921
      %v2923 = vmul.f32 %v2904, %v828
      %v2924 = vmul.f32 %v2905, %v829
      %v2925 = vsel %vm1016, %v2923, 0.0
      %2926 = vadd.xlane.f32.xlu0 %v2925
      %v2927 = vpop.xlane.xlu0 %2926
      %v2928 = vsel %vm1016, %v2924, 0.0
      %2929 = vadd.xlane.f32.xlu0 %v2928
      %v2930 = vpop.xlane.xlu0 %2929
      %v2931 = vmul.f32 %v2904, %v834
      %v2932 = vmul.f32 %v2905, %v835
      %v2933 = vsel %vm1016, %v2931, 0.0
      %2934 = vadd.xlane.f32.xlu0 %v2933
      %v2935 = vpop.xlane.xlu0 %2934
      %v2936 = vsel %vm1016, %v2932, 0.0
      %2937 = vadd.xlane.f32.xlu0 %v2936
      %v2938 = vpop.xlane.xlu0 %2937
      %v2939 = vmul.f32 %v2904, %v840
      %v2940 = vmul.f32 %v2905, %v841
      %v2941 = vsel %vm1016, %v2939, 0.0
      %2942 = vadd.xlane.f32.xlu0 %v2941
      %v2943 = vpop.xlane.xlu0 %2942
      %v2944 = vsel %vm1016, %v2940, 0.0
      %2945 = vadd.xlane.f32.xlu0 %v2944
      %v2946 = vpop.xlane.xlu0 %2945
      %v2947 = vmul.f32 %v2904, %v846
      %v2948 = vmul.f32 %v2905, %v847
      %v2949 = vsel %vm1016, %v2947, 0.0
      %2950 = vadd.xlane.f32.xlu0 %v2949
      %v2951 = vpop.xlane.xlu0 %2950
      %v2952 = vsel %vm1016, %v2948, 0.0
      %2953 = vadd.xlane.f32.xlu0 %v2952
      %v2954 = vpop.xlane.xlu0 %2953
      %v2955 = vmul.f32 %v2904, %v852
      %v2956 = vmul.f32 %v2905, %v853
      %v2957 = vsel %vm1016, %v2955, 0.0
      %2958 = vadd.xlane.f32.xlu0 %v2957
      %v2959 = vpop.xlane.xlu0 %2958
      %v2960 = vsel %vm1016, %v2956, 0.0
      %2961 = vadd.xlane.f32.xlu0 %v2960
      %v2962 = vpop.xlane.xlu0 %2961
      %v2963 = vmul.f32 %v2904, %v858
      %v2964 = vmul.f32 %v2905, %v859
      %v2965 = vsel %vm1016, %v2963, 0.0
      %2966 = vadd.xlane.f32.xlu0 %v2965
      %v2967 = vpop.xlane.xlu0 %2966
      %v2968 = vsel %vm1016, %v2964, 0.0
      %2969 = vadd.xlane.f32.xlu0 %v2968
      %v2970 = vpop.xlane.xlu0 %2969
      %v2971 = vmul.f32 %v2904, %v864
      %v2972 = vmul.f32 %v2905, %v865
      %v2973 = vsel %vm1016, %v2971, 0.0
      %2974 = vadd.xlane.f32.xlu0 %v2973
      %v2975 = vpop.xlane.xlu0 %2974
      %v2976 = vsel %vm1016, %v2972, 0.0
      %2977 = vadd.xlane.f32.xlu0 %v2976
      %v2978 = vpop.xlane.xlu0 %2977
      %v2979 = vsel %vm1316, %v2911, %v2919
      %v2980 = vsel %vm1316, %v2914, %v2922
      %v2981 = vsel %vm1319, %v2979, %v2927
      %v2982 = vsel %vm1319, %v2980, %v2930
      %v2983 = vsel %vm1322, %v2981, %v2935
      %v2984 = vsel %vm1322, %v2982, %v2938
      %v2985 = vsel %vm1325, %v2983, %v2943
      %v2986 = vsel %vm1325, %v2984, %v2946
      %v2987 = vsel %vm1328, %v2985, %v2951
      %v2988 = vsel %vm1328, %v2986, %v2954
      %v2989 = vsel %vm1331, %v2987, %v2959
      %v2990 = vsel %vm1331, %v2988, %v2962
      %v2991 = vsel %vm1334, %v2989, %v2967
      %v2992 = vsel %vm1334, %v2990, %v2970
      %v2993 = vsel %vm879, %v2991, %v2975
      %v2994 = vsel %vm879, %v2992, %v2978
      %v2995 = vpack.c.bf16 %v2994, %v2993
      %v2998 = vunpack.c.l.b16 %v2664
      %v2999 = vunpack.c.l.b16 %v2665
      %v3000 = vpack.c.b16 %v2999, %v2998
      %v3002 = vsel %vm1345, %v2995, 0
      %v3005 = vand.u32 %v3000, %v1351
      %3007 = vmatprep.subr.bf16.mxu0 0
      %3008 = vmatpush1.bf16.msra.mxu0 %v3005
      %3009 = vmatprep.subr.bf16.mxu0 0
      %3010 = vmatpush1.bf16.msra.mxu0 0
      %3011 = vmatprep.subr.bf16.mxu0 0
      %3012 = vmatpush1.bf16.msra.mxu0 0
      %3013 = vmatprep.subr.bf16.mxu0 0
      %3014 = vmatpush1.bf16.msra.mxu0 0
      %3015 = vmatprep.subr.bf16.mxu0 0
      %3016 = vmatpush1.bf16.msra.mxu0 0
      %3017 = vmatprep.subr.bf16.mxu0 0
      %3018 = vmatpush1.bf16.msra.mxu0 0
      %3019 = vmatprep.subr.bf16.mxu0 0
      %3020 = vmatpush1.bf16.msra.mxu0 0
      %3021 = vmatprep.subr.bf16.mxu0 0
      %3022 = vmatpush1.bf16.msra.mxu0 0
      %3023 = vmatprep.subr.bf16.mxu0 0
      %3024 = vmatpush1.bf16.msra.mxu0 0
      %3025 = vmatprep.subr.bf16.mxu0 0
      %3026 = vmatpush1.bf16.msra.mxu0 0
      %3027 = vmatprep.subr.bf16.mxu0 0
      %3028 = vmatpush1.bf16.msra.mxu0 0
      %3029 = vmatprep.subr.bf16.mxu0 0
      %3030 = vmatpush1.bf16.msra.mxu0 0
      %3031 = vmatprep.subr.bf16.mxu0 0
      %3032 = vmatpush1.bf16.msra.mxu0 0
      %3033 = vmatprep.subr.bf16.mxu0 0
      %3034 = vmatpush1.bf16.msra.mxu0 0
      %3035 = vmatprep.subr.bf16.mxu0 0
      %3036 = vmatpush1.bf16.msra.mxu0 0
      %3037 = vmatprep.subr.bf16.mxu0 0
      %3038 = vmatpush1.bf16.msra.mxu0 0
      %3039 = vmatprep.mubr.bf16.mxu0 0
      %3040 = vmatmul.mubr.bf16.gmra.mrb[0].mxu0 %v3002
      %v3041 = vpop.f32.mrb[0].mxu0
      %v3042 = vadd.f32 0.0, %v3041
      %v3043 = vpop.f32.mrb[0].mxu0
      %v3044 = vpop.f32.mrb[0].mxu0
      %v3045 = vadd.f32 0.0, %v3044
      %v3046 = vpop.f32.mrb[0].mxu0
      %3047 = vdwg.mxu0
      %3048 = vrot.lane.b32.xlu0 %v2674, 64
      %v3049 = vpop.permute.xlu0 %3048
      %v3052 = vsel %vm1016, %v2906, 0
      %3054 = vmatprep.subr.bf16.mxu0 0
      %3055 = vmatpush1.bf16.msra.mxu0 %v3049
      %3056 = vmatprep.subr.bf16.mxu0 0
      %3057 = vmatpush1.bf16.msra.mxu0 0
      %3058 = vmatprep.subr.bf16.mxu0 0
      %3059 = vmatpush1.bf16.msra.mxu0 0
      %3060 = vmatprep.subr.bf16.mxu0 0
      %3061 = vmatpush1.bf16.msra.mxu0 0
      %3062 = vmatprep.subr.bf16.mxu0 0
      %3063 = vmatpush1.bf16.msra.mxu0 0
      %3064 = vmatprep.subr.bf16.mxu0 0
      %3065 = vmatpush1.bf16.msra.mxu0 0
      %3066 = vmatprep.subr.bf16.mxu0 0
      %3067 = vmatpush1.bf16.msra.mxu0 0
      %3068 = vmatprep.subr.bf16.mxu0 0
      %3069 = vmatpush1.bf16.msra.mxu0 0
      %3070 = vmatprep.subr.bf16.mxu0 0
      %3071 = vmatpush1.bf16.msra.mxu0 0
      %3072 = vmatprep.subr.bf16.mxu0 0
      %3073 = vmatpush1.bf16.msra.mxu0 0
      %3074 = vmatprep.subr.bf16.mxu0 0
      %3075 = vmatpush1.bf16.msra.mxu0 0
      %3076 = vmatprep.subr.bf16.mxu0 0
      %3077 = vmatpush1.bf16.msra.mxu0 0
      %3078 = vmatprep.subr.bf16.mxu0 0
      %3079 = vmatpush1.bf16.msra.mxu0 0
      %3080 = vmatprep.subr.bf16.mxu0 0
      %3081 = vmatpush1.bf16.msra.mxu0 0
      %3082 = vmatprep.subr.bf16.mxu0 0
      %3083 = vmatpush1.bf16.msra.mxu0 0
      %3084 = vmatprep.subr.bf16.mxu0 0
      %3085 = vmatpush1.bf16.msra.mxu0 0
      %3086 = vmatprep.mubr.bf16.mxu0 0
      %3087 = vmatmul.mubr.bf16.gmra.mrb[0].mxu0 %v3052
      %v3088 = vpop.f32.mrb[0].mxu0
      %v3089 = vadd.f32 %v3042, %v3088
      %v3090 = vpop.f32.mrb[0].mxu0
      %v3091 = vpop.f32.mrb[0].mxu0
      %v3092 = vadd.f32 %v3045, %v3091
      %v3093 = vpop.f32.mrb[0].mxu0
      %3094 = vdwg.mxu0
      %v3095 = vpack.c.bf16 %v3092, %v3089
      %3097 = vrot.lane.b32.xlu0 %v2673, 112
      %v3098 = vpop.permute.xlu0 %3097
      %v3100 = vsel %vm1016, %v3098, 0
      %3102 = vmatprep.subr.bf16.mxu0 0
      %3103 = vmatpush1.bf16.xpose.msra.mxu0 %v2684
      %3104 = vmatprep.subr.bf16.mxu0 0
      %3105 = vmatpush1.bf16.xpose.msra.mxu0 0
      %3106 = vmatprep.subr.bf16.mxu0 0
      %3107 = vmatpush1.bf16.xpose.msra.mxu0 0
      %3108 = vmatprep.subr.bf16.mxu0 0
      %3109 = vmatpush1.bf16.xpose.msra.mxu0 0
      %3110 = vmatprep.subr.bf16.mxu0 0
      %3111 = vmatpush1.bf16.xpose.msra.mxu0 0
      %3112 = vmatprep.subr.bf16.mxu0 0
      %3113 = vmatpush1.bf16.xpose.msra.mxu0 0
      %3114 = vmatprep.subr.bf16.mxu0 0
      %3115 = vmatpush1.bf16.xpose.msra.mxu0 0
      %3116 = vmatprep.subr.bf16.mxu0 0
      %3117 = vmatpush1.bf16.xpose.msra.mxu0 0
      %3118 = vmatprep.subr.bf16.mxu0 0
      %3119 = vmatpush1.bf16.xpose.msra.mxu0 0
      %3120 = vmatprep.subr.bf16.mxu0 0
      %3121 = vmatpush1.bf16.xpose.msra.mxu0 0
      %3122 = vmatprep.subr.bf16.mxu0 0
      %3123 = vmatpush1.bf16.xpose.msra.mxu0 0
      %3124 = vmatprep.subr.bf16.mxu0 0
      %3125 = vmatpush1.bf16.xpose.msra.mxu0 0
      %3126 = vmatprep.subr.bf16.mxu0 0
      %3127 = vmatpush1.bf16.xpose.msra.mxu0 0
      %3128 = vmatprep.subr.bf16.mxu0 0
      %3129 = vmatpush1.bf16.xpose.msra.mxu0 0
      %3130 = vmatprep.subr.bf16.mxu0 0
      %3131 = vmatpush1.bf16.xpose.msra.mxu0 0
      %3132 = vmatprep.subr.bf16.mxu0 0
      %3133 = vmatpush1.bf16.xpose.msra.mxu0 0
      %3134 = vmatprep.mubr.bf16.mxu0 0
      %3135 = vmatmul.mubr.bf16.gmra.mrb[0].mxu0 %v3100
      %v3136 = vpop.f32.mrb[0].mxu0
      %v3137 = vadd.f32 0.0, %v3136
      %v3138 = vpop.f32.mrb[0].mxu0
      %v3139 = vpop.f32.mrb[0].mxu0
      %v3140 = vadd.f32 0.0, %v3139
      %v3141 = vpop.f32.mrb[0].mxu0
      %3142 = vdwg.mxu0
      %3144 = vset.pattern.permute.xlu0 0
      %3145 = vperm.xlu0 %3144, %v3137
      %v3146 = vpop.permute.xlu0 %3145
      %3149 = vset.pattern.permute.xlu0 0
      %3150 = vperm.xlu0 %3149, %v3140
      %v3151 = vpop.permute.xlu0 %3150
      %v3153 = vmul.f32 %v3146, %v816
      %v3154 = vmul.f32 %v3151, %v817
      %3155 = vrot.lane.b32.xlu0 %v2674, 80
      %v3156 = vpop.permute.xlu0 %3155
      %v3158 = vsel %vm1016, %v3156, 0
      %3160 = vmatprep.subr.bf16.mxu0 0
      %3161 = vmatpush1.bf16.xpose.msra.mxu0 %v3158
      %3162 = vmatprep.subr.bf16.mxu0 0
      %3163 = vmatpush1.bf16.xpose.msra.mxu0 0
      %3164 = vmatprep.subr.bf16.mxu0 0
      %3165 = vmatpush1.bf16.xpose.msra.mxu0 0
      %3166 = vmatprep.subr.bf16.mxu0 0
      %3167 = vmatpush1.bf16.xpose.msra.mxu0 0
      %3168 = vmatprep.subr.bf16.mxu0 0
      %3169 = vmatpush1.bf16.xpose.msra.mxu0 0
      %3170 = vmatprep.subr.bf16.mxu0 0
      %3171 = vmatpush1.bf16.xpose.msra.mxu0 0
      %3172 = vmatprep.subr.bf16.mxu0 0
      %3173 = vmatpush1.bf16.xpose.msra.mxu0 0
      %3174 = vmatprep.subr.bf16.mxu0 0
      %3175 = vmatpush1.bf16.xpose.msra.mxu0 0
      %3176 = vmatprep.subr.bf16.mxu0 0
      %3177 = vmatpush1.bf16.xpose.msra.mxu0 0
      %3178 = vmatprep.subr.bf16.mxu0 0
      %3179 = vmatpush1.bf16.xpose.msra.mxu0 0
      %3180 = vmatprep.subr.bf16.mxu0 0
      %3181 = vmatpush1.bf16.xpose.msra.mxu0 0
      %3182 = vmatprep.subr.bf16.mxu0 0
      %3183 = vmatpush1.bf16.xpose.msra.mxu0 0
      %3184 = vmatprep.subr.bf16.mxu0 0
      %3185 = vmatpush1.bf16.xpose.msra.mxu0 0
      %3186 = vmatprep.subr.bf16.mxu0 0
      %3187 = vmatpush1.bf16.xpose.msra.mxu0 0
      %3188 = vmatprep.subr.bf16.mxu0 0
      %3189 = vmatpush1.bf16.xpose.msra.mxu0 0
      %3190 = vmatprep.subr.bf16.mxu0 0
      %3191 = vmatpush1.bf16.xpose.msra.mxu0 0
      %3192 = vmatprep.mubr.bf16.mxu0 0
      %3193 = vmatmul.mubr.bf16.gmra.mrb[0].mxu0 %v3100
      %v3194 = vpop.f32.mrb[0].mxu0
      %v3195 = vadd.f32 %v3153, %v3194
      %v3196 = vpop.f32.mrb[0].mxu0
      %v3197 = vpop.f32.mrb[0].mxu0
      %v3198 = vadd.f32 %v3154, %v3197
      %v3199 = vpop.f32.mrb[0].mxu0
      %3200 = vdwg.mxu0
      %3201 = vset.pattern.permute.xlu0 1
      %3202 = vperm.xlu0 %3201, %v3137
      %v3203 = vpop.permute.xlu0 %3202
      %3205 = vset.pattern.permute.xlu0 1
      %3206 = vperm.xlu0 %3205, %v3140
      %v3207 = vpop.permute.xlu0 %3206
      %v3209 = vmul.f32 %v3203, %v822
      %v3210 = vmul.f32 %v3207, %v823
      %v3211 = vadd.f32 %v3195, %v3209
      %v3212 = vadd.f32 %v3198, %v3210
      %3213 = vset.pattern.permute.xlu0 2
      %3214 = vperm.xlu0 %3213, %v3137
      %v3215 = vpop.permute.xlu0 %3214
      %3217 = vset.pattern.permute.xlu0 2
      %3218 = vperm.xlu0 %3217, %v3140
      %v3219 = vpop.permute.xlu0 %3218
      %v3221 = vmul.f32 %v3215, %v828
      %v3222 = vmul.f32 %v3219, %v829
      %v3223 = vadd.f32 %v3211, %v3221
      %v3224 = vadd.f32 %v3212, %v3222
      %3225 = vset.pattern.permute.xlu0 3
      %3226 = vperm.xlu0 %3225, %v3137
      %v3227 = vpop.permute.xlu0 %3226
      %3229 = vset.pattern.permute.xlu0 3
      %3230 = vperm.xlu0 %3229, %v3140
      %v3231 = vpop.permute.xlu0 %3230
      %v3233 = vmul.f32 %v3227, %v834
      %v3234 = vmul.f32 %v3231, %v835
      %v3235 = vadd.f32 %v3223, %v3233
      %v3236 = vadd.f32 %v3224, %v3234
      %3237 = vset.pattern.permute.xlu0 4
      %3238 = vperm.xlu0 %3237, %v3137
      %v3239 = vpop.permute.xlu0 %3238
      %3241 = vset.pattern.permute.xlu0 4
      %3242 = vperm.xlu0 %3241, %v3140
      %v3243 = vpop.permute.xlu0 %3242
      %v3245 = vmul.f32 %v3239, %v840
      %v3246 = vmul.f32 %v3243, %v841
      %v3247 = vadd.f32 %v3235, %v3245
      %v3248 = vadd.f32 %v3236, %v3246
      %3249 = vset.pattern.permute.xlu0 5
      %3250 = vperm.xlu0 %3249, %v3137
      %v3251 = vpop.permute.xlu0 %3250
      %3253 = vset.pattern.permute.xlu0 5
      %3254 = vperm.xlu0 %3253, %v3140
      %v3255 = vpop.permute.xlu0 %3254
      %v3257 = vmul.f32 %v3251, %v846
      %v3258 = vmul.f32 %v3255, %v847
      %v3259 = vadd.f32 %v3247, %v3257
      %v3260 = vadd.f32 %v3248, %v3258
      %3261 = vset.pattern.permute.xlu0 6
      %3262 = vperm.xlu0 %3261, %v3137
      %v3263 = vpop.permute.xlu0 %3262
      %3265 = vset.pattern.permute.xlu0 6
      %3266 = vperm.xlu0 %3265, %v3140
      %v3267 = vpop.permute.xlu0 %3266
      %v3269 = vmul.f32 %v3263, %v852
      %v3270 = vmul.f32 %v3267, %v853
      %v3271 = vadd.f32 %v3259, %v3269
      %v3272 = vadd.f32 %v3260, %v3270
      %3273 = vset.pattern.permute.xlu0 7
      %3274 = vperm.xlu0 %3273, %v3137
      %v3275 = vpop.permute.xlu0 %3274
      %3277 = vset.pattern.permute.xlu0 7
      %3278 = vperm.xlu0 %3277, %v3140
      %v3279 = vpop.permute.xlu0 %3278
      %v3281 = vmul.f32 %v3275, %v858
      %v3282 = vmul.f32 %v3279, %v859
      %v3283 = vadd.f32 %v3271, %v3281
      %v3284 = vadd.f32 %v3272, %v3282
      %3285 = vset.pattern.permute.xlu0 8
      %3286 = vperm.xlu0 %3285, %v3137
      %v3287 = vpop.permute.xlu0 %3286
      %3289 = vset.pattern.permute.xlu0 8
      %3290 = vperm.xlu0 %3289, %v3140
      %v3291 = vpop.permute.xlu0 %3290
      %v3293 = vmul.f32 %v3287, %v864
      %v3294 = vmul.f32 %v3291, %v865
      %v3295 = vadd.f32 %v3283, %v3293
      %v3296 = vadd.f32 %v3284, %v3294
      %v3297 = vsel %vm803, -10000.0, %v3295
      %v3298 = vsel %vm804, -10000.0, %v3296
      %v3299 = vsel %vm1016, %v3297, -inf
      %3300 = vmax.xlane.f32.xlu0 %v3299
      %v3301 = vpop.xlane.xlu0 %3300
      %v3302 = vsel %vm1016, %v3298, -inf
      %3303 = vmax.xlane.f32.xlu0 %v3302
      %v3304 = vpop.xlane.xlu0 %3303
      %v3305 = vsub.f32 %v3297, %v3301
      %v3306 = vsub.f32 %v3298, %v3304
      %v3307 = vmul.f32 %v3305, 1.442695
      %v3308 = vpow.pop %v3307
      %v3309 = vmul.f32 %v3306, 1.442695
      %v3310 = vpow.pop %v3309
      %v3311 = vsel %vm1016, %v3308, 0.0
      %3312 = vadd.xlane.f32.xlu0 %v3311
      %v3313 = vpop.xlane.xlu0 %3312
      %v3314 = vsel %vm1016, %v3310, 0.0
      %3315 = vadd.xlane.f32.xlu0 %v3314
      %v3316 = vpop.xlane.xlu0 %3315
      %v3317 = vrcp.pop %v3313
      %v3318 = vrcp.pop %v3316
      %v3319 = vmul.f32 %v3308, %v3317
      %v3320 = vmul.f32 %v3310, %v3318
      %v3321 = vpack.c.bf16 %v3320, %v3319
      %v3322 = vmul.f32 %v3319, %v816
      %v3323 = vmul.f32 %v3320, %v817
      %v3324 = vsel %vm1016, %v3322, 0.0
      %3325 = vadd.xlane.f32.xlu0 %v3324
      %v3326 = vpop.xlane.xlu0 %3325
      %v3327 = vsel %vm1016, %v3323, 0.0
      %3328 = vadd.xlane.f32.xlu0 %v3327
      %v3329 = vpop.xlane.xlu0 %3328
      %v3330 = vmul.f32 %v3319, %v822
      %v3331 = vmul.f32 %v3320, %v823
      %v3332 = vsel %vm1016, %v3330, 0.0
      %3333 = vadd.xlane.f32.xlu0 %v3332
      %v3334 = vpop.xlane.xlu0 %3333
      %v3335 = vsel %vm1016, %v3331, 0.0
      %3336 = vadd.xlane.f32.xlu0 %v3335
      %v3337 = vpop.xlane.xlu0 %3336
      %v3338 = vmul.f32 %v3319, %v828
      %v3339 = vmul.f32 %v3320, %v829
      %v3340 = vsel %vm1016, %v3338, 0.0
      %3341 = vadd.xlane.f32.xlu0 %v3340
      %v3342 = vpop.xlane.xlu0 %3341
      %v3343 = vsel %vm1016, %v3339, 0.0
      %3344 = vadd.xlane.f32.xlu0 %v3343
      %v3345 = vpop.xlane.xlu0 %3344
      %v3346 = vmul.f32 %v3319, %v834
      %v3347 = vmul.f32 %v3320, %v835
      %v3348 = vsel %vm1016, %v3346, 0.0
      %3349 = vadd.xlane.f32.xlu0 %v3348
      %v3350 = vpop.xlane.xlu0 %3349
      %v3351 = vsel %vm1016, %v3347, 0.0
      %3352 = vadd.xlane.f32.xlu0 %v3351
      %v3353 = vpop.xlane.xlu0 %3352
      %v3354 = vmul.f32 %v3319, %v840
      %v3355 = vmul.f32 %v3320, %v841
      %v3356 = vsel %vm1016, %v3354, 0.0
      %3357 = vadd.xlane.f32.xlu0 %v3356
      %v3358 = vpop.xlane.xlu0 %3357
      %v3359 = vsel %vm1016, %v3355, 0.0
      %3360 = vadd.xlane.f32.xlu0 %v3359
      %v3361 = vpop.xlane.xlu0 %3360
      %v3362 = vmul.f32 %v3319, %v846
      %v3363 = vmul.f32 %v3320, %v847
      %v3364 = vsel %vm1016, %v3362, 0.0
      %3365 = vadd.xlane.f32.xlu0 %v3364
      %v3366 = vpop.xlane.xlu0 %3365
      %v3367 = vsel %vm1016, %v3363, 0.0
      %3368 = vadd.xlane.f32.xlu0 %v3367
      %v3369 = vpop.xlane.xlu0 %3368
      %v3370 = vmul.f32 %v3319, %v852
      %v3371 = vmul.f32 %v3320, %v853
      %v3372 = vsel %vm1016, %v3370, 0.0
      %3373 = vadd.xlane.f32.xlu0 %v3372
      %v3374 = vpop.xlane.xlu0 %3373
      %v3375 = vsel %vm1016, %v3371, 0.0
      %3376 = vadd.xlane.f32.xlu0 %v3375
      %v3377 = vpop.xlane.xlu0 %3376
      %v3378 = vmul.f32 %v3319, %v858
      %v3379 = vmul.f32 %v3320, %v859
      %v3380 = vsel %vm1016, %v3378, 0.0
      %3381 = vadd.xlane.f32.xlu0 %v3380
      %v3382 = vpop.xlane.xlu0 %3381
      %v3383 = vsel %vm1016, %v3379, 0.0
      %3384 = vadd.xlane.f32.xlu0 %v3383
      %v3385 = vpop.xlane.xlu0 %3384
      %v3386 = vmul.f32 %v3319, %v864
      %v3387 = vmul.f32 %v3320, %v865
      %v3388 = vsel %vm1016, %v3386, 0.0
      %3389 = vadd.xlane.f32.xlu0 %v3388
      %v3390 = vpop.xlane.xlu0 %3389
      %v3391 = vsel %vm1016, %v3387, 0.0
      %3392 = vadd.xlane.f32.xlu0 %v3391
      %v3393 = vpop.xlane.xlu0 %3392
      %v3394 = vsel %vm1316, %v3326, %v3334
      %v3395 = vsel %vm1316, %v3329, %v3337
      %v3396 = vsel %vm1319, %v3394, %v3342
      %v3397 = vsel %vm1319, %v3395, %v3345
      %v3398 = vsel %vm1322, %v3396, %v3350
      %v3399 = vsel %vm1322, %v3397, %v3353
      %v3400 = vsel %vm1325, %v3398, %v3358
      %v3401 = vsel %vm1325, %v3399, %v3361
      %v3402 = vsel %vm1328, %v3400, %v3366
      %v3403 = vsel %vm1328, %v3401, %v3369
      %v3404 = vsel %vm1331, %v3402, %v3374
      %v3405 = vsel %vm1331, %v3403, %v3377
      %v3406 = vsel %vm1334, %v3404, %v3382
      %v3407 = vsel %vm1334, %v3405, %v3385
      %v3408 = vsel %vm879, %v3406, %v3390
      %v3409 = vsel %vm879, %v3407, %v3393
      %v3410 = vpack.c.bf16 %v3409, %v3408
      %v3412 = vsel %vm1345, %v3410, 0
      %3414 = vmatprep.subr.bf16.mxu0 0
      %3415 = vmatpush1.bf16.msra.mxu0 %v3005
      %3416 = vmatprep.subr.bf16.mxu0 0
      %3417 = vmatpush1.bf16.msra.mxu0 0
      %3418 = vmatprep.subr.bf16.mxu0 0
      %3419 = vmatpush1.bf16.msra.mxu0 0
      %3420 = vmatprep.subr.bf16.mxu0 0
      %3421 = vmatpush1.bf16.msra.mxu0 0
      %3422 = vmatprep.subr.bf16.mxu0 0
      %3423 = vmatpush1.bf16.msra.mxu0 0
      %3424 = vmatprep.subr.bf16.mxu0 0
      %3425 = vmatpush1.bf16.msra.mxu0 0
      %3426 = vmatprep.subr.bf16.mxu0 0
      %3427 = vmatpush1.bf16.msra.mxu0 0
      %3428 = vmatprep.subr.bf16.mxu0 0
      %3429 = vmatpush1.bf16.msra.mxu0 0
      %3430 = vmatprep.subr.bf16.mxu0 0
      %3431 = vmatpush1.bf16.msra.mxu0 0
      %3432 = vmatprep.subr.bf16.mxu0 0
      %3433 = vmatpush1.bf16.msra.mxu0 0
      %3434 = vmatprep.subr.bf16.mxu0 0
      %3435 = vmatpush1.bf16.msra.mxu0 0
      %3436 = vmatprep.subr.bf16.mxu0 0
      %3437 = vmatpush1.bf16.msra.mxu0 0
      %3438 = vmatprep.subr.bf16.mxu0 0
      %3439 = vmatpush1.bf16.msra.mxu0 0
      %3440 = vmatprep.subr.bf16.mxu0 0
      %3441 = vmatpush1.bf16.msra.mxu0 0
      %3442 = vmatprep.subr.bf16.mxu0 0
      %3443 = vmatpush1.bf16.msra.mxu0 0
      %3444 = vmatprep.subr.bf16.mxu0 0
      %3445 = vmatpush1.bf16.msra.mxu0 0
      %3446 = vmatprep.mubr.bf16.mxu0 0
      %3447 = vmatmul.mubr.bf16.gmra.mrb[0].mxu0 %v3412
      %v3448 = vpop.f32.mrb[0].mxu0
      %v3449 = vadd.f32 0.0, %v3448
      %v3450 = vpop.f32.mrb[0].mxu0
      %v3451 = vpop.f32.mrb[0].mxu0
      %v3452 = vadd.f32 0.0, %v3451
      %v3453 = vpop.f32.mrb[0].mxu0
      %3454 = vdwg.mxu0
      %3455 = vrot.lane.b32.xlu0 %v2674, 48
      %v3456 = vpop.permute.xlu0 %3455
      %v3459 = vsel %vm1016, %v3321, 0
      %3461 = vmatprep.subr.bf16.mxu0 0
      %3462 = vmatpush1.bf16.msra.mxu0 %v3456
      %3463 = vmatprep.subr.bf16.mxu0 0
      %3464 = vmatpush1.bf16.msra.mxu0 0
      %3465 = vmatprep.subr.bf16.mxu0 0
      %3466 = vmatpush1.bf16.msra.mxu0 0
      %3467 = vmatprep.subr.bf16.mxu0 0
      %3468 = vmatpush1.bf16.msra.mxu0 0
      %3469 = vmatprep.subr.bf16.mxu0 0
      %3470 = vmatpush1.bf16.msra.mxu0 0
      %3471 = vmatprep.subr.bf16.mxu0 0
      %3472 = vmatpush1.bf16.msra.mxu0 0
      %3473 = vmatprep.subr.bf16.mxu0 0
      %3474 = vmatpush1.bf16.msra.mxu0 0
      %3475 = vmatprep.subr.bf16.mxu0 0
      %3476 = vmatpush1.bf16.msra.mxu0 0
      %3477 = vmatprep.subr.bf16.mxu0 0
      %3478 = vmatpush1.bf16.msra.mxu0 0
      %3479 = vmatprep.subr.bf16.mxu0 0
      %3480 = vmatpush1.bf16.msra.mxu0 0
      %3481 = vmatprep.subr.bf16.mxu0 0
      %3482 = vmatpush1.bf16.msra.mxu0 0
      %3483 = vmatprep.subr.bf16.mxu0 0
      %3484 = vmatpush1.bf16.msra.mxu0 0
      %3485 = vmatprep.subr.bf16.mxu0 0
      %3486 = vmatpush1.bf16.msra.mxu0 0
      %3487 = vmatprep.subr.bf16.mxu0 0
      %3488 = vmatpush1.bf16.msra.mxu0 0
      %3489 = vmatprep.subr.bf16.mxu0 0
      %3490 = vmatpush1.bf16.msra.mxu0 0
      %3491 = vmatprep.subr.bf16.mxu0 0
      %3492 = vmatpush1.bf16.msra.mxu0 0
      %3493 = vmatprep.mubr.bf16.mxu0 0
      %3494 = vmatmul.mubr.bf16.gmra.mrb[0].mxu0 %v3459
      %v3495 = vpop.f32.mrb[0].mxu0
      %v3496 = vadd.f32 %v3449, %v3495
      %v3497 = vpop.f32.mrb[0].mxu0
      %v3498 = vpop.f32.mrb[0].mxu0
      %v3499 = vadd.f32 %v3452, %v3498
      %v3500 = vpop.f32.mrb[0].mxu0
      %3501 = vdwg.mxu0
      %v3502 = vpack.c.bf16 %v3499, %v3496
      %v3505 = vunpack.c.l.b16 %v2669
      %v3506 = vunpack.c.l.b16 %v2670
      %v3507 = vpack.c.b16 %v3506, %v3505
      %v3510 = vsel %vm1016, %v3502, 0
      %3512 = vmatprep.subr.bf16.mxu0 0
      %3513 = vmatpush1.bf16.msra.mxu0 %v3507
      %3514 = vmatprep.subr.bf16.mxu0 0
      %3515 = vmatpush1.bf16.msra.mxu0 0
      %3516 = vmatprep.subr.bf16.mxu0 0
      %3517 = vmatpush1.bf16.msra.mxu0 0
      %3518 = vmatprep.subr.bf16.mxu0 0
      %3519 = vmatpush1.bf16.msra.mxu0 0
      %3520 = vmatprep.subr.bf16.mxu0 0
      %3521 = vmatpush1.bf16.msra.mxu0 0
      %3522 = vmatprep.subr.bf16.mxu0 0
      %3523 = vmatpush1.bf16.msra.mxu0 0
      %3524 = vmatprep.subr.bf16.mxu0 0
      %3525 = vmatpush1.bf16.msra.mxu0 0
      %3526 = vmatprep.subr.bf16.mxu0 0
      %3527 = vmatpush1.bf16.msra.mxu0 0
      %3528 = vmatprep.subr.bf16.mxu0 0
      %3529 = vmatpush1.bf16.msra.mxu0 0
      %3530 = vmatprep.subr.bf16.mxu0 0
      %3531 = vmatpush1.bf16.msra.mxu0 0
      %3532 = vmatprep.subr.bf16.mxu0 0
      %3533 = vmatpush1.bf16.msra.mxu0 0
      %3534 = vmatprep.subr.bf16.mxu0 0
      %3535 = vmatpush1.bf16.msra.mxu0 0
      %3536 = vmatprep.subr.bf16.mxu0 0
      %3537 = vmatpush1.bf16.msra.mxu0 0
      %3538 = vmatprep.subr.bf16.mxu0 0
      %3539 = vmatpush1.bf16.msra.mxu0 0
      %3540 = vmatprep.subr.bf16.mxu0 0
      %3541 = vmatpush1.bf16.msra.mxu0 0
      %3542 = vmatprep.subr.bf16.mxu0 0
      %3543 = vmatpush1.bf16.msra.mxu0 0
      %3544 = vmatprep.mubr.bf16.mxu0 0
      %3545 = vmatmul.mubr.bf16.gmra.mrb[0].mxu0 %v3510
      %v3546 = vpop.f32.mrb[0].mxu0
      %v3547 = vadd.f32 0.0, %v3546
      %v3548 = vpop.f32.mrb[0].mxu0
      %v3549 = vpop.f32.mrb[0].mxu0
      %v3550 = vadd.f32 0.0, %v3549
      %v3551 = vpop.f32.mrb[0].mxu0
      %3552 = vdwg.mxu0
      %v3555 = vunpack.c.l.b16 %v2667
      %v3556 = vunpack.c.l.b16 %v2668
      %v3557 = vpack.c.b16 %v3556, %v3555
      %v3560 = vsel %vm1016, %v3095, 0
      %3562 = vmatprep.subr.bf16.mxu0 0
      %3563 = vmatpush1.bf16.msra.mxu0 %v3557
      %3564 = vmatprep.subr.bf16.mxu0 0
      %3565 = vmatpush1.bf16.msra.mxu0 0
      %3566 = vmatprep.subr.bf16.mxu0 0
      %3567 = vmatpush1.bf16.msra.mxu0 0
      %3568 = vmatprep.subr.bf16.mxu0 0
      %3569 = vmatpush1.bf16.msra.mxu0 0
      %3570 = vmatprep.subr.bf16.mxu0 0
      %3571 = vmatpush1.bf16.msra.mxu0 0
      %3572 = vmatprep.subr.bf16.mxu0 0
      %3573 = vmatpush1.bf16.msra.mxu0 0
      %3574 = vmatprep.subr.bf16.mxu0 0
      %3575 = vmatpush1.bf16.msra.mxu0 0
      %3576 = vmatprep.subr.bf16.mxu0 0
      %3577 = vmatpush1.bf16.msra.mxu0 0
      %3578 = vmatprep.subr.bf16.mxu0 0
      %3579 = vmatpush1.bf16.msra.mxu0 0
      %3580 = vmatprep.subr.bf16.mxu0 0
      %3581 = vmatpush1.bf16.msra.mxu0 0
      %3582 = vmatprep.subr.bf16.mxu0 0
      %3583 = vmatpush1.bf16.msra.mxu0 0
      %3584 = vmatprep.subr.bf16.mxu0 0
      %3585 = vmatpush1.bf16.msra.mxu0 0
      %3586 = vmatprep.subr.bf16.mxu0 0
      %3587 = vmatpush1.bf16.msra.mxu0 0
      %3588 = vmatprep.subr.bf16.mxu0 0
      %3589 = vmatpush1.bf16.msra.mxu0 0
      %3590 = vmatprep.subr.bf16.mxu0 0
      %3591 = vmatpush1.bf16.msra.mxu0 0
      %3592 = vmatprep.subr.bf16.mxu0 0
      %3593 = vmatpush1.bf16.msra.mxu0 0
      %3594 = vmatprep.mubr.bf16.mxu0 0
      %3595 = vmatmul.mubr.bf16.gmra.mrb[0].mxu0 %v3560
      %v3596 = vpop.f32.mrb[0].mxu0
      %v3597 = vadd.f32 %v3547, %v3596
      %v3598 = vpop.f32.mrb[0].mxu0
      %v3599 = vpop.f32.mrb[0].mxu0
      %v3600 = vadd.f32 %v3550, %v3599
      %v3601 = vpop.f32.mrb[0].mxu0
      %3602 = vdwg.mxu0
      %s3603 = scalar_lea.vmem %s11, 1
      %v3604 = vld [vmem:[%s3603] sm:$0x1]
      %v3606 = vlaneseq
      %v3607 = vshrl.u32 %v3606, 7
      %v3608 = vsub.s32 0, %v3607
      %v3609 = vrot.slane %v3604, %v3608
      %v3611 = vadd.f32 %v3597, %v3609
      %v3612 = vadd.f32 %v3600, %v3609
      %v3613 = vunpack.c.l.bf16 %v2590
      %v3614 = vunpack.c.h.bf16 %v2590
      %v3615 = vadd.f32 %v3613, %v3611
      %v3616 = vadd.f32 %v3614, %v3612
      %s3617 = scalar_lea.vmem %s12, 1
      %v3618 = vld [vmem:[%s3617] sm:$0x1]
      %s3619 = scalar_lea.vmem %s13, 1
      %v3620 = vld [vmem:[%s3619] sm:$0x1]
      %v3621 = vsel %vm954, %v3615, 0.0
      %3622 = vadd.xlane.f32.xlu0 %v3621
      %v3623 = vpop.xlane.xlu0 %3622
      %v3624 = vsel %vm954, %v3616, 0.0
      %3625 = vadd.xlane.f32.xlu0 %v3624
      %v3626 = vpop.xlane.xlu0 %3625
      %v3627 = vmul.f32 %v3623, %v1972
      %v3628 = vmul.f32 %v3626, %v1972
      %v3629 = vsub.f32 %v3615, %v3627
      %v3630 = vsub.f32 %v3616, %v3628
      %v3631 = vmul.f32 %v3629, %v3629
      %v3632 = vmul.f32 %v3630, %v3630
      %v3633 = vsel %vm954, %v3631, 0.0
      %3634 = vadd.xlane.f32.xlu0 %v3633
      %v3635 = vpop.xlane.xlu0 %3634
      %v3636 = vsel %vm954, %v3632, 0.0
      %3637 = vadd.xlane.f32.xlu0 %v3636
      %v3638 = vpop.xlane.xlu0 %3637
      %v3639 = vmul.f32 %v3635, %v1972
      %v3640 = vmul.f32 %v3638, %v1972
      %v3641 = vadd.f32 %v3639, 1e-05
      %v3642 = vadd.f32 %v3640, 1e-05
      %v3643 = vrsqrt.pop %v3641
      %v3644 = vrsqrt.pop %v3642
      %v3645 = vmul.f32 %v3629, %v3643
      %v3646 = vmul.f32 %v3630, %v3644
      %v3648 = vlaneseq
      %v3649 = vshrl.u32 %v3648, 7
      %v3650 = vsub.s32 0, %v3649
      %v3651 = vrot.slane %v3618, %v3650
      %v3653 = vmul.f32 %v3645, %v3651
      %v3654 = vmul.f32 %v3646, %v3651
      %v3656 = vlaneseq
      %v3657 = vshrl.u32 %v3656, 7
      %v3658 = vsub.s32 0, %v3657
      %v3659 = vrot.slane %v3620, %v3658
      %v3661 = vadd.f32 %v3653, %v3659
      %v3662 = vadd.f32 %v3654, %v3659
      %v3663 = vpack.c.bf16 %v3662, %v3661
      %v3664 = vmul.bf16 %v3663, %v2038
      %v3666 = vshrl.u32 %v3664, 16
      %v3668 = vrot.slane %v3666, 7
      %v3669 = vshll.u32 %v3664, 16
      %v3671 = vor.u32 %v3668, %v3669
      %v3674 = vsel %vm2052, 0, %v3671
      %v3675 = vsel %vm2052, %v3668, 0
      %s3676 = scalar_lea.vmem %s14, 48
      %v3677 = vld [vmem:[%s3676] sm:$0xf]
      %v3678 = vld [vmem:[%s3676 + $0x4] sm:$0xf]
      %v3679 = vld [vmem:[%s3676 + $0x8] sm:$0xf]
      %v3680 = vld [vmem:[%s3676 + $0xc] sm:$0xf]
      %s3681 = scalar_lea.vmem %s14, 64
      %v3682 = vld [vmem:[%s3681] sm:$0xf]
      %v3683 = vld [vmem:[%s3681 + $0x4] sm:$0xf]
      %v3684 = vld [vmem:[%s3681 + $0x8] sm:$0xf]
      %v3685 = vld [vmem:[%s3681 + $0xc] sm:$0xf]
      %v3687 = vshrl.u32 %v3674, 16
      %v3689 = vshll.u32 %v3674, 16
      %v3691 = vrot.slane %v3689, 1
      %v3692 = vor.u32 %v3687, %v3691
      %v3694 = vshll.u32 %v3675, 16
      %v3696 = vrot.slane %v3694, 1
      %v3697 = vsel %vm2064, %v3692, %v3696
      %v3702 = vunpack.c.l.b16 %v3682
      %v3703 = vunpack.c.l.b16 %v3683
      %v3704 = vunpack.c.l.b16 %v3684
      %v3705 = vunpack.c.l.b16 %v3685
      %v3706 = vpack.c.b16 %v3703, %v3702
      %v3707 = vpack.c.b16 %v3705, %v3704
      %v3711 = vsel %vm954, %v3697, 0
      %3713 = vmatprep.subr.bf16.mxu0 0
      %3714 = vmatpush1.bf16.msra.mxu0 %v3706
      %3715 = vmatprep.subr.bf16.mxu0 0
      %3716 = vmatpush1.bf16.msra.mxu0 %v3707
      %3717 = vmatprep.subr.bf16.mxu0 0
      %3718 = vmatpush1.bf16.msra.mxu0 0
      %3719 = vmatprep.subr.bf16.mxu0 0
      %3720 = vmatpush1.bf16.msra.mxu0 0
      %3721 = vmatprep.subr.bf16.mxu0 0
      %3722 = vmatpush1.bf16.msra.mxu0 0
      %3723 = vmatprep.subr.bf16.mxu0 0
      %3724 = vmatpush1.bf16.msra.mxu0 0
      %3725 = vmatprep.subr.bf16.mxu0 0
      %3726 = vmatpush1.bf16.msra.mxu0 0
      %3727 = vmatprep.subr.bf16.mxu0 0
      %3728 = vmatpush1.bf16.msra.mxu0 0
      %3729 = vmatprep.subr.bf16.mxu0 0
      %3730 = vmatpush1.bf16.msra.mxu0 0
      %3731 = vmatprep.subr.bf16.mxu0 0
      %3732 = vmatpush1.bf16.msra.mxu0 0
      %3733 = vmatprep.subr.bf16.mxu0 0
      %3734 = vmatpush1.bf16.msra.mxu0 0
      %3735 = vmatprep.subr.bf16.mxu0 0
      %3736 = vmatpush1.bf16.msra.mxu0 0
      %3737 = vmatprep.subr.bf16.mxu0 0
      %3738 = vmatpush1.bf16.msra.mxu0 0
      %3739 = vmatprep.subr.bf16.mxu0 0
      %3740 = vmatpush1.bf16.msra.mxu0 0
      %3741 = vmatprep.subr.bf16.mxu0 0
      %3742 = vmatpush1.bf16.msra.mxu0 0
      %3743 = vmatprep.subr.bf16.mxu0 0
      %3744 = vmatpush1.bf16.msra.mxu0 0
      %3745 = vmatprep.mubr.bf16.mxu0 0
      %3746 = vmatmul.mubr.bf16.gmra.mrb[0].mxu0 %v3711
      %v3747 = vpop.f32.mrb[0].mxu0
      %v3748 = vadd.f32 0.0, %v3747
      %v3749 = vpop.f32.mrb[0].mxu0
      %v3750 = vpop.f32.mrb[0].mxu0
      %v3751 = vadd.f32 0.0, %v3750
      %v3752 = vpop.f32.mrb[0].mxu0
      %3753 = vdwg.mxu0
      %v3758 = vunpack.c.l.b16 %v3677
      %v3759 = vunpack.c.l.b16 %v3678
      %v3760 = vunpack.c.l.b16 %v3679
      %v3761 = vunpack.c.l.b16 %v3680
      %v3762 = vpack.c.b16 %v3759, %v3758
      %v3763 = vpack.c.b16 %v3761, %v3760
      %v3766 = vsel %vm954, %v3674, 0
      %3768 = vmatprep.subr.bf16.mxu0 0
      %3769 = vmatpush1.bf16.msra.mxu0 %v3762
      %3770 = vmatprep.subr.bf16.mxu0 0
      %3771 = vmatpush1.bf16.msra.mxu0 %v3763
      %3772 = vmatprep.subr.bf16.mxu0 0
      %3773 = vmatpush1.bf16.msra.mxu0 0
      %3774 = vmatprep.subr.bf16.mxu0 0
      %3775 = vmatpush1.bf16.msra.mxu0 0
      %3776 = vmatprep.subr.bf16.mxu0 0
      %3777 = vmatpush1.bf16.msra.mxu0 0
      %3778 = vmatprep.subr.bf16.mxu0 0
      %3779 = vmatpush1.bf16.msra.mxu0 0
      %3780 = vmatprep.subr.bf16.mxu0 0
      %3781 = vmatpush1.bf16.msra.mxu0 0
      %3782 = vmatprep.subr.bf16.mxu0 0
      %3783 = vmatpush1.bf16.msra.mxu0 0
      %3784 = vmatprep.subr.bf16.mxu0 0
      %3785 = vmatpush1.bf16.msra.mxu0 0
      %3786 = vmatprep.subr.bf16.mxu0 0
      %3787 = vmatpush1.bf16.msra.mxu0 0
      %3788 = vmatprep.subr.bf16.mxu0 0
      %3789 = vmatpush1.bf16.msra.mxu0 0
      %3790 = vmatprep.subr.bf16.mxu0 0
      %3791 = vmatpush1.bf16.msra.mxu0 0
      %3792 = vmatprep.subr.bf16.mxu0 0
      %3793 = vmatpush1.bf16.msra.mxu0 0
      %3794 = vmatprep.subr.bf16.mxu0 0
      %3795 = vmatpush1.bf16.msra.mxu0 0
      %3796 = vmatprep.subr.bf16.mxu0 0
      %3797 = vmatpush1.bf16.msra.mxu0 0
      %3798 = vmatprep.subr.bf16.mxu0 0
      %3799 = vmatpush1.bf16.msra.mxu0 0
      %3800 = vmatprep.mubr.bf16.mxu0 0
      %3801 = vmatmul.mubr.bf16.gmra.mrb[0].mxu0 %v3766
      %v3802 = vpop.f32.mrb[0].mxu0
      %v3803 = vadd.f32 %v3748, %v3802
      %v3804 = vpop.f32.mrb[0].mxu0
      %v3805 = vpop.f32.mrb[0].mxu0
      %v3806 = vadd.f32 %v3751, %v3805
      %v3807 = vpop.f32.mrb[0].mxu0
      %3808 = vdwg.mxu0
      %s3809 = scalar_lea.vmem %s14, 80
      %v3810 = vld [vmem:[%s3809] sm:$0xf]
      %v3811 = vld [vmem:[%s3809 + $0x4] sm:$0xf]
      %v3812 = vld [vmem:[%s3809 + $0x8] sm:$0xf]
      %v3813 = vld [vmem:[%s3809 + $0xc] sm:$0xf]
      %v3816 = vrot.slane %v3674, 1
      %v3817 = vrot.slane %v3675, 1
      %v3818 = vsel %vm2195, %v3816, %v3817
      %v3823 = vunpack.c.l.b16 %v3810
      %v3824 = vunpack.c.l.b16 %v3811
      %v3825 = vunpack.c.l.b16 %v3812
      %v3826 = vunpack.c.l.b16 %v3813
      %v3827 = vpack.c.b16 %v3824, %v3823
      %v3828 = vpack.c.b16 %v3826, %v3825
      %v3832 = vsel %vm954, %v3818, 0
      %3834 = vmatprep.subr.bf16.mxu0 0
      %3835 = vmatpush1.bf16.msra.mxu0 %v3827
      %3836 = vmatprep.subr.bf16.mxu0 0
      %3837 = vmatpush1.bf16.msra.mxu0 %v3828
      %3838 = vmatprep.subr.bf16.mxu0 0
      %3839 = vmatpush1.bf16.msra.mxu0 0
      %3840 = vmatprep.subr.bf16.mxu0 0
      %3841 = vmatpush1.bf16.msra.mxu0 0
      %3842 = vmatprep.subr.bf16.mxu0 0
      %3843 = vmatpush1.bf16.msra.mxu0 0
      %3844 = vmatprep.subr.bf16.mxu0 0
      %3845 = vmatpush1.bf16.msra.mxu0 0
      %3846 = vmatprep.subr.bf16.mxu0 0
      %3847 = vmatpush1.bf16.msra.mxu0 0
      %3848 = vmatprep.subr.bf16.mxu0 0
      %3849 = vmatpush1.bf16.msra.mxu0 0
      %3850 = vmatprep.subr.bf16.mxu0 0
      %3851 = vmatpush1.bf16.msra.mxu0 0
      %3852 = vmatprep.subr.bf16.mxu0 0
      %3853 = vmatpush1.bf16.msra.mxu0 0
      %3854 = vmatprep.subr.bf16.mxu0 0
      %3855 = vmatpush1.bf16.msra.mxu0 0
      %3856 = vmatprep.subr.bf16.mxu0 0
      %3857 = vmatpush1.bf16.msra.mxu0 0
      %3858 = vmatprep.subr.bf16.mxu0 0
      %3859 = vmatpush1.bf16.msra.mxu0 0
      %3860 = vmatprep.subr.bf16.mxu0 0
      %3861 = vmatpush1.bf16.msra.mxu0 0
      %3862 = vmatprep.subr.bf16.mxu0 0
      %3863 = vmatpush1.bf16.msra.mxu0 0
      %3864 = vmatprep.subr.bf16.mxu0 0
      %3865 = vmatpush1.bf16.msra.mxu0 0
      %3866 = vmatprep.mubr.bf16.mxu0 0
      %3867 = vmatmul.mubr.bf16.gmra.mrb[0].mxu0 %v3832
      %v3868 = vpop.f32.mrb[0].mxu0
      %v3869 = vadd.f32 0.0, %v3868
      %v3870 = vpop.f32.mrb[0].mxu0
      %v3871 = vpop.f32.mrb[0].mxu0
      %v3872 = vadd.f32 0.0, %v3871
      %v3873 = vpop.f32.mrb[0].mxu0
      %3874 = vdwg.mxu0
      %v3875 = vadd.f32 %v3803, %v3869
      %v3876 = vadd.f32 %v3806, %v3872
      %s3877 = scalar_lea.vmem %s15, 1
      %v3878 = vld [vmem:[%s3877] sm:$0x1]
      %v3880 = vlaneseq
      %v3881 = vshrl.u32 %v3880, 7
      %v3882 = vsub.s32 0, %v3881
      %v3883 = vrot.slane %v3878, %v3882
      %v3885 = vadd.f32 %v3875, %v3883
      %v3886 = vadd.f32 %v3876, %v3883
      %v3887 = vmax.f32 %v3885, 0.0
      %v3888 = vmax.f32 %v3886, 0.0
      %v3889 = vmul.f32 %v3887, %v790
      %v3890 = vmul.f32 %v3888, %v795
      %v3891 = vpack.c.bf16 %v3890, %v3889
      %v3893 = vshrl.u32 %v3891, 16
      %v3895 = vrot.slane %v3893, 7
      %v3896 = vshll.u32 %v3891, 16
      %v3898 = vor.u32 %v3895, %v3896
      %v3901 = vsel %vm2052, 0, %v3898
      %v3902 = vsel %vm2052, %v3895, 0
      %s3903 = scalar_lea.vmem %s16, 96
      %v3904 = vld [vmem:[%s3903] sm:$0xf]
      %v3905 = vld [vmem:[%s3903 + $0x4] sm:$0xf]
      %v3906 = vld [vmem:[%s3903 + $0x8] sm:$0xf]
      %v3907 = vld [vmem:[%s3903 + $0xc] sm:$0xf]
      %v3908 = vld [vmem:[%s3903 + $0x10] sm:$0xf]
      %v3909 = vld [vmem:[%s3903 + $0x14] sm:$0xf]
      %v3910 = vld [vmem:[%s3903 + $0x18] sm:$0xf]
      %v3911 = vld [vmem:[%s3903 + $0x1c] sm:$0xf]
      %s3912 = scalar_lea.vmem %s16, 128
      %v3913 = vld [vmem:[%s3912] sm:$0xf]
      %v3914 = vld [vmem:[%s3912 + $0x4] sm:$0xf]
      %v3915 = vld [vmem:[%s3912 + $0x8] sm:$0xf]
      %v3916 = vld [vmem:[%s3912 + $0xc] sm:$0xf]
      %v3917 = vld [vmem:[%s3912 + $0x10] sm:$0xf]
      %v3918 = vld [vmem:[%s3912 + $0x14] sm:$0xf]
      %v3919 = vld [vmem:[%s3912 + $0x18] sm:$0xf]
      %v3920 = vld [vmem:[%s3912 + $0x1c] sm:$0xf]
      %v3922 = vshrl.u32 %v3901, 16
      %v3924 = vshll.u32 %v3901, 16
      %v3926 = vrot.slane %v3924, 1
      %v3927 = vor.u32 %v3922, %v3926
      %v3929 = vshll.u32 %v3902, 16
      %v3931 = vrot.slane %v3929, 1
      %v3932 = vsel %vm2064, %v3927, %v3931
      %v3941 = vunpack.c.l.b16 %v3913
      %v3942 = vunpack.c.l.b16 %v3914
      %v3943 = vunpack.c.l.b16 %v3915
      %v3944 = vunpack.c.l.b16 %v3916
      %v3945 = vunpack.c.l.b16 %v3917
      %v3946 = vunpack.c.l.b16 %v3918
      %v3947 = vunpack.c.l.b16 %v3919
      %v3948 = vunpack.c.l.b16 %v3920
      %v3949 = vpack.c.b16 %v3942, %v3941
      %v3950 = vpack.c.b16 %v3944, %v3943
      %v3951 = vpack.c.b16 %v3946, %v3945
      %v3952 = vpack.c.b16 %v3948, %v3947
      %v3958 = vsel %vm2335, %v3932, 0
      %3960 = vmatprep.subr.bf16.mxu0 0
      %3961 = vmatpush1.bf16.msra.mxu0 %v3949
      %3962 = vmatprep.subr.bf16.mxu0 0
      %3963 = vmatpush1.bf16.msra.mxu0 %v3950
      %3964 = vmatprep.subr.bf16.mxu0 0
      %3965 = vmatpush1.bf16.msra.mxu0 %v3951
      %3966 = vmatprep.subr.bf16.mxu0 0
      %3967 = vmatpush1.bf16.msra.mxu0 %v3952
      %3968 = vmatprep.subr.bf16.mxu0 0
      %3969 = vmatpush1.bf16.msra.mxu0 0
      %3970 = vmatprep.subr.bf16.mxu0 0
      %3971 = vmatpush1.bf16.msra.mxu0 0
      %3972 = vmatprep.subr.bf16.mxu0 0
      %3973 = vmatpush1.bf16.msra.mxu0 0
      %3974 = vmatprep.subr.bf16.mxu0 0
      %3975 = vmatpush1.bf16.msra.mxu0 0
      %3976 = vmatprep.subr.bf16.mxu0 0
      %3977 = vmatpush1.bf16.msra.mxu0 0
      %3978 = vmatprep.subr.bf16.mxu0 0
      %3979 = vmatpush1.bf16.msra.mxu0 0
      %3980 = vmatprep.subr.bf16.mxu0 0
      %3981 = vmatpush1.bf16.msra.mxu0 0
      %3982 = vmatprep.subr.bf16.mxu0 0
      %3983 = vmatpush1.bf16.msra.mxu0 0
      %3984 = vmatprep.subr.bf16.mxu0 0
      %3985 = vmatpush1.bf16.msra.mxu0 0
      %3986 = vmatprep.subr.bf16.mxu0 0
      %3987 = vmatpush1.bf16.msra.mxu0 0
      %3988 = vmatprep.subr.bf16.mxu0 0
      %3989 = vmatpush1.bf16.msra.mxu0 0
      %3990 = vmatprep.subr.bf16.mxu0 0
      %3991 = vmatpush1.bf16.msra.mxu0 0
      %3992 = vmatprep.mubr.bf16.mxu0 0
      %3993 = vmatmul.mubr.bf16.gmra.mrb[0].mxu0 %v3958
      %v3994 = vpop.f32.mrb[0].mxu0
      %v3995 = vadd.f32 0.0, %v3994
      %v3996 = vpop.f32.mrb[0].mxu0
      %v3997 = vpop.f32.mrb[0].mxu0
      %v3998 = vadd.f32 0.0, %v3997
      %v3999 = vpop.f32.mrb[0].mxu0
      %4000 = vdwg.mxu0
      %v4009 = vunpack.c.l.b16 %v3904
      %v4010 = vunpack.c.l.b16 %v3905
      %v4011 = vunpack.c.l.b16 %v3906
      %v4012 = vunpack.c.l.b16 %v3907
      %v4013 = vunpack.c.l.b16 %v3908
      %v4014 = vunpack.c.l.b16 %v3909
      %v4015 = vunpack.c.l.b16 %v3910
      %v4016 = vunpack.c.l.b16 %v3911
      %v4017 = vpack.c.b16 %v4010, %v4009
      %v4018 = vpack.c.b16 %v4012, %v4011
      %v4019 = vpack.c.b16 %v4014, %v4013
      %v4020 = vpack.c.b16 %v4016, %v4015
      %v4025 = vsel %vm2335, %v3901, 0
      %4027 = vmatprep.subr.bf16.mxu0 0
      %4028 = vmatpush1.bf16.msra.mxu0 %v4017
      %4029 = vmatprep.subr.bf16.mxu0 0
      %4030 = vmatpush1.bf16.msra.mxu0 %v4018
      %4031 = vmatprep.subr.bf16.mxu0 0
      %4032 = vmatpush1.bf16.msra.mxu0 %v4019
      %4033 = vmatprep.subr.bf16.mxu0 0
      %4034 = vmatpush1.bf16.msra.mxu0 %v4020
      %4035 = vmatprep.subr.bf16.mxu0 0
      %4036 = vmatpush1.bf16.msra.mxu0 0
      %4037 = vmatprep.subr.bf16.mxu0 0
      %4038 = vmatpush1.bf16.msra.mxu0 0
      %4039 = vmatprep.subr.bf16.mxu0 0
      %4040 = vmatpush1.bf16.msra.mxu0 0
      %4041 = vmatprep.subr.bf16.mxu0 0
      %4042 = vmatpush1.bf16.msra.mxu0 0
      %4043 = vmatprep.subr.bf16.mxu0 0
      %4044 = vmatpush1.bf16.msra.mxu0 0
      %4045 = vmatprep.subr.bf16.mxu0 0
      %4046 = vmatpush1.bf16.msra.mxu0 0
      %4047 = vmatprep.subr.bf16.mxu0 0
      %4048 = vmatpush1.bf16.msra.mxu0 0
      %4049 = vmatprep.subr.bf16.mxu0 0
      %4050 = vmatpush1.bf16.msra.mxu0 0
      %4051 = vmatprep.subr.bf16.mxu0 0
      %4052 = vmatpush1.bf16.msra.mxu0 0
      %4053 = vmatprep.subr.bf16.mxu0 0
      %4054 = vmatpush1.bf16.msra.mxu0 0
      %4055 = vmatprep.subr.bf16.mxu0 0
      %4056 = vmatpush1.bf16.msra.mxu0 0
      %4057 = vmatprep.subr.bf16.mxu0 0
      %4058 = vmatpush1.bf16.msra.mxu0 0
      %4059 = vmatprep.mubr.bf16.mxu0 0
      %4060 = vmatmul.mubr.bf16.gmra.mrb[0].mxu0 %v4025
      %v4061 = vpop.f32.mrb[0].mxu0
      %v4062 = vadd.f32 %v3995, %v4061
      %v4063 = vpop.f32.mrb[0].mxu0
      %v4064 = vpop.f32.mrb[0].mxu0
      %v4065 = vadd.f32 %v3998, %v4064
      %v4066 = vpop.f32.mrb[0].mxu0
      %4067 = vdwg.mxu0
      %s4068 = scalar_lea.vmem %s16, 160
      %v4069 = vld [vmem:[%s4068] sm:$0xf]
      %v4070 = vld [vmem:[%s4068 + $0x4] sm:$0xf]
      %v4071 = vld [vmem:[%s4068 + $0x8] sm:$0xf]
      %v4072 = vld [vmem:[%s4068 + $0xc] sm:$0xf]
      %v4073 = vld [vmem:[%s4068 + $0x10] sm:$0xf]
      %v4074 = vld [vmem:[%s4068 + $0x14] sm:$0xf]
      %v4075 = vld [vmem:[%s4068 + $0x18] sm:$0xf]
      %v4076 = vld [vmem:[%s4068 + $0x1c] sm:$0xf]
      %v4079 = vrot.slane %v3901, 1
      %v4080 = vrot.slane %v3902, 1
      %v4081 = vsel %vm2195, %v4079, %v4080
      %v4090 = vunpack.c.l.b16 %v4069
      %v4091 = vunpack.c.l.b16 %v4070
      %v4092 = vunpack.c.l.b16 %v4071
      %v4093 = vunpack.c.l.b16 %v4072
      %v4094 = vunpack.c.l.b16 %v4073
      %v4095 = vunpack.c.l.b16 %v4074
      %v4096 = vunpack.c.l.b16 %v4075
      %v4097 = vunpack.c.l.b16 %v4076
      %v4098 = vpack.c.b16 %v4091, %v4090
      %v4099 = vpack.c.b16 %v4093, %v4092
      %v4100 = vpack.c.b16 %v4095, %v4094
      %v4101 = vpack.c.b16 %v4097, %v4096
      %v4107 = vsel %vm2335, %v4081, 0
      %4109 = vmatprep.subr.bf16.mxu0 0
      %4110 = vmatpush1.bf16.msra.mxu0 %v4098
      %4111 = vmatprep.subr.bf16.mxu0 0
      %4112 = vmatpush1.bf16.msra.mxu0 %v4099
      %4113 = vmatprep.subr.bf16.mxu0 0
      %4114 = vmatpush1.bf16.msra.mxu0 %v4100
      %4115 = vmatprep.subr.bf16.mxu0 0
      %4116 = vmatpush1.bf16.msra.mxu0 %v4101
      %4117 = vmatprep.subr.bf16.mxu0 0
      %4118 = vmatpush1.bf16.msra.mxu0 0
      %4119 = vmatprep.subr.bf16.mxu0 0
      %4120 = vmatpush1.bf16.msra.mxu0 0
      %4121 = vmatprep.subr.bf16.mxu0 0
      %4122 = vmatpush1.bf16.msra.mxu0 0
      %4123 = vmatprep.subr.bf16.mxu0 0
      %4124 = vmatpush1.bf16.msra.mxu0 0
      %4125 = vmatprep.subr.bf16.mxu0 0
      %4126 = vmatpush1.bf16.msra.mxu0 0
      %4127 = vmatprep.subr.bf16.mxu0 0
      %4128 = vmatpush1.bf16.msra.mxu0 0
      %4129 = vmatprep.subr.bf16.mxu0 0
      %4130 = vmatpush1.bf16.msra.mxu0 0
      %4131 = vmatprep.subr.bf16.mxu0 0
      %4132 = vmatpush1.bf16.msra.mxu0 0
      %4133 = vmatprep.subr.bf16.mxu0 0
      %4134 = vmatpush1.bf16.msra.mxu0 0
      %4135 = vmatprep.subr.bf16.mxu0 0
      %4136 = vmatpush1.bf16.msra.mxu0 0
      %4137 = vmatprep.subr.bf16.mxu0 0
      %4138 = vmatpush1.bf16.msra.mxu0 0
      %4139 = vmatprep.subr.bf16.mxu0 0
      %4140 = vmatpush1.bf16.msra.mxu0 0
      %4141 = vmatprep.mubr.bf16.mxu0 0
      %4142 = vmatmul.mubr.bf16.gmra.mrb[0].mxu0 %v4107
      %v4143 = vpop.f32.mrb[0].mxu0
      %v4144 = vadd.f32 0.0, %v4143
      %v4145 = vpop.f32.mrb[0].mxu0
      %v4146 = vpop.f32.mrb[0].mxu0
      %v4147 = vadd.f32 0.0, %v4146
      %v4148 = vpop.f32.mrb[0].mxu0
      %4149 = vdwg.mxu0
      %v4150 = vadd.f32 %v4062, %v4144
      %v4151 = vadd.f32 %v4065, %v4147
      %s4152 = scalar_lea.vmem %s17, 1
      %v4153 = vld [vmem:[%s4152] sm:$0x1]
      %v4155 = vlaneseq
      %v4156 = vshrl.u32 %v4155, 7
      %v4157 = vsub.s32 0, %v4156
      %v4158 = vrot.slane %v4153, %v4157
      %v4160 = vadd.f32 %v4150, %v4158
      %v4161 = vadd.f32 %v4151, %v4158
      %v4162 = vmul.f32 %v4160, %v790
      %v4163 = vmul.f32 %v4161, %v795
      %v4164 = vunpack.c.l.bf16 %v3663
      %v4165 = vunpack.c.h.bf16 %v3663
      %v4166 = vadd.f32 %v4164, %v4162
      %v4167 = vadd.f32 %v4165, %v4163
      %s4168 = scalar_lea.vmem %s18, 1
      %v4169 = vld [vmem:[%s4168] sm:$0x1]
      %s4170 = scalar_lea.vmem %s19, 1
      %v4171 = vld [vmem:[%s4170] sm:$0x1]
      %v4172 = vsel %vm954, %v4166, 0.0
      %4173 = vadd.xlane.f32.xlu0 %v4172
      %v4174 = vpop.xlane.xlu0 %4173
      %v4175 = vsel %vm954, %v4167, 0.0
      %4176 = vadd.xlane.f32.xlu0 %v4175
      %v4177 = vpop.xlane.xlu0 %4176
      %v4178 = vmul.f32 %v4174, %v1972
      %v4179 = vmul.f32 %v4177, %v1972
      %v4180 = vsub.f32 %v4166, %v4178
      %v4181 = vsub.f32 %v4167, %v4179
      %v4182 = vmul.f32 %v4180, %v4180
      %v4183 = vmul.f32 %v4181, %v4181
      %v4184 = vsel %vm954, %v4182, 0.0
      %4185 = vadd.xlane.f32.xlu0 %v4184
      %v4186 = vpop.xlane.xlu0 %4185
      %v4187 = vsel %vm954, %v4183, 0.0
      %4188 = vadd.xlane.f32.xlu0 %v4187
      %v4189 = vpop.xlane.xlu0 %4188
      %v4190 = vmul.f32 %v4186, %v1972
      %v4191 = vmul.f32 %v4189, %v1972
      %v4192 = vadd.f32 %v4190, 1e-05
      %v4193 = vadd.f32 %v4191, 1e-05
      %v4194 = vrsqrt.pop %v4192
      %v4195 = vrsqrt.pop %v4193
      %v4196 = vmul.f32 %v4180, %v4194
      %v4197 = vmul.f32 %v4181, %v4195
      %v4199 = vlaneseq
      %v4200 = vshrl.u32 %v4199, 7
      %v4201 = vsub.s32 0, %v4200
      %v4202 = vrot.slane %v4169, %v4201
      %v4204 = vmul.f32 %v4196, %v4202
      %v4205 = vmul.f32 %v4197, %v4202
      %v4207 = vlaneseq
      %v4208 = vshrl.u32 %v4207, 7
      %v4209 = vsub.s32 0, %v4208
      %v4210 = vrot.slane %v4171, %v4209
      %v4212 = vadd.f32 %v4204, %v4210
      %v4213 = vadd.f32 %v4205, %v4210
      %v4214 = vpack.c.bf16 %v4213, %v4212
      %v4215 = vmul.bf16 %v4214, %v2038
      %v4216 = vld [vmem:[%s20] sm:$0xf]
      %v4217 = vld [vmem:[%s20 + $0x4] sm:$0xf]
      %v4218 = vld [vmem:[%s20 + $0x8] sm:$0xf]
      %v4219 = vld [vmem:[%s20 + $0xc] sm:$0xf]
      %v4220 = vld [vmem:[%s21] sm:$0x1]
      %v4222 = vlaneseq
      %v4223 = vshrl.u32 %v4222, 7
      %v4224 = vsub.s32 0, %v4223
      %v4225 = vrot.slane %v4220, %v4224
      %v4231 = vunpack.c.l.b16 %v4216
      %v4232 = vunpack.c.l.b16 %v4217
      %v4233 = vunpack.c.l.b16 %v4218
      %v4234 = vunpack.c.l.b16 %v4219
      %v4235 = vpack.c.b16 %v4232, %v4231
      %v4236 = vpack.c.b16 %v4234, %v4233
      %v4240 = vsel %vm954, %v4215, 0
      %4242 = vmatprep.subr.bf16.mxu0 0
      %4243 = vmatpush1.bf16.msra.mxu0 %v4235
      %4244 = vmatprep.subr.bf16.mxu0 0
      %4245 = vmatpush1.bf16.msra.mxu0 %v4236
      %4246 = vmatprep.subr.bf16.mxu0 0
      %4247 = vmatpush1.bf16.msra.mxu0 0
      %4248 = vmatprep.subr.bf16.mxu0 0
      %4249 = vmatpush1.bf16.msra.mxu0 0
      %4250 = vmatprep.subr.bf16.mxu0 0
      %4251 = vmatpush1.bf16.msra.mxu0 0
      %4252 = vmatprep.subr.bf16.mxu0 0
      %4253 = vmatpush1.bf16.msra.mxu0 0
      %4254 = vmatprep.subr.bf16.mxu0 0
      %4255 = vmatpush1.bf16.msra.mxu0 0
      %4256 = vmatprep.subr.bf16.mxu0 0
      %4257 = vmatpush1.bf16.msra.mxu0 0
      %4258 = vmatprep.subr.bf16.mxu0 0
      %4259 = vmatpush1.bf16.msra.mxu0 0
      %4260 = vmatprep.subr.bf16.mxu0 0
      %4261 = vmatpush1.bf16.msra.mxu0 0
      %4262 = vmatprep.subr.bf16.mxu0 0
      %4263 = vmatpush1.bf16.msra.mxu0 0
      %4264 = vmatprep.subr.bf16.mxu0 0
      %4265 = vmatpush1.bf16.msra.mxu0 0
      %4266 = vmatprep.subr.bf16.mxu0 0
      %4267 = vmatpush1.bf16.msra.mxu0 0
      %4268 = vmatprep.subr.bf16.mxu0 0
      %4269 = vmatpush1.bf16.msra.mxu0 0
      %4270 = vmatprep.subr.bf16.mxu0 0
      %4271 = vmatpush1.bf16.msra.mxu0 0
      %4272 = vmatprep.subr.bf16.mxu0 0
      %4273 = vmatpush1.bf16.msra.mxu0 0
      %4274 = vmatprep.mubr.bf16.mxu0 0
      %4275 = vmatmul.mubr.bf16.gmra.mrb[0].mxu0 %v4240
      %v4276 = vpop.f32.mrb[0].mxu0
      %v4277 = vadd.f32 %v4225, %v4276
      %v4278 = vpop.f32.mrb[0].mxu0
      %v4279 = vpop.f32.mrb[0].mxu0
      %v4280 = vadd.f32 %v4225, %v4279
      %v4281 = vpop.f32.mrb[0].mxu0
      %4282 = vdwg.mxu0
      %v4283 = vmul.f32 %v4277, %v790
      %v4284 = vmul.f32 %v4280, %v795
      %v4285 = vld [vmem:[%s767] sm:$0xff]
      %v4286 = vld [vmem:[%s767 + $0x8] sm:$0xff]
      %v4287 = vmul.f32 %v4283, 1.442695
      %v4288 = vpow.pop %v4287
      %v4289 = vmul.f32 %v4284, 1.442695
      %v4290 = vpow.pop %v4289
      %4293 = vrot.lane.b32.xlu0 %v4288, 124
      %v4294 = vpop.permute.xlu0 %4293
      %4295 = vrot.lane.b32.xlu0 %v4290, 124
      %v4296 = vpop.permute.xlu0 %4295
      %v4299 = vmul.f32 %v4285, %v4294
      %v4300 = vmul.f32 %v4286, %v4296
      %v4301 = vmul.f32 %v4299, %v790
      %v4302 = vmul.f32 %v4300, %v795
      %v4303 = vadd.f32 %v4283, %v4301
      %v4304 = vadd.f32 %v4284, %v4302
      %4305 = vst.msk [vmem:[%s772] sm:$0xff] %vm879, %v4283
      %4306 = vst.msk [vmem:[%s772 + $0x8] sm:$0xff] %vm879, %v4284
      %4307 = vst.msk [vmem:[%s777] sm:$0xff] %vm1325, %v4303
      %4308 = vst.msk [vmem:[%s777 + $0x8] sm:$0xff] %vm1325, %v4304
      %p4309 = scmp.lt.s32.totalorder %s35, 1
      %s4310 = scalar_select %p4309, %s35, 1
      %s4311 = smul.addr %s4310, 2
      %s4312 = smul.addr %s4311, 8
      %s4313 = scalar_lea.vmem %s22, %s4312
      %p4314 = scmp.lt.s32.totalorder %s35, 1
      %s4315 = scalar_select %p4314, %s35, 1
      %s4316 = smul.addr %s4315, 2
      %s4317 = smul.addr %s4316, 8
      %s4318 = scalar_lea.vmem %s23, %s4317
      // Predicated region
      $region109: #{tpu_custom_call.1} parent=107 // pred_check
        %p4319 = pneg %p535
      $region110: #{tpu_custom_call.1} parent=107 // pred_check_branch
        %4321 = sbr.rel (%p4319) target = $region112
      $region111: #{tpu_custom_call.1} parent=107 // pred_region
        _
      $region112: #{tpu_custom_call.1} parent=107 // pred_fallthru
        _
      // Predicated region
      $region113: #{tpu_custom_call.1} parent=107 // pred_check
        %p4322 = pneg %p561
      $region114: #{tpu_custom_call.1} parent=107 // pred_check_branch
        %4324 = sbr.rel (%p4322) target = $region116
      $region115: #{tpu_custom_call.1} parent=107 // pred_region
        _
      $region116: #{tpu_custom_call.1} parent=107 // pred_fallthru
        _
    $region108: #{tpu_custom_call.1} parent=5 // pred_fallthru
      _
    %p4325 = scmp.le.s32.totalorder 2, %s30
    // Predicated region
    $region117: #{tpu_custom_call.1} parent=5 // pred_check
      %p4326 = pneg %p4325
    $region118: #{tpu_custom_call.1} parent=5 // pred_check_branch
      %4328 = sbr.rel (%p4326) target = $region120
    $region119: #{tpu_custom_call.1} parent=5 // pred_region
      %s4329 = ssub.s32 %s30, 2
      // Predicated region
      $region121: #{tpu_custom_call.1} parent=119 // pred_check
        %p4330 = pneg %p541
      $region122: #{tpu_custom_call.1} parent=119 // pred_check_branch
        %4332 = sbr.rel (%p4330) target = $region124
      $region123: #{tpu_custom_call.1} parent=119 // pred_region
        %p4333 = scmp.lt.s32.totalorder %s36, 1
        %s4334 = scalar_select %p4333, %s36, 1
        %s4335 = smul.addr %s4334, 2
        %s4336 = smul.addr %s4335, 8
        %s4337 = scalar_lea.vmem %s22, %s4336
      $region124: #{tpu_custom_call.1} parent=119 // pred_fallthru
        _
      // Predicated region
      $region125: #{tpu_custom_call.1} parent=119 // pred_check
        %p4338 = pneg %p567
      $region126: #{tpu_custom_call.1} parent=119 // pred_check_branch
        %4340 = sbr.rel (%p4338) target = $region128
      $region127: #{tpu_custom_call.1} parent=119 // pred_region
        %p4341 = scmp.lt.s32.totalorder %s36, 1
        %s4342 = scalar_select %p4341, %s36, 1
        %s4343 = smul.addr %s4342, 2
        %s4344 = smul.addr %s4343, 8
        %s4345 = scalar_lea.vmem %s23, %s4344
      $region128: #{tpu_custom_call.1} parent=119 // pred_fallthru
        _
    $region120: #{tpu_custom_call.1} parent=5 // pred_fallthru
      _
  $region6: #{tpu_custom_call.1} parent=0 // loop_footer
    %s34 = sadd.s32 1, %s30
  $region7: #{tpu_custom_call.1} parent=0 // loop_footer_branch
    %29 = sbr.rel target = $region3
  $region8: #{tpu_custom_call.1} parent=0 // loop_exit
    _

</llo_original>
